<compile_context>
chip_gen: v7x
topology: tpu7x:2x2x1
jax: 0.10.0
libtpu: 0.0.40
codegen_flags: <defaults>
</compile_context>

<pallas_src>
import functools
import math

import jax
import jax.numpy as jnp
from jax.experimental import pallas as pl


# ---------------------------------------------------------------------------
# Fused kernel: everything VMEM-resident, single invocation (no grid).
# ---------------------------------------------------------------------------
def _finrnn_kernel(*refs, batch_padded, seq, hidden, num_layers):
    """refs layout (inputs..., output):
      [0] x      : (T*Bp, I)  time-major rows (row = t*Bp + b), batch padded to Bp
      [1] fc_w   : (I, H)     Linear(input -> hidden), transposed
      [2] fc_b   : (1, H)
      per layer l, 6 refs:
        wih   : (in_dim, 6H)  columns [0:3H] = fwd gates (r|z|n), [3H:6H] = bwd
        bih   : (1, 6H)
        whh_f : (H, 3H)   bhh_f : (1, 3H)
        whh_b : (H, 3H)   bhh_b : (1, 3H)
      [-3] fc2_w : (2H, L)    rows [0:H] act on fwd half, [H:2H] on bwd half
      [-2] fc2_b : (1, L)
      [-1] o_ref : (Bp, L)    softmax(logits)
    """
    Bp, T, H = batch_padded, seq, hidden
    f32 = jnp.float32

    n_in = 3 + 6 * num_layers + 2
    x_ref, fcw_ref, fcb_ref = refs[0], refs[1], refs[2]
    layer_refs = refs[3:3 + 6 * num_layers]
    fc2w_ref, fc2b_ref = refs[n_in - 2], refs[n_in - 1]
    o_ref = refs[n_in]

    def dot(a, b):
        return jnp.dot(a, b, preferred_element_type=f32)

    def gru_cell(gi, h, whh, bhh):
        # One GRU step, PyTorch gate order (r, z, n); gi = x @ W_ih + b_ih was
        # precomputed outside the recurrence, so only h @ W_hh is serial here.
        gh = dot(h, whh) + bhh
        r = jax.nn.sigmoid(gi[:, 0:H] + gh[:, 0:H])
        z = jax.nn.sigmoid(gi[:, H:2 * H] + gh[:, H:2 * H])
        n = jnp.tanh(gi[:, 2 * H:3 * H] + r * gh[:, 2 * H:3 * H])
        return (1.0 - z) * n + z * h

    # --- layer-0 input projection fused with fc + tanh (one big batched matmul;
    #     tanh rides the otherwise-idle EUP slot).
    src_f = jnp.tanh(dot(x_ref[...], fcw_ref[...]) + fcb_ref[...])       # (T*Bp, H)
    src_b = None                                                         # layer-0 input is single stream

    ys_f = ys_b = None
    for layer in range(num_layers):
        (wih_ref, bih_ref, whhf_ref, bhhf_ref,
         whhb_ref, bhhb_ref) = layer_refs[6 * layer:6 * layer + 6]

        # Batched x @ W_ih for all T steps and BOTH directions, hoisted out of
        # the serial recurrence.  For layer > 0 the (2H, 6H) weight is consumed
        # in two halves so the fwd/bwd activations never need concatenating
        # along lanes.
        if layer == 0:
            gi = dot(src_f, wih_ref[...]) + bih_ref[...]                 # (T*Bp, 6H)
        else:
            gi = (dot(src_f, wih_ref[0:H, :])
                  + dot(src_b, wih_ref[H:2 * H, :])
                  + bih_ref[...])                                        # (T*Bp, 6H)

        whh_f = whhf_ref[...]
        bhh_f = bhhf_ref[...]
        whh_b = whhb_ref[...]
        bhh_b = bhhb_ref[...]

        h_f = jnp.zeros((Bp, H), f32)
        h_b = jnp.zeros((Bp, H), f32)
        ys_f = [None] * T      # fwd output at original time t
        ys_b = [None] * T      # bwd output at original time t
        # Statically unrolled recurrence (T is tiny); fwd and bwd are
        # independent within a step and interleave on the MXU/VPU/EUP.
        for s in range(T):
            tb = T - 1 - s
            gi_f = gi[s * Bp:(s + 1) * Bp, 0:3 * H]
            gi_b = gi[tb * Bp:(tb + 1) * Bp, 3 * H:6 * H]
            h_f = gru_cell(gi_f, h_f, whh_f, bhh_f)
            h_b = gru_cell(gi_b, h_b, whh_b, bhh_b)
            ys_f[s] = h_f
            ys_b[tb] = h_b

        if layer + 1 < num_layers:
            # Next layer consumes the full bidirectional sequence (time-major).
            # Bp is sublane-aligned, so this stacking is tile-aligned.
            src_f = jnp.concatenate(ys_f, axis=0)                        # (T*Bp, H)
            src_b = jnp.concatenate(ys_b, axis=0)                        # (T*Bp, H)

    # --- head: linear_combination = out[:, -1, :]  ->  fc2  ->  softmax(dim=1)
    # fc2 weight is applied in fwd/bwd halves (avoids a lane concat of y_last).
    logits = (dot(ys_f[T - 1], fc2w_ref[0:H, :])
              + dot(ys_b[T - 1], fc2w_ref[H:2 * H, :])
              + fc2b_ref[...])                                           # (Bp, L)
    m = jnp.max(logits, axis=1, keepdims=True)
    e = jnp.exp(logits - m)
    denom = jnp.sum(e, axis=1, keepdims=True)
    o_ref[...] = e * pl.reciprocal(denom, approx=True)


# ---------------------------------------------------------------------------
# Wrapper
# ---------------------------------------------------------------------------
def fin_rnn_forward(sent, params):
    """Mirrors FinRNN.forward with attention_type=None: returns (logits, None)."""
    B, T, I = sent.shape
    H = params["hidden_size"]
    num_layers = params["num_layers"]
    L = params["fc2_w_t"].shape[1]
    Bp = ((B + 7) // 8) * 8          # pad batch to the f32 sublane tile

    # time-major, batch-padded, 2-D view: row = t*Bp + b (pad rows are zeros)
    x_tm = jnp.transpose(sent, (1, 0, 2))                    # (T, B, I)  (tiny XLA op)
    x_tm = jnp.pad(x_tm, ((0, 0), (0, Bp - B), (0, 0)))      # (T, Bp, I)
    x2d = x_tm.reshape(T * Bp, I).astype(jnp.float32)

    args = [x2d, params["fc_w_t"], params["fc_b"]]
    for lw in params["layers"]:
        args += [lw["wih"], lw["bih"],
                 lw["whh_f"], lw["bhh_f"], lw["whh_b"], lw["bhh_b"]]
    args += [params["fc2_w_t"], params["fc2_b"]]

    kernel = functools.partial(_finrnn_kernel, batch_padded=Bp, seq=T,
                               hidden=H, num_layers=num_layers)
    logits_padded = pl.pallas_call(
        kernel,
        out_shape=jax.ShapeDtypeStruct((Bp, L), jnp.float32),
    )(*args)

    energy = None   # attention_type=None in the reference -> attention branch disabled
    return logits_padded[:B], energy


# ---------------------------------------------------------------------------
# Deterministic parameters mirroring FinRNN's shapes (stored transposed/packed)
# ---------------------------------------------------------------------------
def init_params(key, input_size, hidden_size, num_layers, label_size):
    H = hidden_size
    k = 1.0 / math.sqrt(H)

    def uni(key, shape):
        return jax.random.uniform(key, shape, jnp.float32, minval=-k, maxval=k)

    keys = jax.random.split(key, 4 + 6 * num_layers)
    ki = iter(keys)

    params = {"hidden_size": H, "num_layers": num_layers}
    # fully_connected: Linear(input_size -> H); stored transposed (in, out)
    params["fc_w_t"] = uni(next(ki), (input_size, H))
    params["fc_b"] = uni(next(ki), (1, H))

    layers = []
    for layer in range(num_layers):
        in_dim = H if layer == 0 else 2 * H
        layers.append({
            # input-to-hidden packed for both directions:
            # columns [0:3H] = fwd (r|z|n), [3H:6H] = bwd (r|z|n)
            "wih": uni(next(ki), (in_dim, 6 * H)),
            "bih": uni(next(ki), (1, 6 * H)),
            "whh_f": uni(next(ki), (H, 3 * H)),
            "bhh_f": uni(next(ki), (1, 3 * H)),
            "whh_b": uni(next(ki), (H, 3 * H)),
            "bhh_b": uni(next(ki), (1, 3 * H)),
        })
    params["layers"] = layers

    # fully_connected2: Linear(2H -> label_size); stored transposed (in, out)
    params["fc2_w_t"] = uni(next(ki), (2 * H, label_size))
    params["fc2_b"] = uni(next(ki), (1, label_size))
    return params


# ---------------------------------------------------------------------------
if __name__ == "__main__":
    B, T = 2, 8
    INPUT_SIZE, HIDDEN_SIZE, NUM_LAYERS, LABEL_SIZE = 32, 32, 2, 2

    key = jax.random.PRNGKey(0)
    pkey, xkey = jax.random.split(key)
    params = init_params(pkey, INPUT_SIZE, HIDDEN_SIZE, NUM_LAYERS, LABEL_SIZE)
    sent = jax.random.normal(xkey, (B, T, INPUT_SIZE), jnp.float32)

    fwd = jax.jit(functools.partial(fin_rnn_forward, params=params))
    logits, energy = fwd(sent)
    logits = jax.block_until_ready(logits)

    assert logits.shape == (B, LABEL_SIZE)
    assert energy is None
    assert bool(jnp.all(jnp.isfinite(logits)))
    # approx (EUP) reciprocal in the softmax -> slightly loose tolerance on row sums
    assert bool(jnp.allclose(jnp.sum(logits, axis=1), 1.0, atol=1e-2))
    print("KERNEL_OK")
</pallas_src>

<mosaic_0001>
module attributes {stable_mosaic.version = 11 : i64} {
  func.func @_finrnn_kernel(%arg0: memref<64x32xf32, #tpu.memory_space<vmem>>, %arg1: memref<32x32xf32, #tpu.memory_space<vmem>>, %arg2: memref<1x32xf32, #tpu.memory_space<vmem>>, %arg3: memref<32x192xf32, #tpu.memory_space<vmem>>, %arg4: memref<1x192xf32, #tpu.memory_space<vmem>>, %arg5: memref<32x96xf32, #tpu.memory_space<vmem>>, %arg6: memref<1x96xf32, #tpu.memory_space<vmem>>, %arg7: memref<32x96xf32, #tpu.memory_space<vmem>>, %arg8: memref<1x96xf32, #tpu.memory_space<vmem>>, %arg9: memref<64x192xf32, #tpu.memory_space<vmem>>, %arg10: memref<1x192xf32, #tpu.memory_space<vmem>>, %arg11: memref<32x96xf32, #tpu.memory_space<vmem>>, %arg12: memref<1x96xf32, #tpu.memory_space<vmem>>, %arg13: memref<32x96xf32, #tpu.memory_space<vmem>>, %arg14: memref<1x96xf32, #tpu.memory_space<vmem>>, %arg15: memref<64x2xf32, #tpu.memory_space<vmem>>, %arg16: memref<1x2xf32, #tpu.memory_space<vmem>>, %arg17: memref<8x2xf32, #tpu.memory_space<vmem>>) attributes {dimension_semantics = [], scalar_prefetch = 0 : i64, scratch_operands = 0 : i64, tpu.core_type = #tpu.core_type<tc>} {
    %c0 = arith.constant 0 : index
    %c0_0 = arith.constant 0 : index
    %0 = vector.load %arg0[%c0, %c0_0] : memref<64x32xf32, #tpu.memory_space<vmem>>, vector<64x32xf32>
    %c0_1 = arith.constant 0 : index
    %c0_2 = arith.constant 0 : index
    %1 = vector.load %arg1[%c0_1, %c0_2] : memref<32x32xf32, #tpu.memory_space<vmem>>, vector<32x32xf32>
    %cst = arith.constant dense<0.000000e+00> : vector<64x32xf32>
    %2 = tpu.matmul %0, %1, %cst {dimension_numbers = #tpu.dot_dimension_numbers<[1], [0], [0], [1], [0, 0, 1, 1], [], []>} : vector<64x32xf32>, vector<32x32xf32>, vector<64x32xf32> -> vector<64x32xf32>
    %c0_3 = arith.constant 0 : index
    %c0_4 = arith.constant 0 : index
    %3 = vector.load %arg2[%c0_3, %c0_4] : memref<1x32xf32, #tpu.memory_space<vmem>>, vector<1x32xf32>
    %4 = vector.broadcast %3 : vector<1x32xf32> to vector<64x32xf32>
    %5 = arith.addf %2, %4 : vector<64x32xf32>
    %6 = math.tanh %5 : vector<64x32xf32>
    %c0_5 = arith.constant 0 : index
    %c0_6 = arith.constant 0 : index
    %7 = vector.load %arg3[%c0_5, %c0_6] : memref<32x192xf32, #tpu.memory_space<vmem>>, vector<32x192xf32>
    %cst_7 = arith.constant dense<0.000000e+00> : vector<64x192xf32>
    %8 = tpu.matmul %6, %7, %cst_7 {dimension_numbers = #tpu.dot_dimension_numbers<[1], [0], [0], [1], [0, 0, 1, 1], [], []>} : vector<64x32xf32>, vector<32x192xf32>, vector<64x192xf32> -> vector<64x192xf32>
    %c0_8 = arith.constant 0 : index
    %c0_9 = arith.constant 0 : index
    %9 = vector.load %arg4[%c0_8, %c0_9] : memref<1x192xf32, #tpu.memory_space<vmem>>, vector<1x192xf32>
    %10 = vector.broadcast %9 : vector<1x192xf32> to vector<64x192xf32>
    %11 = arith.addf %8, %10 : vector<64x192xf32>
    %c0_10 = arith.constant 0 : index
    %c0_11 = arith.constant 0 : index
    %12 = vector.load %arg5[%c0_10, %c0_11] : memref<32x96xf32, #tpu.memory_space<vmem>>, vector<32x96xf32>
    %c0_12 = arith.constant 0 : index
    %c0_13 = arith.constant 0 : index
    %13 = vector.load %arg6[%c0_12, %c0_13] : memref<1x96xf32, #tpu.memory_space<vmem>>, vector<1x96xf32>
    %c0_14 = arith.constant 0 : index
    %c0_15 = arith.constant 0 : index
    %14 = vector.load %arg7[%c0_14, %c0_15] : memref<32x96xf32, #tpu.memory_space<vmem>>, vector<32x96xf32>
    %c0_16 = arith.constant 0 : index
    %c0_17 = arith.constant 0 : index
    %15 = vector.load %arg8[%c0_16, %c0_17] : memref<1x96xf32, #tpu.memory_space<vmem>>, vector<1x96xf32>
    %cst_18 = arith.constant 0.000000e+00 : f32
    %16 = vector.broadcast %cst_18 : f32 to vector<8x32xf32>
    %cst_19 = arith.constant 0.000000e+00 : f32
    %17 = vector.broadcast %cst_19 : f32 to vector<8x32xf32>
    %18 = vector.extract_strided_slice %11 {offsets = [0, 0], sizes = [8, 96], strides = [1, 1]} : vector<64x192xf32> to vector<8x96xf32>
    %19 = vector.extract_strided_slice %11 {offsets = [56, 96], sizes = [8, 96], strides = [1, 1]} : vector<64x192xf32> to vector<8x96xf32>
    %cst_20 = arith.constant dense<0.000000e+00> : vector<8x96xf32>
    %20 = tpu.matmul %16, %12, %cst_20 {dimension_numbers = #tpu.dot_dimension_numbers<[1], [0], [0], [1], [0, 0, 1, 1], [], []>} : vector<8x32xf32>, vector<32x96xf32>, vector<8x96xf32> -> vector<8x96xf32>
    %21 = vector.broadcast %13 : vector<1x96xf32> to vector<8x96xf32>
    %22 = arith.addf %20, %21 : vector<8x96xf32>
    %23 = vector.extract_strided_slice %18 {offsets = [0, 0], sizes = [8, 32], strides = [1, 1]} : vector<8x96xf32> to vector<8x32xf32>
    %24 = vector.extract_strided_slice %22 {offsets = [0, 0], sizes = [8, 32], strides = [1, 1]} : vector<8x96xf32> to vector<8x32xf32>
    %25 = arith.addf %23, %24 : vector<8x32xf32>
    %26 = arith.negf %25 : vector<8x32xf32>
    %27 = math.exp %26 : vector<8x32xf32>
    %cst_21 = arith.constant 1.000000e+00 : f32
    %28 = vector.broadcast %cst_21 : f32 to vector<8x32xf32>
    %29 = arith.addf %28, %27 : vector<8x32xf32>
    %30 = arith.divf %28, %29 : vector<8x32xf32>
    %31 = vector.extract_strided_slice %18 {offsets = [0, 32], sizes = [8, 32], strides = [1, 1]} : vector<8x96xf32> to vector<8x32xf32>
    %32 = vector.extract_strided_slice %22 {offsets = [0, 32], sizes = [8, 32], strides = [1, 1]} : vector<8x96xf32> to vector<8x32xf32>
    %33 = arith.addf %31, %32 : vector<8x32xf32>
    %34 = arith.negf %33 : vector<8x32xf32>
    %35 = math.exp %34 : vector<8x32xf32>
    %cst_22 = arith.constant 1.000000e+00 : f32
    %36 = vector.broadcast %cst_22 : f32 to vector<8x32xf32>
    %37 = arith.addf %36, %35 : vector<8x32xf32>
    %38 = arith.divf %36, %37 : vector<8x32xf32>
    %39 = vector.extract_strided_slice %18 {offsets = [0, 64], sizes = [8, 32], strides = [1, 1]} : vector<8x96xf32> to vector<8x32xf32>
    %40 = vector.extract_strided_slice %22 {offsets = [0, 64], sizes = [8, 32], strides = [1, 1]} : vector<8x96xf32> to vector<8x32xf32>
    %41 = arith.mulf %30, %40 : vector<8x32xf32>
    %42 = arith.addf %39, %41 : vector<8x32xf32>
    %43 = math.tanh %42 : vector<8x32xf32>
    %cst_23 = arith.constant 1.000000e+00 : f32
    %44 = vector.broadcast %cst_23 : f32 to vector<8x32xf32>
    %45 = arith.subf %44, %38 : vector<8x32xf32>
    %46 = arith.mulf %45, %43 : vector<8x32xf32>
    %47 = arith.mulf %38, %16 : vector<8x32xf32>
    %48 = arith.addf %46, %47 : vector<8x32xf32>
    %cst_24 = arith.constant dense<0.000000e+00> : vector<8x96xf32>
    %49 = tpu.matmul %17, %14, %cst_24 {dimension_numbers = #tpu.dot_dimension_numbers<[1], [0], [0], [1], [0, 0, 1, 1], [], []>} : vector<8x32xf32>, vector<32x96xf32>, vector<8x96xf32> -> vector<8x96xf32>
    %50 = vector.broadcast %15 : vector<1x96xf32> to vector<8x96xf32>
    %51 = arith.addf %49, %50 : vector<8x96xf32>
    %52 = vector.extract_strided_slice %19 {offsets = [0, 0], sizes = [8, 32], strides = [1, 1]} : vector<8x96xf32> to vector<8x32xf32>
    %53 = vector.extract_strided_slice %51 {offsets = [0, 0], sizes = [8, 32], strides = [1, 1]} : vector<8x96xf32> to vector<8x32xf32>
    %54 = arith.addf %52, %53 : vector<8x32xf32>
    %55 = arith.negf %54 : vector<8x32xf32>
    %56 = math.exp %55 : vector<8x32xf32>
    %cst_25 = arith.constant 1.000000e+00 : f32
    %57 = vector.broadcast %cst_25 : f32 to vector<8x32xf32>
    %58 = arith.addf %57, %56 : vector<8x32xf32>
    %59 = arith.divf %57, %58 : vector<8x32xf32>
    %60 = vector.extract_strided_slice %19 {offsets = [0, 32], sizes = [8, 32], strides = [1, 1]} : vector<8x96xf32> to vector<8x32xf32>
    %61 = vector.extract_strided_slice %51 {offsets = [0, 32], sizes = [8, 32], strides = [1, 1]} : vector<8x96xf32> to vector<8x32xf32>
    %62 = arith.addf %60, %61 : vector<8x32xf32>
    %63 = arith.negf %62 : vector<8x32xf32>
    %64 = math.exp %63 : vector<8x32xf32>
    %cst_26 = arith.constant 1.000000e+00 : f32
    %65 = vector.broadcast %cst_26 : f32 to vector<8x32xf32>
    %66 = arith.addf %65, %64 : vector<8x32xf32>
    %67 = arith.divf %65, %66 : vector<8x32xf32>
    %68 = vector.extract_strided_slice %19 {offsets = [0, 64], sizes = [8, 32], strides = [1, 1]} : vector<8x96xf32> to vector<8x32xf32>
    %69 = vector.extract_strided_slice %51 {offsets = [0, 64], sizes = [8, 32], strides = [1, 1]} : vector<8x96xf32> to vector<8x32xf32>
    %70 = arith.mulf %59, %69 : vector<8x32xf32>
    %71 = arith.addf %68, %70 : vector<8x32xf32>
    %72 = math.tanh %71 : vector<8x32xf32>
    %cst_27 = arith.constant 1.000000e+00 : f32
    %73 = vector.broadcast %cst_27 : f32 to vector<8x32xf32>
    %74 = arith.subf %73, %67 : vector<8x32xf32>
    %75 = arith.mulf %74, %72 : vector<8x32xf32>
    %76 = arith.mulf %67, %17 : vector<8x32xf32>
    %77 = arith.addf %75, %76 : vector<8x32xf32>
    %78 = vector.extract_strided_slice %11 {offsets = [8, 0], sizes = [8, 96], strides = [1, 1]} : vector<64x192xf32> to vector<8x96xf32>
    %79 = vector.extract_strided_slice %11 {offsets = [48, 96], sizes = [8, 96], strides = [1, 1]} : vector<64x192xf32> to vector<8x96xf32>
    %cst_28 = arith.constant dense<0.000000e+00> : vector<8x96xf32>
    %80 = tpu.matmul %48, %12, %cst_28 {dimension_numbers = #tpu.dot_dimension_numbers<[1], [0], [0], [1], [0, 0, 1, 1], [], []>} : vector<8x32xf32>, vector<32x96xf32>, vector<8x96xf32> -> vector<8x96xf32>
    %81 = vector.broadcast %13 : vector<1x96xf32> to vector<8x96xf32>
    %82 = arith.addf %80, %81 : vector<8x96xf32>
    %83 = vector.extract_strided_slice %78 {offsets = [0, 0], sizes = [8, 32], strides = [1, 1]} : vector<8x96xf32> to vector<8x32xf32>
    %84 = vector.extract_strided_slice %82 {offsets = [0, 0], sizes = [8, 32], strides = [1, 1]} : vector<8x96xf32> to vector<8x32xf32>
    %85 = arith.addf %83, %84 : vector<8x32xf32>
    %86 = arith.negf %85 : vector<8x32xf32>
    %87 = math.exp %86 : vector<8x32xf32>
    %cst_29 = arith.constant 1.000000e+00 : f32
    %88 = vector.broadcast %cst_29 : f32 to vector<8x32xf32>
    %89 = arith.addf %88, %87 : vector<8x32xf32>
    %90 = arith.divf %88, %89 : vector<8x32xf32>
    %91 = vector.extract_strided_slice %78 {offsets = [0, 32], sizes = [8, 32], strides = [1, 1]} : vector<8x96xf32> to vector<8x32xf32>
    %92 = vector.extract_strided_slice %82 {offsets = [0, 32], sizes = [8, 32], strides = [1, 1]} : vector<8x96xf32> to vector<8x32xf32>
    %93 = arith.addf %91, %92 : vector<8x32xf32>
    %94 = arith.negf %93 : vector<8x32xf32>
    %95 = math.exp %94 : vector<8x32xf32>
    %cst_30 = arith.constant 1.000000e+00 : f32
    %96 = vector.broadcast %cst_30 : f32 to vector<8x32xf32>
    %97 = arith.addf %96, %95 : vector<8x32xf32>
    %98 = arith.divf %96, %97 : vector<8x32xf32>
    %99 = vector.extract_strided_slice %78 {offsets = [0, 64], sizes = [8, 32], strides = [1, 1]} : vector<8x96xf32> to vector<8x32xf32>
    %100 = vector.extract_strided_slice %82 {offsets = [0, 64], sizes = [8, 32], strides = [1, 1]} : vector<8x96xf32> to vector<8x32xf32>
    %101 = arith.mulf %90, %100 : vector<8x32xf32>
    %102 = arith.addf %99, %101 : vector<8x32xf32>
    %103 = math.tanh %102 : vector<8x32xf32>
    %cst_31 = arith.constant 1.000000e+00 : f32
    %104 = vector.broadcast %cst_31 : f32 to vector<8x32xf32>
    %105 = arith.subf %104, %98 : vector<8x32xf32>
    %106 = arith.mulf %105, %103 : vector<8x32xf32>
    %107 = arith.mulf %98, %48 : vector<8x32xf32>
    %108 = arith.addf %106, %107 : vector<8x32xf32>
    %cst_32 = arith.constant dense<0.000000e+00> : vector<8x96xf32>
    %109 = tpu.matmul %77, %14, %cst_32 {dimension_numbers = #tpu.dot_dimension_numbers<[1], [0], [0], [1], [0, 0, 1, 1], [], []>} : vector<8x32xf32>, vector<32x96xf32>, vector<8x96xf32> -> vector<8x96xf32>
    %110 = vector.broadcast %15 : vector<1x96xf32> to vector<8x96xf32>
    %111 = arith.addf %109, %110 : vector<8x96xf32>
    %112 = vector.extract_strided_slice %79 {offsets = [0, 0], sizes = [8, 32], strides = [1, 1]} : vector<8x96xf32> to vector<8x32xf32>
    %113 = vector.extract_strided_slice %111 {offsets = [0, 0], sizes = [8, 32], strides = [1, 1]} : vector<8x96xf32> to vector<8x32xf32>
    %114 = arith.addf %112, %113 : vector<8x32xf32>
    %115 = arith.negf %114 : vector<8x32xf32>
    %116 = math.exp %115 : vector<8x32xf32>
    %cst_33 = arith.constant 1.000000e+00 : f32
    %117 = vector.broadcast %cst_33 : f32 to vector<8x32xf32>
    %118 = arith.addf %117, %116 : vector<8x32xf32>
    %119 = arith.divf %117, %118 : vector<8x32xf32>
    %120 = vector.extract_strided_slice %79 {offsets = [0, 32], sizes = [8, 32], strides = [1, 1]} : vector<8x96xf32> to vector<8x32xf32>
    %121 = vector.extract_strided_slice %111 {offsets = [0, 32], sizes = [8, 32], strides = [1, 1]} : vector<8x96xf32> to vector<8x32xf32>
    %122 = arith.addf %120, %121 : vector<8x32xf32>
    %123 = arith.negf %122 : vector<8x32xf32>
    %124 = math.exp %123 : vector<8x32xf32>
    %cst_34 = arith.constant 1.000000e+00 : f32
    %125 = vector.broadcast %cst_34 : f32 to vector<8x32xf32>
    %126 = arith.addf %125, %124 : vector<8x32xf32>
    %127 = arith.divf %125, %126 : vector<8x32xf32>
    %128 = vector.extract_strided_slice %79 {offsets = [0, 64], sizes = [8, 32], strides = [1, 1]} : vector<8x96xf32> to vector<8x32xf32>
    %129 = vector.extract_strided_slice %111 {offsets = [0, 64], sizes = [8, 32], strides = [1, 1]} : vector<8x96xf32> to vector<8x32xf32>
    %130 = arith.mulf %119, %129 : vector<8x32xf32>
    %131 = arith.addf %128, %130 : vector<8x32xf32>
    %132 = math.tanh %131 : vector<8x32xf32>
    %cst_35 = arith.constant 1.000000e+00 : f32
    %133 = vector.broadcast %cst_35 : f32 to vector<8x32xf32>
    %134 = arith.subf %133, %127 : vector<8x32xf32>
    %135 = arith.mulf %134, %132 : vector<8x32xf32>
    %136 = arith.mulf %127, %77 : vector<8x32xf32>
    %137 = arith.addf %135, %136 : vector<8x32xf32>
    %138 = vector.extract_strided_slice %11 {offsets = [16, 0], sizes = [8, 96], strides = [1, 1]} : vector<64x192xf32> to vector<8x96xf32>
    %139 = vector.extract_strided_slice %11 {offsets = [40, 96], sizes = [8, 96], strides = [1, 1]} : vector<64x192xf32> to vector<8x96xf32>
    %cst_36 = arith.constant dense<0.000000e+00> : vector<8x96xf32>
    %140 = tpu.matmul %108, %12, %cst_36 {dimension_numbers = #tpu.dot_dimension_numbers<[1], [0], [0], [1], [0, 0, 1, 1], [], []>} : vector<8x32xf32>, vector<32x96xf32>, vector<8x96xf32> -> vector<8x96xf32>
    %141 = vector.broadcast %13 : vector<1x96xf32> to vector<8x96xf32>
    %142 = arith.addf %140, %141 : vector<8x96xf32>
    %143 = vector.extract_strided_slice %138 {offsets = [0, 0], sizes = [8, 32], strides = [1, 1]} : vector<8x96xf32> to vector<8x32xf32>
    %144 = vector.extract_strided_slice %142 {offsets = [0, 0], sizes = [8, 32], strides = [1, 1]} : vector<8x96xf32> to vector<8x32xf32>
    %145 = arith.addf %143, %144 : vector<8x32xf32>
    %146 = arith.negf %145 : vector<8x32xf32>
    %147 = math.exp %146 : vector<8x32xf32>
    %cst_37 = arith.constant 1.000000e+00 : f32
    %148 = vector.broadcast %cst_37 : f32 to vector<8x32xf32>
    %149 = arith.addf %148, %147 : vector<8x32xf32>
    %150 = arith.divf %148, %149 : vector<8x32xf32>
    %151 = vector.extract_strided_slice %138 {offsets = [0, 32], sizes = [8, 32], strides = [1, 1]} : vector<8x96xf32> to vector<8x32xf32>
    %152 = vector.extract_strided_slice %142 {offsets = [0, 32], sizes = [8, 32], strides = [1, 1]} : vector<8x96xf32> to vector<8x32xf32>
    %153 = arith.addf %151, %152 : vector<8x32xf32>
    %154 = arith.negf %153 : vector<8x32xf32>
    %155 = math.exp %154 : vector<8x32xf32>
    %cst_38 = arith.constant 1.000000e+00 : f32
    %156 = vector.broadcast %cst_38 : f32 to vector<8x32xf32>
    %157 = arith.addf %156, %155 : vector<8x32xf32>
    %158 = arith.divf %156, %157 : vector<8x32xf32>
    %159 = vector.extract_strided_slice %138 {offsets = [0, 64], sizes = [8, 32], strides = [1, 1]} : vector<8x96xf32> to vector<8x32xf32>
    %160 = vector.extract_strided_slice %142 {offsets = [0, 64], sizes = [8, 32], strides = [1, 1]} : vector<8x96xf32> to vector<8x32xf32>
    %161 = arith.mulf %150, %160 : vector<8x32xf32>
    %162 = arith.addf %159, %161 : vector<8x32xf32>
    %163 = math.tanh %162 : vector<8x32xf32>
    %cst_39 = arith.constant 1.000000e+00 : f32
    %164 = vector.broadcast %cst_39 : f32 to vector<8x32xf32>
    %165 = arith.subf %164, %158 : vector<8x32xf32>
    %166 = arith.mulf %165, %163 : vector<8x32xf32>
    %167 = arith.mulf %158, %108 : vector<8x32xf32>
    %168 = arith.addf %166, %167 : vector<8x32xf32>
    %cst_40 = arith.constant dense<0.000000e+00> : vector<8x96xf32>
    %169 = tpu.matmul %137, %14, %cst_40 {dimension_numbers = #tpu.dot_dimension_numbers<[1], [0], [0], [1], [0, 0, 1, 1], [], []>} : vector<8x32xf32>, vector<32x96xf32>, vector<8x96xf32> -> vector<8x96xf32>
    %170 = vector.broadcast %15 : vector<1x96xf32> to vector<8x96xf32>
    %171 = arith.addf %169, %170 : vector<8x96xf32>
    %172 = vector.extract_strided_slice %139 {offsets = [0, 0], sizes = [8, 32], strides = [1, 1]} : vector<8x96xf32> to vector<8x32xf32>
    %173 = vector.extract_strided_slice %171 {offsets = [0, 0], sizes = [8, 32], strides = [1, 1]} : vector<8x96xf32> to vector<8x32xf32>
    %174 = arith.addf %172, %173 : vector<8x32xf32>
    %175 = arith.negf %174 : vector<8x32xf32>
    %176 = math.exp %175 : vector<8x32xf32>
    %cst_41 = arith.constant 1.000000e+00 : f32
    %177 = vector.broadcast %cst_41 : f32 to vector<8x32xf32>
    %178 = arith.addf %177, %176 : vector<8x32xf32>
    %179 = arith.divf %177, %178 : vector<8x32xf32>
    %180 = vector.extract_strided_slice %139 {offsets = [0, 32], sizes = [8, 32], strides = [1, 1]} : vector<8x96xf32> to vector<8x32xf32>
    %181 = vector.extract_strided_slice %171 {offsets = [0, 32], sizes = [8, 32], strides = [1, 1]} : vector<8x96xf32> to vector<8x32xf32>
    %182 = arith.addf %180, %181 : vector<8x32xf32>
    %183 = arith.negf %182 : vector<8x32xf32>
    %184 = math.exp %183 : vector<8x32xf32>
    %cst_42 = arith.constant 1.000000e+00 : f32
    %185 = vector.broadcast %cst_42 : f32 to vector<8x32xf32>
    %186 = arith.addf %185, %184 : vector<8x32xf32>
    %187 = arith.divf %185, %186 : vector<8x32xf32>
    %188 = vector.extract_strided_slice %139 {offsets = [0, 64], sizes = [8, 32], strides = [1, 1]} : vector<8x96xf32> to vector<8x32xf32>
    %189 = vector.extract_strided_slice %171 {offsets = [0, 64], sizes = [8, 32], strides = [1, 1]} : vector<8x96xf32> to vector<8x32xf32>
    %190 = arith.mulf %179, %189 : vector<8x32xf32>
    %191 = arith.addf %188, %190 : vector<8x32xf32>
    %192 = math.tanh %191 : vector<8x32xf32>
    %cst_43 = arith.constant 1.000000e+00 : f32
    %193 = vector.broadcast %cst_43 : f32 to vector<8x32xf32>
    %194 = arith.subf %193, %187 : vector<8x32xf32>
    %195 = arith.mulf %194, %192 : vector<8x32xf32>
    %196 = arith.mulf %187, %137 : vector<8x32xf32>
    %197 = arith.addf %195, %196 : vector<8x32xf32>
    %198 = vector.extract_strided_slice %11 {offsets = [24, 0], sizes = [8, 96], strides = [1, 1]} : vector<64x192xf32> to vector<8x96xf32>
    %199 = vector.extract_strided_slice %11 {offsets = [32, 96], sizes = [8, 96], strides = [1, 1]} : vector<64x192xf32> to vector<8x96xf32>
    %cst_44 = arith.constant dense<0.000000e+00> : vector<8x96xf32>
    %200 = tpu.matmul %168, %12, %cst_44 {dimension_numbers = #tpu.dot_dimension_numbers<[1], [0], [0], [1], [0, 0, 1, 1], [], []>} : vector<8x32xf32>, vector<32x96xf32>, vector<8x96xf32> -> vector<8x96xf32>
    %201 = vector.broadcast %13 : vector<1x96xf32> to vector<8x96xf32>
    %202 = arith.addf %200, %201 : vector<8x96xf32>
    %203 = vector.extract_strided_slice %198 {offsets = [0, 0], sizes = [8, 32], strides = [1, 1]} : vector<8x96xf32> to vector<8x32xf32>
    %204 = vector.extract_strided_slice %202 {offsets = [0, 0], sizes = [8, 32], strides = [1, 1]} : vector<8x96xf32> to vector<8x32xf32>
    %205 = arith.addf %203, %204 : vector<8x32xf32>
    %206 = arith.negf %205 : vector<8x32xf32>
    %207 = math.exp %206 : vector<8x32xf32>
    %cst_45 = arith.constant 1.000000e+00 : f32
    %208 = vector.broadcast %cst_45 : f32 to vector<8x32xf32>
    %209 = arith.addf %208, %207 : vector<8x32xf32>
    %210 = arith.divf %208, %209 : vector<8x32xf32>
    %211 = vector.extract_strided_slice %198 {offsets = [0, 32], sizes = [8, 32], strides = [1, 1]} : vector<8x96xf32> to vector<8x32xf32>
    %212 = vector.extract_strided_slice %202 {offsets = [0, 32], sizes = [8, 32], strides = [1, 1]} : vector<8x96xf32> to vector<8x32xf32>
    %213 = arith.addf %211, %212 : vector<8x32xf32>
    %214 = arith.negf %213 : vector<8x32xf32>
    %215 = math.exp %214 : vector<8x32xf32>
    %cst_46 = arith.constant 1.000000e+00 : f32
    %216 = vector.broadcast %cst_46 : f32 to vector<8x32xf32>
    %217 = arith.addf %216, %215 : vector<8x32xf32>
    %218 = arith.divf %216, %217 : vector<8x32xf32>
    %219 = vector.extract_strided_slice %198 {offsets = [0, 64], sizes = [8, 32], strides = [1, 1]} : vector<8x96xf32> to vector<8x32xf32>
    %220 = vector.extract_strided_slice %202 {offsets = [0, 64], sizes = [8, 32], strides = [1, 1]} : vector<8x96xf32> to vector<8x32xf32>
    %221 = arith.mulf %210, %220 : vector<8x32xf32>
    %222 = arith.addf %219, %221 : vector<8x32xf32>
    %223 = math.tanh %222 : vector<8x32xf32>
    %cst_47 = arith.constant 1.000000e+00 : f32
    %224 = vector.broadcast %cst_47 : f32 to vector<8x32xf32>
    %225 = arith.subf %224, %218 : vector<8x32xf32>
    %226 = arith.mulf %225, %223 : vector<8x32xf32>
    %227 = arith.mulf %218, %168 : vector<8x32xf32>
    %228 = arith.addf %226, %227 : vector<8x32xf32>
    %cst_48 = arith.constant dense<0.000000e+00> : vector<8x96xf32>
    %229 = tpu.matmul %197, %14, %cst_48 {dimension_numbers = #tpu.dot_dimension_numbers<[1], [0], [0], [1], [0, 0, 1, 1], [], []>} : vector<8x32xf32>, vector<32x96xf32>, vector<8x96xf32> -> vector<8x96xf32>
    %230 = vector.broadcast %15 : vector<1x96xf32> to vector<8x96xf32>
    %231 = arith.addf %229, %230 : vector<8x96xf32>
    %232 = vector.extract_strided_slice %199 {offsets = [0, 0], sizes = [8, 32], strides = [1, 1]} : vector<8x96xf32> to vector<8x32xf32>
    %233 = vector.extract_strided_slice %231 {offsets = [0, 0], sizes = [8, 32], strides = [1, 1]} : vector<8x96xf32> to vector<8x32xf32>
    %234 = arith.addf %232, %233 : vector<8x32xf32>
    %235 = arith.negf %234 : vector<8x32xf32>
    %236 = math.exp %235 : vector<8x32xf32>
    %cst_49 = arith.constant 1.000000e+00 : f32
    %237 = vector.broadcast %cst_49 : f32 to vector<8x32xf32>
    %238 = arith.addf %237, %236 : vector<8x32xf32>
    %239 = arith.divf %237, %238 : vector<8x32xf32>
    %240 = vector.extract_strided_slice %199 {offsets = [0, 32], sizes = [8, 32], strides = [1, 1]} : vector<8x96xf32> to vector<8x32xf32>
    %241 = vector.extract_strided_slice %231 {offsets = [0, 32], sizes = [8, 32], strides = [1, 1]} : vector<8x96xf32> to vector<8x32xf32>
    %242 = arith.addf %240, %241 : vector<8x32xf32>
    %243 = arith.negf %242 : vector<8x32xf32>
    %244 = math.exp %243 : vector<8x32xf32>
    %cst_50 = arith.constant 1.000000e+00 : f32
    %245 = vector.broadcast %cst_50 : f32 to vector<8x32xf32>
    %246 = arith.addf %245, %244 : vector<8x32xf32>
    %247 = arith.divf %245, %246 : vector<8x32xf32>
    %248 = vector.extract_strided_slice %199 {offsets = [0, 64], sizes = [8, 32], strides = [1, 1]} : vector<8x96xf32> to vector<8x32xf32>
    %249 = vector.extract_strided_slice %231 {offsets = [0, 64], sizes = [8, 32], strides = [1, 1]} : vector<8x96xf32> to vector<8x32xf32>
    %250 = arith.mulf %239, %249 : vector<8x32xf32>
    %251 = arith.addf %248, %250 : vector<8x32xf32>
    %252 = math.tanh %251 : vector<8x32xf32>
    %cst_51 = arith.constant 1.000000e+00 : f32
    %253 = vector.broadcast %cst_51 : f32 to vector<8x32xf32>
    %254 = arith.subf %253, %247 : vector<8x32xf32>
    %255 = arith.mulf %254, %252 : vector<8x32xf32>
    %256 = arith.mulf %247, %197 : vector<8x32xf32>
    %257 = arith.addf %255, %256 : vector<8x32xf32>
    %258 = vector.extract_strided_slice %11 {offsets = [32, 0], sizes = [8, 96], strides = [1, 1]} : vector<64x192xf32> to vector<8x96xf32>
    %259 = vector.extract_strided_slice %11 {offsets = [24, 96], sizes = [8, 96], strides = [1, 1]} : vector<64x192xf32> to vector<8x96xf32>
    %cst_52 = arith.constant dense<0.000000e+00> : vector<8x96xf32>
    %260 = tpu.matmul %228, %12, %cst_52 {dimension_numbers = #tpu.dot_dimension_numbers<[1], [0], [0], [1], [0, 0, 1, 1], [], []>} : vector<8x32xf32>, vector<32x96xf32>, vector<8x96xf32> -> vector<8x96xf32>
    %261 = vector.broadcast %13 : vector<1x96xf32> to vector<8x96xf32>
    %262 = arith.addf %260, %261 : vector<8x96xf32>
    %263 = vector.extract_strided_slice %258 {offsets = [0, 0], sizes = [8, 32], strides = [1, 1]} : vector<8x96xf32> to vector<8x32xf32>
    %264 = vector.extract_strided_slice %262 {offsets = [0, 0], sizes = [8, 32], strides = [1, 1]} : vector<8x96xf32> to vector<8x32xf32>
    %265 = arith.addf %263, %264 : vector<8x32xf32>
    %266 = arith.negf %265 : vector<8x32xf32>
    %267 = math.exp %266 : vector<8x32xf32>
    %cst_53 = arith.constant 1.000000e+00 : f32
    %268 = vector.broadcast %cst_53 : f32 to vector<8x32xf32>
    %269 = arith.addf %268, %267 : vector<8x32xf32>
    %270 = arith.divf %268, %269 : vector<8x32xf32>
    %271 = vector.extract_strided_slice %258 {offsets = [0, 32], sizes = [8, 32], strides = [1, 1]} : vector<8x96xf32> to vector<8x32xf32>
    %272 = vector.extract_strided_slice %262 {offsets = [0, 32], sizes = [8, 32], strides = [1, 1]} : vector<8x96xf32> to vector<8x32xf32>
    %273 = arith.addf %271, %272 : vector<8x32xf32>
    %274 = arith.negf %273 : vector<8x32xf32>
    %275 = math.exp %274 : vector<8x32xf32>
    %cst_54 = arith.constant 1.000000e+00 : f32
    %276 = vector.broadcast %cst_54 : f32 to vector<8x32xf32>
    %277 = arith.addf %276, %275 : vector<8x32xf32>
    %278 = arith.divf %276, %277 : vector<8x32xf32>
    %279 = vector.extract_strided_slice %258 {offsets = [0, 64], sizes = [8, 32], strides = [1, 1]} : vector<8x96xf32> to vector<8x32xf32>
    %280 = vector.extract_strided_slice %262 {offsets = [0, 64], sizes = [8, 32], strides = [1, 1]} : vector<8x96xf32> to vector<8x32xf32>
    %281 = arith.mulf %270, %280 : vector<8x32xf32>
    %282 = arith.addf %279, %281 : vector<8x32xf32>
    %283 = math.tanh %282 : vector<8x32xf32>
    %cst_55 = arith.constant 1.000000e+00 : f32
    %284 = vector.broadcast %cst_55 : f32 to vector<8x32xf32>
    %285 = arith.subf %284, %278 : vector<8x32xf32>
    %286 = arith.mulf %285, %283 : vector<8x32xf32>
    %287 = arith.mulf %278, %228 : vector<8x32xf32>
    %288 = arith.addf %286, %287 : vector<8x32xf32>
    %cst_56 = arith.constant dense<0.000000e+00> : vector<8x96xf32>
    %289 = tpu.matmul %257, %14, %cst_56 {dimension_numbers = #tpu.dot_dimension_numbers<[1], [0], [0], [1], [0, 0, 1, 1], [], []>} : vector<8x32xf32>, vector<32x96xf32>, vector<8x96xf32> -> vector<8x96xf32>
    %290 = vector.broadcast %15 : vector<1x96xf32> to vector<8x96xf32>
    %291 = arith.addf %289, %290 : vector<8x96xf32>
    %292 = vector.extract_strided_slice %259 {offsets = [0, 0], sizes = [8, 32], strides = [1, 1]} : vector<8x96xf32> to vector<8x32xf32>
    %293 = vector.extract_strided_slice %291 {offsets = [0, 0], sizes = [8, 32], strides = [1, 1]} : vector<8x96xf32> to vector<8x32xf32>
    %294 = arith.addf %292, %293 : vector<8x32xf32>
    %295 = arith.negf %294 : vector<8x32xf32>
    %296 = math.exp %295 : vector<8x32xf32>
    %cst_57 = arith.constant 1.000000e+00 : f32
    %297 = vector.broadcast %cst_57 : f32 to vector<8x32xf32>
    %298 = arith.addf %297, %296 : vector<8x32xf32>
    %299 = arith.divf %297, %298 : vector<8x32xf32>
    %300 = vector.extract_strided_slice %259 {offsets = [0, 32], sizes = [8, 32], strides = [1, 1]} : vector<8x96xf32> to vector<8x32xf32>
    %301 = vector.extract_strided_slice %291 {offsets = [0, 32], sizes = [8, 32], strides = [1, 1]} : vector<8x96xf32> to vector<8x32xf32>
    %302 = arith.addf %300, %301 : vector<8x32xf32>
    %303 = arith.negf %302 : vector<8x32xf32>
    %304 = math.exp %303 : vector<8x32xf32>
    %cst_58 = arith.constant 1.000000e+00 : f32
    %305 = vector.broadcast %cst_58 : f32 to vector<8x32xf32>
    %306 = arith.addf %305, %304 : vector<8x32xf32>
    %307 = arith.divf %305, %306 : vector<8x32xf32>
    %308 = vector.extract_strided_slice %259 {offsets = [0, 64], sizes = [8, 32], strides = [1, 1]} : vector<8x96xf32> to vector<8x32xf32>
    %309 = vector.extract_strided_slice %291 {offsets = [0, 64], sizes = [8, 32], strides = [1, 1]} : vector<8x96xf32> to vector<8x32xf32>
    %310 = arith.mulf %299, %309 : vector<8x32xf32>
    %311 = arith.addf %308, %310 : vector<8x32xf32>
    %312 = math.tanh %311 : vector<8x32xf32>
    %cst_59 = arith.constant 1.000000e+00 : f32
    %313 = vector.broadcast %cst_59 : f32 to vector<8x32xf32>
    %314 = arith.subf %313, %307 : vector<8x32xf32>
    %315 = arith.mulf %314, %312 : vector<8x32xf32>
    %316 = arith.mulf %307, %257 : vector<8x32xf32>
    %317 = arith.addf %315, %316 : vector<8x32xf32>
    %318 = vector.extract_strided_slice %11 {offsets = [40, 0], sizes = [8, 96], strides = [1, 1]} : vector<64x192xf32> to vector<8x96xf32>
    %319 = vector.extract_strided_slice %11 {offsets = [16, 96], sizes = [8, 96], strides = [1, 1]} : vector<64x192xf32> to vector<8x96xf32>
    %cst_60 = arith.constant dense<0.000000e+00> : vector<8x96xf32>
    %320 = tpu.matmul %288, %12, %cst_60 {dimension_numbers = #tpu.dot_dimension_numbers<[1], [0], [0], [1], [0, 0, 1, 1], [], []>} : vector<8x32xf32>, vector<32x96xf32>, vector<8x96xf32> -> vector<8x96xf32>
    %321 = vector.broadcast %13 : vector<1x96xf32> to vector<8x96xf32>
    %322 = arith.addf %320, %321 : vector<8x96xf32>
    %323 = vector.extract_strided_slice %318 {offsets = [0, 0], sizes = [8, 32], strides = [1, 1]} : vector<8x96xf32> to vector<8x32xf32>
    %324 = vector.extract_strided_slice %322 {offsets = [0, 0], sizes = [8, 32], strides = [1, 1]} : vector<8x96xf32> to vector<8x32xf32>
    %325 = arith.addf %323, %324 : vector<8x32xf32>
    %326 = arith.negf %325 : vector<8x32xf32>
    %327 = math.exp %326 : vector<8x32xf32>
    %cst_61 = arith.constant 1.000000e+00 : f32
    %328 = vector.broadcast %cst_61 : f32 to vector<8x32xf32>
    %329 = arith.addf %328, %327 : vector<8x32xf32>
    %330 = arith.divf %328, %329 : vector<8x32xf32>
    %331 = vector.extract_strided_slice %318 {offsets = [0, 32], sizes = [8, 32], strides = [1, 1]} : vector<8x96xf32> to vector<8x32xf32>
    %332 = vector.extract_strided_slice %322 {offsets = [0, 32], sizes = [8, 32], strides = [1, 1]} : vector<8x96xf32> to vector<8x32xf32>
    %333 = arith.addf %331, %332 : vector<8x32xf32>
    %334 = arith.negf %333 : vector<8x32xf32>
    %335 = math.exp %334 : vector<8x32xf32>
    %cst_62 = arith.constant 1.000000e+00 : f32
    %336 = vector.broadcast %cst_62 : f32 to vector<8x32xf32>
    %337 = arith.addf %336, %335 : vector<8x32xf32>
    %338 = arith.divf %336, %337 : vector<8x32xf32>
    %339 = vector.extract_strided_slice %318 {offsets = [0, 64], sizes = [8, 32], strides = [1, 1]} : vector<8x96xf32> to vector<8x32xf32>
    %340 = vector.extract_strided_slice %322 {offsets = [0, 64], sizes = [8, 32], strides = [1, 1]} : vector<8x96xf32> to vector<8x32xf32>
    %341 = arith.mulf %330, %340 : vector<8x32xf32>
    %342 = arith.addf %339, %341 : vector<8x32xf32>
    %343 = math.tanh %342 : vector<8x32xf32>
    %cst_63 = arith.constant 1.000000e+00 : f32
    %344 = vector.broadcast %cst_63 : f32 to vector<8x32xf32>
    %345 = arith.subf %344, %338 : vector<8x32xf32>
    %346 = arith.mulf %345, %343 : vector<8x32xf32>
    %347 = arith.mulf %338, %288 : vector<8x32xf32>
    %348 = arith.addf %346, %347 : vector<8x32xf32>
    %cst_64 = arith.constant dense<0.000000e+00> : vector<8x96xf32>
    %349 = tpu.matmul %317, %14, %cst_64 {dimension_numbers = #tpu.dot_dimension_numbers<[1], [0], [0], [1], [0, 0, 1, 1], [], []>} : vector<8x32xf32>, vector<32x96xf32>, vector<8x96xf32> -> vector<8x96xf32>
    %350 = vector.broadcast %15 : vector<1x96xf32> to vector<8x96xf32>
    %351 = arith.addf %349, %350 : vector<8x96xf32>
    %352 = vector.extract_strided_slice %319 {offsets = [0, 0], sizes = [8, 32], strides = [1, 1]} : vector<8x96xf32> to vector<8x32xf32>
    %353 = vector.extract_strided_slice %351 {offsets = [0, 0], sizes = [8, 32], strides = [1, 1]} : vector<8x96xf32> to vector<8x32xf32>
    %354 = arith.addf %352, %353 : vector<8x32xf32>
    %355 = arith.negf %354 : vector<8x32xf32>
    %356 = math.exp %355 : vector<8x32xf32>
    %cst_65 = arith.constant 1.000000e+00 : f32
    %357 = vector.broadcast %cst_65 : f32 to vector<8x32xf32>
    %358 = arith.addf %357, %356 : vector<8x32xf32>
    %359 = arith.divf %357, %358 : vector<8x32xf32>
    %360 = vector.extract_strided_slice %319 {offsets = [0, 32], sizes = [8, 32], strides = [1, 1]} : vector<8x96xf32> to vector<8x32xf32>
    %361 = vector.extract_strided_slice %351 {offsets = [0, 32], sizes = [8, 32], strides = [1, 1]} : vector<8x96xf32> to vector<8x32xf32>
    %362 = arith.addf %360, %361 : vector<8x32xf32>
    %363 = arith.negf %362 : vector<8x32xf32>
    %364 = math.exp %363 : vector<8x32xf32>
    %cst_66 = arith.constant 1.000000e+00 : f32
    %365 = vector.broadcast %cst_66 : f32 to vector<8x32xf32>
    %366 = arith.addf %365, %364 : vector<8x32xf32>
    %367 = arith.divf %365, %366 : vector<8x32xf32>
    %368 = vector.extract_strided_slice %319 {offsets = [0, 64], sizes = [8, 32], strides = [1, 1]} : vector<8x96xf32> to vector<8x32xf32>
    %369 = vector.extract_strided_slice %351 {offsets = [0, 64], sizes = [8, 32], strides = [1, 1]} : vector<8x96xf32> to vector<8x32xf32>
    %370 = arith.mulf %359, %369 : vector<8x32xf32>
    %371 = arith.addf %368, %370 : vector<8x32xf32>
    %372 = math.tanh %371 : vector<8x32xf32>
    %cst_67 = arith.constant 1.000000e+00 : f32
    %373 = vector.broadcast %cst_67 : f32 to vector<8x32xf32>
    %374 = arith.subf %373, %367 : vector<8x32xf32>
    %375 = arith.mulf %374, %372 : vector<8x32xf32>
    %376 = arith.mulf %367, %317 : vector<8x32xf32>
    %377 = arith.addf %375, %376 : vector<8x32xf32>
    %378 = vector.extract_strided_slice %11 {offsets = [48, 0], sizes = [8, 96], strides = [1, 1]} : vector<64x192xf32> to vector<8x96xf32>
    %379 = vector.extract_strided_slice %11 {offsets = [8, 96], sizes = [8, 96], strides = [1, 1]} : vector<64x192xf32> to vector<8x96xf32>
    %cst_68 = arith.constant dense<0.000000e+00> : vector<8x96xf32>
    %380 = tpu.matmul %348, %12, %cst_68 {dimension_numbers = #tpu.dot_dimension_numbers<[1], [0], [0], [1], [0, 0, 1, 1], [], []>} : vector<8x32xf32>, vector<32x96xf32>, vector<8x96xf32> -> vector<8x96xf32>
    %381 = vector.broadcast %13 : vector<1x96xf32> to vector<8x96xf32>
    %382 = arith.addf %380, %381 : vector<8x96xf32>
    %383 = vector.extract_strided_slice %378 {offsets = [0, 0], sizes = [8, 32], strides = [1, 1]} : vector<8x96xf32> to vector<8x32xf32>
    %384 = vector.extract_strided_slice %382 {offsets = [0, 0], sizes = [8, 32], strides = [1, 1]} : vector<8x96xf32> to vector<8x32xf32>
    %385 = arith.addf %383, %384 : vector<8x32xf32>
    %386 = arith.negf %385 : vector<8x32xf32>
    %387 = math.exp %386 : vector<8x32xf32>
    %cst_69 = arith.constant 1.000000e+00 : f32
    %388 = vector.broadcast %cst_69 : f32 to vector<8x32xf32>
    %389 = arith.addf %388, %387 : vector<8x32xf32>
    %390 = arith.divf %388, %389 : vector<8x32xf32>
    %391 = vector.extract_strided_slice %378 {offsets = [0, 32], sizes = [8, 32], strides = [1, 1]} : vector<8x96xf32> to vector<8x32xf32>
    %392 = vector.extract_strided_slice %382 {offsets = [0, 32], sizes = [8, 32], strides = [1, 1]} : vector<8x96xf32> to vector<8x32xf32>
    %393 = arith.addf %391, %392 : vector<8x32xf32>
    %394 = arith.negf %393 : vector<8x32xf32>
    %395 = math.exp %394 : vector<8x32xf32>
    %cst_70 = arith.constant 1.000000e+00 : f32
    %396 = vector.broadcast %cst_70 : f32 to vector<8x32xf32>
    %397 = arith.addf %396, %395 : vector<8x32xf32>
    %398 = arith.divf %396, %397 : vector<8x32xf32>
    %399 = vector.extract_strided_slice %378 {offsets = [0, 64], sizes = [8, 32], strides = [1, 1]} : vector<8x96xf32> to vector<8x32xf32>
    %400 = vector.extract_strided_slice %382 {offsets = [0, 64], sizes = [8, 32], strides = [1, 1]} : vector<8x96xf32> to vector<8x32xf32>
    %401 = arith.mulf %390, %400 : vector<8x32xf32>
    %402 = arith.addf %399, %401 : vector<8x32xf32>
    %403 = math.tanh %402 : vector<8x32xf32>
    %cst_71 = arith.constant 1.000000e+00 : f32
    %404 = vector.broadcast %cst_71 : f32 to vector<8x32xf32>
    %405 = arith.subf %404, %398 : vector<8x32xf32>
    %406 = arith.mulf %405, %403 : vector<8x32xf32>
    %407 = arith.mulf %398, %348 : vector<8x32xf32>
    %408 = arith.addf %406, %407 : vector<8x32xf32>
    %cst_72 = arith.constant dense<0.000000e+00> : vector<8x96xf32>
    %409 = tpu.matmul %377, %14, %cst_72 {dimension_numbers = #tpu.dot_dimension_numbers<[1], [0], [0], [1], [0, 0, 1, 1], [], []>} : vector<8x32xf32>, vector<32x96xf32>, vector<8x96xf32> -> vector<8x96xf32>
    %410 = vector.broadcast %15 : vector<1x96xf32> to vector<8x96xf32>
    %411 = arith.addf %409, %410 : vector<8x96xf32>
    %412 = vector.extract_strided_slice %379 {offsets = [0, 0], sizes = [8, 32], strides = [1, 1]} : vector<8x96xf32> to vector<8x32xf32>
    %413 = vector.extract_strided_slice %411 {offsets = [0, 0], sizes = [8, 32], strides = [1, 1]} : vector<8x96xf32> to vector<8x32xf32>
    %414 = arith.addf %412, %413 : vector<8x32xf32>
    %415 = arith.negf %414 : vector<8x32xf32>
    %416 = math.exp %415 : vector<8x32xf32>
    %cst_73 = arith.constant 1.000000e+00 : f32
    %417 = vector.broadcast %cst_73 : f32 to vector<8x32xf32>
    %418 = arith.addf %417, %416 : vector<8x32xf32>
    %419 = arith.divf %417, %418 : vector<8x32xf32>
    %420 = vector.extract_strided_slice %379 {offsets = [0, 32], sizes = [8, 32], strides = [1, 1]} : vector<8x96xf32> to vector<8x32xf32>
    %421 = vector.extract_strided_slice %411 {offsets = [0, 32], sizes = [8, 32], strides = [1, 1]} : vector<8x96xf32> to vector<8x32xf32>
    %422 = arith.addf %420, %421 : vector<8x32xf32>
    %423 = arith.negf %422 : vector<8x32xf32>
    %424 = math.exp %423 : vector<8x32xf32>
    %cst_74 = arith.constant 1.000000e+00 : f32
    %425 = vector.broadcast %cst_74 : f32 to vector<8x32xf32>
    %426 = arith.addf %425, %424 : vector<8x32xf32>
    %427 = arith.divf %425, %426 : vector<8x32xf32>
    %428 = vector.extract_strided_slice %379 {offsets = [0, 64], sizes = [8, 32], strides = [1, 1]} : vector<8x96xf32> to vector<8x32xf32>
    %429 = vector.extract_strided_slice %411 {offsets = [0, 64], sizes = [8, 32], strides = [1, 1]} : vector<8x96xf32> to vector<8x32xf32>
    %430 = arith.mulf %419, %429 : vector<8x32xf32>
    %431 = arith.addf %428, %430 : vector<8x32xf32>
    %432 = math.tanh %431 : vector<8x32xf32>
    %cst_75 = arith.constant 1.000000e+00 : f32
    %433 = vector.broadcast %cst_75 : f32 to vector<8x32xf32>
    %434 = arith.subf %433, %427 : vector<8x32xf32>
    %435 = arith.mulf %434, %432 : vector<8x32xf32>
    %436 = arith.mulf %427, %377 : vector<8x32xf32>
    %437 = arith.addf %435, %436 : vector<8x32xf32>
    %438 = vector.extract_strided_slice %11 {offsets = [56, 0], sizes = [8, 96], strides = [1, 1]} : vector<64x192xf32> to vector<8x96xf32>
    %439 = vector.extract_strided_slice %11 {offsets = [0, 96], sizes = [8, 96], strides = [1, 1]} : vector<64x192xf32> to vector<8x96xf32>
    %cst_76 = arith.constant dense<0.000000e+00> : vector<8x96xf32>
    %440 = tpu.matmul %408, %12, %cst_76 {dimension_numbers = #tpu.dot_dimension_numbers<[1], [0], [0], [1], [0, 0, 1, 1], [], []>} : vector<8x32xf32>, vector<32x96xf32>, vector<8x96xf32> -> vector<8x96xf32>
    %441 = vector.broadcast %13 : vector<1x96xf32> to vector<8x96xf32>
    %442 = arith.addf %440, %441 : vector<8x96xf32>
    %443 = vector.extract_strided_slice %438 {offsets = [0, 0], sizes = [8, 32], strides = [1, 1]} : vector<8x96xf32> to vector<8x32xf32>
    %444 = vector.extract_strided_slice %442 {offsets = [0, 0], sizes = [8, 32], strides = [1, 1]} : vector<8x96xf32> to vector<8x32xf32>
    %445 = arith.addf %443, %444 : vector<8x32xf32>
    %446 = arith.negf %445 : vector<8x32xf32>
    %447 = math.exp %446 : vector<8x32xf32>
    %cst_77 = arith.constant 1.000000e+00 : f32
    %448 = vector.broadcast %cst_77 : f32 to vector<8x32xf32>
    %449 = arith.addf %448, %447 : vector<8x32xf32>
    %450 = arith.divf %448, %449 : vector<8x32xf32>
    %451 = vector.extract_strided_slice %438 {offsets = [0, 32], sizes = [8, 32], strides = [1, 1]} : vector<8x96xf32> to vector<8x32xf32>
    %452 = vector.extract_strided_slice %442 {offsets = [0, 32], sizes = [8, 32], strides = [1, 1]} : vector<8x96xf32> to vector<8x32xf32>
    %453 = arith.addf %451, %452 : vector<8x32xf32>
    %454 = arith.negf %453 : vector<8x32xf32>
    %455 = math.exp %454 : vector<8x32xf32>
    %cst_78 = arith.constant 1.000000e+00 : f32
    %456 = vector.broadcast %cst_78 : f32 to vector<8x32xf32>
    %457 = arith.addf %456, %455 : vector<8x32xf32>
    %458 = arith.divf %456, %457 : vector<8x32xf32>
    %459 = vector.extract_strided_slice %438 {offsets = [0, 64], sizes = [8, 32], strides = [1, 1]} : vector<8x96xf32> to vector<8x32xf32>
    %460 = vector.extract_strided_slice %442 {offsets = [0, 64], sizes = [8, 32], strides = [1, 1]} : vector<8x96xf32> to vector<8x32xf32>
    %461 = arith.mulf %450, %460 : vector<8x32xf32>
    %462 = arith.addf %459, %461 : vector<8x32xf32>
    %463 = math.tanh %462 : vector<8x32xf32>
    %cst_79 = arith.constant 1.000000e+00 : f32
    %464 = vector.broadcast %cst_79 : f32 to vector<8x32xf32>
    %465 = arith.subf %464, %458 : vector<8x32xf32>
    %466 = arith.mulf %465, %463 : vector<8x32xf32>
    %467 = arith.mulf %458, %408 : vector<8x32xf32>
    %468 = arith.addf %466, %467 : vector<8x32xf32>
    %cst_80 = arith.constant dense<0.000000e+00> : vector<8x96xf32>
    %469 = tpu.matmul %437, %14, %cst_80 {dimension_numbers = #tpu.dot_dimension_numbers<[1], [0], [0], [1], [0, 0, 1, 1], [], []>} : vector<8x32xf32>, vector<32x96xf32>, vector<8x96xf32> -> vector<8x96xf32>
    %470 = vector.broadcast %15 : vector<1x96xf32> to vector<8x96xf32>
    %471 = arith.addf %469, %470 : vector<8x96xf32>
    %472 = vector.extract_strided_slice %439 {offsets = [0, 0], sizes = [8, 32], strides = [1, 1]} : vector<8x96xf32> to vector<8x32xf32>
    %473 = vector.extract_strided_slice %471 {offsets = [0, 0], sizes = [8, 32], strides = [1, 1]} : vector<8x96xf32> to vector<8x32xf32>
    %474 = arith.addf %472, %473 : vector<8x32xf32>
    %475 = arith.negf %474 : vector<8x32xf32>
    %476 = math.exp %475 : vector<8x32xf32>
    %cst_81 = arith.constant 1.000000e+00 : f32
    %477 = vector.broadcast %cst_81 : f32 to vector<8x32xf32>
    %478 = arith.addf %477, %476 : vector<8x32xf32>
    %479 = arith.divf %477, %478 : vector<8x32xf32>
    %480 = vector.extract_strided_slice %439 {offsets = [0, 32], sizes = [8, 32], strides = [1, 1]} : vector<8x96xf32> to vector<8x32xf32>
    %481 = vector.extract_strided_slice %471 {offsets = [0, 32], sizes = [8, 32], strides = [1, 1]} : vector<8x96xf32> to vector<8x32xf32>
    %482 = arith.addf %480, %481 : vector<8x32xf32>
    %483 = arith.negf %482 : vector<8x32xf32>
    %484 = math.exp %483 : vector<8x32xf32>
    %cst_82 = arith.constant 1.000000e+00 : f32
    %485 = vector.broadcast %cst_82 : f32 to vector<8x32xf32>
    %486 = arith.addf %485, %484 : vector<8x32xf32>
    %487 = arith.divf %485, %486 : vector<8x32xf32>
    %488 = vector.extract_strided_slice %439 {offsets = [0, 64], sizes = [8, 32], strides = [1, 1]} : vector<8x96xf32> to vector<8x32xf32>
    %489 = vector.extract_strided_slice %471 {offsets = [0, 64], sizes = [8, 32], strides = [1, 1]} : vector<8x96xf32> to vector<8x32xf32>
    %490 = arith.mulf %479, %489 : vector<8x32xf32>
    %491 = arith.addf %488, %490 : vector<8x32xf32>
    %492 = math.tanh %491 : vector<8x32xf32>
    %cst_83 = arith.constant 1.000000e+00 : f32
    %493 = vector.broadcast %cst_83 : f32 to vector<8x32xf32>
    %494 = arith.subf %493, %487 : vector<8x32xf32>
    %495 = arith.mulf %494, %492 : vector<8x32xf32>
    %496 = arith.mulf %487, %437 : vector<8x32xf32>
    %497 = arith.addf %495, %496 : vector<8x32xf32>
    %498 = tpu.concatenate %48, %108, %168, %228, %288, %348, %408, %468 in 0 : vector<8x32xf32>, vector<8x32xf32>, vector<8x32xf32>, vector<8x32xf32>, vector<8x32xf32>, vector<8x32xf32>, vector<8x32xf32>, vector<8x32xf32> -> vector<64x32xf32>
    %499 = tpu.concatenate %497, %437, %377, %317, %257, %197, %137, %77 in 0 : vector<8x32xf32>, vector<8x32xf32>, vector<8x32xf32>, vector<8x32xf32>, vector<8x32xf32>, vector<8x32xf32>, vector<8x32xf32>, vector<8x32xf32> -> vector<64x32xf32>
    %c0_84 = arith.constant 0 : index
    %c0_85 = arith.constant 0 : index
    %500 = vector.load %arg9[%c0_84, %c0_85] : memref<64x192xf32, #tpu.memory_space<vmem>>, vector<32x192xf32>
    %cst_86 = arith.constant dense<0.000000e+00> : vector<64x192xf32>
    %501 = tpu.matmul %498, %500, %cst_86 {dimension_numbers = #tpu.dot_dimension_numbers<[1], [0], [0], [1], [0, 0, 1, 1], [], []>} : vector<64x32xf32>, vector<32x192xf32>, vector<64x192xf32> -> vector<64x192xf32>
    %c32 = arith.constant 32 : index
    %c0_87 = arith.constant 0 : index
    %502 = vector.load %arg9[%c32, %c0_87] : memref<64x192xf32, #tpu.memory_space<vmem>>, vector<32x192xf32>
    %cst_88 = arith.constant dense<0.000000e+00> : vector<64x192xf32>
    %503 = tpu.matmul %499, %502, %cst_88 {dimension_numbers = #tpu.dot_dimension_numbers<[1], [0], [0], [1], [0, 0, 1, 1], [], []>} : vector<64x32xf32>, vector<32x192xf32>, vector<64x192xf32> -> vector<64x192xf32>
    %504 = arith.addf %501, %503 : vector<64x192xf32>
    %c0_89 = arith.constant 0 : index
    %c0_90 = arith.constant 0 : index
    %505 = vector.load %arg10[%c0_89, %c0_90] : memref<1x192xf32, #tpu.memory_space<vmem>>, vector<1x192xf32>
    %506 = vector.broadcast %505 : vector<1x192xf32> to vector<64x192xf32>
    %507 = arith.addf %504, %506 : vector<64x192xf32>
    %c0_91 = arith.constant 0 : index
    %c0_92 = arith.constant 0 : index
    %508 = vector.load %arg11[%c0_91, %c0_92] : memref<32x96xf32, #tpu.memory_space<vmem>>, vector<32x96xf32>
    %c0_93 = arith.constant 0 : index
    %c0_94 = arith.constant 0 : index
    %509 = vector.load %arg12[%c0_93, %c0_94] : memref<1x96xf32, #tpu.memory_space<vmem>>, vector<1x96xf32>
    %c0_95 = arith.constant 0 : index
    %c0_96 = arith.constant 0 : index
    %510 = vector.load %arg13[%c0_95, %c0_96] : memref<32x96xf32, #tpu.memory_space<vmem>>, vector<32x96xf32>
    %c0_97 = arith.constant 0 : index
    %c0_98 = arith.constant 0 : index
    %511 = vector.load %arg14[%c0_97, %c0_98] : memref<1x96xf32, #tpu.memory_space<vmem>>, vector<1x96xf32>
    %cst_99 = arith.constant 0.000000e+00 : f32
    %512 = vector.broadcast %cst_99 : f32 to vector<8x32xf32>
    %cst_100 = arith.constant 0.000000e+00 : f32
    %513 = vector.broadcast %cst_100 : f32 to vector<8x32xf32>
    %514 = vector.extract_strided_slice %507 {offsets = [0, 0], sizes = [8, 96], strides = [1, 1]} : vector<64x192xf32> to vector<8x96xf32>
    %515 = vector.extract_strided_slice %507 {offsets = [56, 96], sizes = [8, 96], strides = [1, 1]} : vector<64x192xf32> to vector<8x96xf32>
    %cst_101 = arith.constant dense<0.000000e+00> : vector<8x96xf32>
    %516 = tpu.matmul %512, %508, %cst_101 {dimension_numbers = #tpu.dot_dimension_numbers<[1], [0], [0], [1], [0, 0, 1, 1], [], []>} : vector<8x32xf32>, vector<32x96xf32>, vector<8x96xf32> -> vector<8x96xf32>
    %517 = vector.broadcast %509 : vector<1x96xf32> to vector<8x96xf32>
    %518 = arith.addf %516, %517 : vector<8x96xf32>
    %519 = vector.extract_strided_slice %514 {offsets = [0, 0], sizes = [8, 32], strides = [1, 1]} : vector<8x96xf32> to vector<8x32xf32>
    %520 = vector.extract_strided_slice %518 {offsets = [0, 0], sizes = [8, 32], strides = [1, 1]} : vector<8x96xf32> to vector<8x32xf32>
    %521 = arith.addf %519, %520 : vector<8x32xf32>
    %522 = arith.negf %521 : vector<8x32xf32>
    %523 = math.exp %522 : vector<8x32xf32>
    %cst_102 = arith.constant 1.000000e+00 : f32
    %524 = vector.broadcast %cst_102 : f32 to vector<8x32xf32>
    %525 = arith.addf %524, %523 : vector<8x32xf32>
    %526 = arith.divf %524, %525 : vector<8x32xf32>
    %527 = vector.extract_strided_slice %514 {offsets = [0, 32], sizes = [8, 32], strides = [1, 1]} : vector<8x96xf32> to vector<8x32xf32>
    %528 = vector.extract_strided_slice %518 {offsets = [0, 32], sizes = [8, 32], strides = [1, 1]} : vector<8x96xf32> to vector<8x32xf32>
    %529 = arith.addf %527, %528 : vector<8x32xf32>
    %530 = arith.negf %529 : vector<8x32xf32>
    %531 = math.exp %530 : vector<8x32xf32>
    %cst_103 = arith.constant 1.000000e+00 : f32
    %532 = vector.broadcast %cst_103 : f32 to vector<8x32xf32>
    %533 = arith.addf %532, %531 : vector<8x32xf32>
    %534 = arith.divf %532, %533 : vector<8x32xf32>
    %535 = vector.extract_strided_slice %514 {offsets = [0, 64], sizes = [8, 32], strides = [1, 1]} : vector<8x96xf32> to vector<8x32xf32>
    %536 = vector.extract_strided_slice %518 {offsets = [0, 64], sizes = [8, 32], strides = [1, 1]} : vector<8x96xf32> to vector<8x32xf32>
    %537 = arith.mulf %526, %536 : vector<8x32xf32>
    %538 = arith.addf %535, %537 : vector<8x32xf32>
    %539 = math.tanh %538 : vector<8x32xf32>
    %cst_104 = arith.constant 1.000000e+00 : f32
    %540 = vector.broadcast %cst_104 : f32 to vector<8x32xf32>
    %541 = arith.subf %540, %534 : vector<8x32xf32>
    %542 = arith.mulf %541, %539 : vector<8x32xf32>
    %543 = arith.mulf %534, %512 : vector<8x32xf32>
    %544 = arith.addf %542, %543 : vector<8x32xf32>
    %cst_105 = arith.constant dense<0.000000e+00> : vector<8x96xf32>
    %545 = tpu.matmul %513, %510, %cst_105 {dimension_numbers = #tpu.dot_dimension_numbers<[1], [0], [0], [1], [0, 0, 1, 1], [], []>} : vector<8x32xf32>, vector<32x96xf32>, vector<8x96xf32> -> vector<8x96xf32>
    %546 = vector.broadcast %511 : vector<1x96xf32> to vector<8x96xf32>
    %547 = arith.addf %545, %546 : vector<8x96xf32>
    %548 = vector.extract_strided_slice %515 {offsets = [0, 0], sizes = [8, 32], strides = [1, 1]} : vector<8x96xf32> to vector<8x32xf32>
    %549 = vector.extract_strided_slice %547 {offsets = [0, 0], sizes = [8, 32], strides = [1, 1]} : vector<8x96xf32> to vector<8x32xf32>
    %550 = arith.addf %548, %549 : vector<8x32xf32>
    %551 = arith.negf %550 : vector<8x32xf32>
    %552 = math.exp %551 : vector<8x32xf32>
    %cst_106 = arith.constant 1.000000e+00 : f32
    %553 = vector.broadcast %cst_106 : f32 to vector<8x32xf32>
    %554 = arith.addf %553, %552 : vector<8x32xf32>
    %555 = arith.divf %553, %554 : vector<8x32xf32>
    %556 = vector.extract_strided_slice %515 {offsets = [0, 32], sizes = [8, 32], strides = [1, 1]} : vector<8x96xf32> to vector<8x32xf32>
    %557 = vector.extract_strided_slice %547 {offsets = [0, 32], sizes = [8, 32], strides = [1, 1]} : vector<8x96xf32> to vector<8x32xf32>
    %558 = arith.addf %556, %557 : vector<8x32xf32>
    %559 = arith.negf %558 : vector<8x32xf32>
    %560 = math.exp %559 : vector<8x32xf32>
    %cst_107 = arith.constant 1.000000e+00 : f32
    %561 = vector.broadcast %cst_107 : f32 to vector<8x32xf32>
    %562 = arith.addf %561, %560 : vector<8x32xf32>
    %563 = arith.divf %561, %562 : vector<8x32xf32>
    %564 = vector.extract_strided_slice %515 {offsets = [0, 64], sizes = [8, 32], strides = [1, 1]} : vector<8x96xf32> to vector<8x32xf32>
    %565 = vector.extract_strided_slice %547 {offsets = [0, 64], sizes = [8, 32], strides = [1, 1]} : vector<8x96xf32> to vector<8x32xf32>
    %566 = arith.mulf %555, %565 : vector<8x32xf32>
    %567 = arith.addf %564, %566 : vector<8x32xf32>
    %568 = math.tanh %567 : vector<8x32xf32>
    %cst_108 = arith.constant 1.000000e+00 : f32
    %569 = vector.broadcast %cst_108 : f32 to vector<8x32xf32>
    %570 = arith.subf %569, %563 : vector<8x32xf32>
    %571 = arith.mulf %570, %568 : vector<8x32xf32>
    %572 = arith.mulf %563, %513 : vector<8x32xf32>
    %573 = arith.addf %571, %572 : vector<8x32xf32>
    %574 = vector.extract_strided_slice %507 {offsets = [8, 0], sizes = [8, 96], strides = [1, 1]} : vector<64x192xf32> to vector<8x96xf32>
    %cst_109 = arith.constant dense<0.000000e+00> : vector<8x96xf32>
    %575 = tpu.matmul %544, %508, %cst_109 {dimension_numbers = #tpu.dot_dimension_numbers<[1], [0], [0], [1], [0, 0, 1, 1], [], []>} : vector<8x32xf32>, vector<32x96xf32>, vector<8x96xf32> -> vector<8x96xf32>
    %576 = vector.broadcast %509 : vector<1x96xf32> to vector<8x96xf32>
    %577 = arith.addf %575, %576 : vector<8x96xf32>
    %578 = vector.extract_strided_slice %574 {offsets = [0, 0], sizes = [8, 32], strides = [1, 1]} : vector<8x96xf32> to vector<8x32xf32>
    %579 = vector.extract_strided_slice %577 {offsets = [0, 0], sizes = [8, 32], strides = [1, 1]} : vector<8x96xf32> to vector<8x32xf32>
    %580 = arith.addf %578, %579 : vector<8x32xf32>
    %581 = arith.negf %580 : vector<8x32xf32>
    %582 = math.exp %581 : vector<8x32xf32>
    %cst_110 = arith.constant 1.000000e+00 : f32
    %583 = vector.broadcast %cst_110 : f32 to vector<8x32xf32>
    %584 = arith.addf %583, %582 : vector<8x32xf32>
    %585 = arith.divf %583, %584 : vector<8x32xf32>
    %586 = vector.extract_strided_slice %574 {offsets = [0, 32], sizes = [8, 32], strides = [1, 1]} : vector<8x96xf32> to vector<8x32xf32>
    %587 = vector.extract_strided_slice %577 {offsets = [0, 32], sizes = [8, 32], strides = [1, 1]} : vector<8x96xf32> to vector<8x32xf32>
    %588 = arith.addf %586, %587 : vector<8x32xf32>
    %589 = arith.negf %588 : vector<8x32xf32>
    %590 = math.exp %589 : vector<8x32xf32>
    %cst_111 = arith.constant 1.000000e+00 : f32
    %591 = vector.broadcast %cst_111 : f32 to vector<8x32xf32>
    %592 = arith.addf %591, %590 : vector<8x32xf32>
    %593 = arith.divf %591, %592 : vector<8x32xf32>
    %594 = vector.extract_strided_slice %574 {offsets = [0, 64], sizes = [8, 32], strides = [1, 1]} : vector<8x96xf32> to vector<8x32xf32>
    %595 = vector.extract_strided_slice %577 {offsets = [0, 64], sizes = [8, 32], strides = [1, 1]} : vector<8x96xf32> to vector<8x32xf32>
    %596 = arith.mulf %585, %595 : vector<8x32xf32>
    %597 = arith.addf %594, %596 : vector<8x32xf32>
    %598 = math.tanh %597 : vector<8x32xf32>
    %cst_112 = arith.constant 1.000000e+00 : f32
    %599 = vector.broadcast %cst_112 : f32 to vector<8x32xf32>
    %600 = arith.subf %599, %593 : vector<8x32xf32>
    %601 = arith.mulf %600, %598 : vector<8x32xf32>
    %602 = arith.mulf %593, %544 : vector<8x32xf32>
    %603 = arith.addf %601, %602 : vector<8x32xf32>
    %604 = vector.extract_strided_slice %507 {offsets = [16, 0], sizes = [8, 96], strides = [1, 1]} : vector<64x192xf32> to vector<8x96xf32>
    %cst_113 = arith.constant dense<0.000000e+00> : vector<8x96xf32>
    %605 = tpu.matmul %603, %508, %cst_113 {dimension_numbers = #tpu.dot_dimension_numbers<[1], [0], [0], [1], [0, 0, 1, 1], [], []>} : vector<8x32xf32>, vector<32x96xf32>, vector<8x96xf32> -> vector<8x96xf32>
    %606 = vector.broadcast %509 : vector<1x96xf32> to vector<8x96xf32>
    %607 = arith.addf %605, %606 : vector<8x96xf32>
    %608 = vector.extract_strided_slice %604 {offsets = [0, 0], sizes = [8, 32], strides = [1, 1]} : vector<8x96xf32> to vector<8x32xf32>
    %609 = vector.extract_strided_slice %607 {offsets = [0, 0], sizes = [8, 32], strides = [1, 1]} : vector<8x96xf32> to vector<8x32xf32>
    %610 = arith.addf %608, %609 : vector<8x32xf32>
    %611 = arith.negf %610 : vector<8x32xf32>
    %612 = math.exp %611 : vector<8x32xf32>
    %cst_114 = arith.constant 1.000000e+00 : f32
    %613 = vector.broadcast %cst_114 : f32 to vector<8x32xf32>
    %614 = arith.addf %613, %612 : vector<8x32xf32>
    %615 = arith.divf %613, %614 : vector<8x32xf32>
    %616 = vector.extract_strided_slice %604 {offsets = [0, 32], sizes = [8, 32], strides = [1, 1]} : vector<8x96xf32> to vector<8x32xf32>
    %617 = vector.extract_strided_slice %607 {offsets = [0, 32], sizes = [8, 32], strides = [1, 1]} : vector<8x96xf32> to vector<8x32xf32>
    %618 = arith.addf %616, %617 : vector<8x32xf32>
    %619 = arith.negf %618 : vector<8x32xf32>
    %620 = math.exp %619 : vector<8x32xf32>
    %cst_115 = arith.constant 1.000000e+00 : f32
    %621 = vector.broadcast %cst_115 : f32 to vector<8x32xf32>
    %622 = arith.addf %621, %620 : vector<8x32xf32>
    %623 = arith.divf %621, %622 : vector<8x32xf32>
    %624 = vector.extract_strided_slice %604 {offsets = [0, 64], sizes = [8, 32], strides = [1, 1]} : vector<8x96xf32> to vector<8x32xf32>
    %625 = vector.extract_strided_slice %607 {offsets = [0, 64], sizes = [8, 32], strides = [1, 1]} : vector<8x96xf32> to vector<8x32xf32>
    %626 = arith.mulf %615, %625 : vector<8x32xf32>
    %627 = arith.addf %624, %626 : vector<8x32xf32>
    %628 = math.tanh %627 : vector<8x32xf32>
    %cst_116 = arith.constant 1.000000e+00 : f32
    %629 = vector.broadcast %cst_116 : f32 to vector<8x32xf32>
    %630 = arith.subf %629, %623 : vector<8x32xf32>
    %631 = arith.mulf %630, %628 : vector<8x32xf32>
    %632 = arith.mulf %623, %603 : vector<8x32xf32>
    %633 = arith.addf %631, %632 : vector<8x32xf32>
    %634 = vector.extract_strided_slice %507 {offsets = [24, 0], sizes = [8, 96], strides = [1, 1]} : vector<64x192xf32> to vector<8x96xf32>
    %cst_117 = arith.constant dense<0.000000e+00> : vector<8x96xf32>
    %635 = tpu.matmul %633, %508, %cst_117 {dimension_numbers = #tpu.dot_dimension_numbers<[1], [0], [0], [1], [0, 0, 1, 1], [], []>} : vector<8x32xf32>, vector<32x96xf32>, vector<8x96xf32> -> vector<8x96xf32>
    %636 = vector.broadcast %509 : vector<1x96xf32> to vector<8x96xf32>
    %637 = arith.addf %635, %636 : vector<8x96xf32>
    %638 = vector.extract_strided_slice %634 {offsets = [0, 0], sizes = [8, 32], strides = [1, 1]} : vector<8x96xf32> to vector<8x32xf32>
    %639 = vector.extract_strided_slice %637 {offsets = [0, 0], sizes = [8, 32], strides = [1, 1]} : vector<8x96xf32> to vector<8x32xf32>
    %640 = arith.addf %638, %639 : vector<8x32xf32>
    %641 = arith.negf %640 : vector<8x32xf32>
    %642 = math.exp %641 : vector<8x32xf32>
    %cst_118 = arith.constant 1.000000e+00 : f32
    %643 = vector.broadcast %cst_118 : f32 to vector<8x32xf32>
    %644 = arith.addf %643, %642 : vector<8x32xf32>
    %645 = arith.divf %643, %644 : vector<8x32xf32>
    %646 = vector.extract_strided_slice %634 {offsets = [0, 32], sizes = [8, 32], strides = [1, 1]} : vector<8x96xf32> to vector<8x32xf32>
    %647 = vector.extract_strided_slice %637 {offsets = [0, 32], sizes = [8, 32], strides = [1, 1]} : vector<8x96xf32> to vector<8x32xf32>
    %648 = arith.addf %646, %647 : vector<8x32xf32>
    %649 = arith.negf %648 : vector<8x32xf32>
    %650 = math.exp %649 : vector<8x32xf32>
    %cst_119 = arith.constant 1.000000e+00 : f32
    %651 = vector.broadcast %cst_119 : f32 to vector<8x32xf32>
    %652 = arith.addf %651, %650 : vector<8x32xf32>
    %653 = arith.divf %651, %652 : vector<8x32xf32>
    %654 = vector.extract_strided_slice %634 {offsets = [0, 64], sizes = [8, 32], strides = [1, 1]} : vector<8x96xf32> to vector<8x32xf32>
    %655 = vector.extract_strided_slice %637 {offsets = [0, 64], sizes = [8, 32], strides = [1, 1]} : vector<8x96xf32> to vector<8x32xf32>
    %656 = arith.mulf %645, %655 : vector<8x32xf32>
    %657 = arith.addf %654, %656 : vector<8x32xf32>
    %658 = math.tanh %657 : vector<8x32xf32>
    %cst_120 = arith.constant 1.000000e+00 : f32
    %659 = vector.broadcast %cst_120 : f32 to vector<8x32xf32>
    %660 = arith.subf %659, %653 : vector<8x32xf32>
    %661 = arith.mulf %660, %658 : vector<8x32xf32>
    %662 = arith.mulf %653, %633 : vector<8x32xf32>
    %663 = arith.addf %661, %662 : vector<8x32xf32>
    %664 = vector.extract_strided_slice %507 {offsets = [32, 0], sizes = [8, 96], strides = [1, 1]} : vector<64x192xf32> to vector<8x96xf32>
    %cst_121 = arith.constant dense<0.000000e+00> : vector<8x96xf32>
    %665 = tpu.matmul %663, %508, %cst_121 {dimension_numbers = #tpu.dot_dimension_numbers<[1], [0], [0], [1], [0, 0, 1, 1], [], []>} : vector<8x32xf32>, vector<32x96xf32>, vector<8x96xf32> -> vector<8x96xf32>
    %666 = vector.broadcast %509 : vector<1x96xf32> to vector<8x96xf32>
    %667 = arith.addf %665, %666 : vector<8x96xf32>
    %668 = vector.extract_strided_slice %664 {offsets = [0, 0], sizes = [8, 32], strides = [1, 1]} : vector<8x96xf32> to vector<8x32xf32>
    %669 = vector.extract_strided_slice %667 {offsets = [0, 0], sizes = [8, 32], strides = [1, 1]} : vector<8x96xf32> to vector<8x32xf32>
    %670 = arith.addf %668, %669 : vector<8x32xf32>
    %671 = arith.negf %670 : vector<8x32xf32>
    %672 = math.exp %671 : vector<8x32xf32>
    %cst_122 = arith.constant 1.000000e+00 : f32
    %673 = vector.broadcast %cst_122 : f32 to vector<8x32xf32>
    %674 = arith.addf %673, %672 : vector<8x32xf32>
    %675 = arith.divf %673, %674 : vector<8x32xf32>
    %676 = vector.extract_strided_slice %664 {offsets = [0, 32], sizes = [8, 32], strides = [1, 1]} : vector<8x96xf32> to vector<8x32xf32>
    %677 = vector.extract_strided_slice %667 {offsets = [0, 32], sizes = [8, 32], strides = [1, 1]} : vector<8x96xf32> to vector<8x32xf32>
    %678 = arith.addf %676, %677 : vector<8x32xf32>
    %679 = arith.negf %678 : vector<8x32xf32>
    %680 = math.exp %679 : vector<8x32xf32>
    %cst_123 = arith.constant 1.000000e+00 : f32
    %681 = vector.broadcast %cst_123 : f32 to vector<8x32xf32>
    %682 = arith.addf %681, %680 : vector<8x32xf32>
    %683 = arith.divf %681, %682 : vector<8x32xf32>
    %684 = vector.extract_strided_slice %664 {offsets = [0, 64], sizes = [8, 32], strides = [1, 1]} : vector<8x96xf32> to vector<8x32xf32>
    %685 = vector.extract_strided_slice %667 {offsets = [0, 64], sizes = [8, 32], strides = [1, 1]} : vector<8x96xf32> to vector<8x32xf32>
    %686 = arith.mulf %675, %685 : vector<8x32xf32>
    %687 = arith.addf %684, %686 : vector<8x32xf32>
    %688 = math.tanh %687 : vector<8x32xf32>
    %cst_124 = arith.constant 1.000000e+00 : f32
    %689 = vector.broadcast %cst_124 : f32 to vector<8x32xf32>
    %690 = arith.subf %689, %683 : vector<8x32xf32>
    %691 = arith.mulf %690, %688 : vector<8x32xf32>
    %692 = arith.mulf %683, %663 : vector<8x32xf32>
    %693 = arith.addf %691, %692 : vector<8x32xf32>
    %694 = vector.extract_strided_slice %507 {offsets = [40, 0], sizes = [8, 96], strides = [1, 1]} : vector<64x192xf32> to vector<8x96xf32>
    %cst_125 = arith.constant dense<0.000000e+00> : vector<8x96xf32>
    %695 = tpu.matmul %693, %508, %cst_125 {dimension_numbers = #tpu.dot_dimension_numbers<[1], [0], [0], [1], [0, 0, 1, 1], [], []>} : vector<8x32xf32>, vector<32x96xf32>, vector<8x96xf32> -> vector<8x96xf32>
    %696 = vector.broadcast %509 : vector<1x96xf32> to vector<8x96xf32>
    %697 = arith.addf %695, %696 : vector<8x96xf32>
    %698 = vector.extract_strided_slice %694 {offsets = [0, 0], sizes = [8, 32], strides = [1, 1]} : vector<8x96xf32> to vector<8x32xf32>
    %699 = vector.extract_strided_slice %697 {offsets = [0, 0], sizes = [8, 32], strides = [1, 1]} : vector<8x96xf32> to vector<8x32xf32>
    %700 = arith.addf %698, %699 : vector<8x32xf32>
    %701 = arith.negf %700 : vector<8x32xf32>
    %702 = math.exp %701 : vector<8x32xf32>
    %cst_126 = arith.constant 1.000000e+00 : f32
    %703 = vector.broadcast %cst_126 : f32 to vector<8x32xf32>
    %704 = arith.addf %703, %702 : vector<8x32xf32>
    %705 = arith.divf %703, %704 : vector<8x32xf32>
    %706 = vector.extract_strided_slice %694 {offsets = [0, 32], sizes = [8, 32], strides = [1, 1]} : vector<8x96xf32> to vector<8x32xf32>
    %707 = vector.extract_strided_slice %697 {offsets = [0, 32], sizes = [8, 32], strides = [1, 1]} : vector<8x96xf32> to vector<8x32xf32>
    %708 = arith.addf %706, %707 : vector<8x32xf32>
    %709 = arith.negf %708 : vector<8x32xf32>
    %710 = math.exp %709 : vector<8x32xf32>
    %cst_127 = arith.constant 1.000000e+00 : f32
    %711 = vector.broadcast %cst_127 : f32 to vector<8x32xf32>
    %712 = arith.addf %711, %710 : vector<8x32xf32>
    %713 = arith.divf %711, %712 : vector<8x32xf32>
    %714 = vector.extract_strided_slice %694 {offsets = [0, 64], sizes = [8, 32], strides = [1, 1]} : vector<8x96xf32> to vector<8x32xf32>
    %715 = vector.extract_strided_slice %697 {offsets = [0, 64], sizes = [8, 32], strides = [1, 1]} : vector<8x96xf32> to vector<8x32xf32>
    %716 = arith.mulf %705, %715 : vector<8x32xf32>
    %717 = arith.addf %714, %716 : vector<8x32xf32>
    %718 = math.tanh %717 : vector<8x32xf32>
    %cst_128 = arith.constant 1.000000e+00 : f32
    %719 = vector.broadcast %cst_128 : f32 to vector<8x32xf32>
    %720 = arith.subf %719, %713 : vector<8x32xf32>
    %721 = arith.mulf %720, %718 : vector<8x32xf32>
    %722 = arith.mulf %713, %693 : vector<8x32xf32>
    %723 = arith.addf %721, %722 : vector<8x32xf32>
    %724 = vector.extract_strided_slice %507 {offsets = [48, 0], sizes = [8, 96], strides = [1, 1]} : vector<64x192xf32> to vector<8x96xf32>
    %cst_129 = arith.constant dense<0.000000e+00> : vector<8x96xf32>
    %725 = tpu.matmul %723, %508, %cst_129 {dimension_numbers = #tpu.dot_dimension_numbers<[1], [0], [0], [1], [0, 0, 1, 1], [], []>} : vector<8x32xf32>, vector<32x96xf32>, vector<8x96xf32> -> vector<8x96xf32>
    %726 = vector.broadcast %509 : vector<1x96xf32> to vector<8x96xf32>
    %727 = arith.addf %725, %726 : vector<8x96xf32>
    %728 = vector.extract_strided_slice %724 {offsets = [0, 0], sizes = [8, 32], strides = [1, 1]} : vector<8x96xf32> to vector<8x32xf32>
    %729 = vector.extract_strided_slice %727 {offsets = [0, 0], sizes = [8, 32], strides = [1, 1]} : vector<8x96xf32> to vector<8x32xf32>
    %730 = arith.addf %728, %729 : vector<8x32xf32>
    %731 = arith.negf %730 : vector<8x32xf32>
    %732 = math.exp %731 : vector<8x32xf32>
    %cst_130 = arith.constant 1.000000e+00 : f32
    %733 = vector.broadcast %cst_130 : f32 to vector<8x32xf32>
    %734 = arith.addf %733, %732 : vector<8x32xf32>
    %735 = arith.divf %733, %734 : vector<8x32xf32>
    %736 = vector.extract_strided_slice %724 {offsets = [0, 32], sizes = [8, 32], strides = [1, 1]} : vector<8x96xf32> to vector<8x32xf32>
    %737 = vector.extract_strided_slice %727 {offsets = [0, 32], sizes = [8, 32], strides = [1, 1]} : vector<8x96xf32> to vector<8x32xf32>
    %738 = arith.addf %736, %737 : vector<8x32xf32>
    %739 = arith.negf %738 : vector<8x32xf32>
    %740 = math.exp %739 : vector<8x32xf32>
    %cst_131 = arith.constant 1.000000e+00 : f32
    %741 = vector.broadcast %cst_131 : f32 to vector<8x32xf32>
    %742 = arith.addf %741, %740 : vector<8x32xf32>
    %743 = arith.divf %741, %742 : vector<8x32xf32>
    %744 = vector.extract_strided_slice %724 {offsets = [0, 64], sizes = [8, 32], strides = [1, 1]} : vector<8x96xf32> to vector<8x32xf32>
    %745 = vector.extract_strided_slice %727 {offsets = [0, 64], sizes = [8, 32], strides = [1, 1]} : vector<8x96xf32> to vector<8x32xf32>
    %746 = arith.mulf %735, %745 : vector<8x32xf32>
    %747 = arith.addf %744, %746 : vector<8x32xf32>
    %748 = math.tanh %747 : vector<8x32xf32>
    %cst_132 = arith.constant 1.000000e+00 : f32
    %749 = vector.broadcast %cst_132 : f32 to vector<8x32xf32>
    %750 = arith.subf %749, %743 : vector<8x32xf32>
    %751 = arith.mulf %750, %748 : vector<8x32xf32>
    %752 = arith.mulf %743, %723 : vector<8x32xf32>
    %753 = arith.addf %751, %752 : vector<8x32xf32>
    %754 = vector.extract_strided_slice %507 {offsets = [56, 0], sizes = [8, 96], strides = [1, 1]} : vector<64x192xf32> to vector<8x96xf32>
    %cst_133 = arith.constant dense<0.000000e+00> : vector<8x96xf32>
    %755 = tpu.matmul %753, %508, %cst_133 {dimension_numbers = #tpu.dot_dimension_numbers<[1], [0], [0], [1], [0, 0, 1, 1], [], []>} : vector<8x32xf32>, vector<32x96xf32>, vector<8x96xf32> -> vector<8x96xf32>
    %756 = vector.broadcast %509 : vector<1x96xf32> to vector<8x96xf32>
    %757 = arith.addf %755, %756 : vector<8x96xf32>
    %758 = vector.extract_strided_slice %754 {offsets = [0, 0], sizes = [8, 32], strides = [1, 1]} : vector<8x96xf32> to vector<8x32xf32>
    %759 = vector.extract_strided_slice %757 {offsets = [0, 0], sizes = [8, 32], strides = [1, 1]} : vector<8x96xf32> to vector<8x32xf32>
    %760 = arith.addf %758, %759 : vector<8x32xf32>
    %761 = arith.negf %760 : vector<8x32xf32>
    %762 = math.exp %761 : vector<8x32xf32>
    %cst_134 = arith.constant 1.000000e+00 : f32
    %763 = vector.broadcast %cst_134 : f32 to vector<8x32xf32>
    %764 = arith.addf %763, %762 : vector<8x32xf32>
    %765 = arith.divf %763, %764 : vector<8x32xf32>
    %766 = vector.extract_strided_slice %754 {offsets = [0, 32], sizes = [8, 32], strides = [1, 1]} : vector<8x96xf32> to vector<8x32xf32>
    %767 = vector.extract_strided_slice %757 {offsets = [0, 32], sizes = [8, 32], strides = [1, 1]} : vector<8x96xf32> to vector<8x32xf32>
    %768 = arith.addf %766, %767 : vector<8x32xf32>
    %769 = arith.negf %768 : vector<8x32xf32>
    %770 = math.exp %769 : vector<8x32xf32>
    %cst_135 = arith.constant 1.000000e+00 : f32
    %771 = vector.broadcast %cst_135 : f32 to vector<8x32xf32>
    %772 = arith.addf %771, %770 : vector<8x32xf32>
    %773 = arith.divf %771, %772 : vector<8x32xf32>
    %774 = vector.extract_strided_slice %754 {offsets = [0, 64], sizes = [8, 32], strides = [1, 1]} : vector<8x96xf32> to vector<8x32xf32>
    %775 = vector.extract_strided_slice %757 {offsets = [0, 64], sizes = [8, 32], strides = [1, 1]} : vector<8x96xf32> to vector<8x32xf32>
    %776 = arith.mulf %765, %775 : vector<8x32xf32>
    %777 = arith.addf %774, %776 : vector<8x32xf32>
    %778 = math.tanh %777 : vector<8x32xf32>
    %cst_136 = arith.constant 1.000000e+00 : f32
    %779 = vector.broadcast %cst_136 : f32 to vector<8x32xf32>
    %780 = arith.subf %779, %773 : vector<8x32xf32>
    %781 = arith.mulf %780, %778 : vector<8x32xf32>
    %782 = arith.mulf %773, %753 : vector<8x32xf32>
    %783 = arith.addf %781, %782 : vector<8x32xf32>
    %c0_137 = arith.constant 0 : index
    %c0_138 = arith.constant 0 : index
    %784 = vector.load %arg15[%c0_137, %c0_138] : memref<64x2xf32, #tpu.memory_space<vmem>>, vector<32x2xf32>
    %cst_139 = arith.constant dense<0.000000e+00> : vector<8x2xf32>
    %785 = tpu.matmul %783, %784, %cst_139 {dimension_numbers = #tpu.dot_dimension_numbers<[1], [0], [0], [1], [0, 0, 1, 1], [], []>} : vector<8x32xf32>, vector<32x2xf32>, vector<8x2xf32> -> vector<8x2xf32>
    %c32_140 = arith.constant 32 : index
    %c0_141 = arith.constant 0 : index
    %786 = vector.load %arg15[%c32_140, %c0_141] : memref<64x2xf32, #tpu.memory_space<vmem>>, vector<32x2xf32>
    %cst_142 = arith.constant dense<0.000000e+00> : vector<8x2xf32>
    %787 = tpu.matmul %573, %786, %cst_142 {dimension_numbers = #tpu.dot_dimension_numbers<[1], [0], [0], [1], [0, 0, 1, 1], [], []>} : vector<8x32xf32>, vector<32x2xf32>, vector<8x2xf32> -> vector<8x2xf32>
    %788 = arith.addf %785, %787 : vector<8x2xf32>
    %c0_143 = arith.constant 0 : index
    %c0_144 = arith.constant 0 : index
    %789 = vector.load %arg16[%c0_143, %c0_144] : memref<1x2xf32, #tpu.memory_space<vmem>>, vector<1x2xf32>
    %790 = vector.broadcast %789 : vector<1x2xf32> to vector<8x2xf32>
    %791 = arith.addf %788, %790 : vector<8x2xf32>
    %cst_145 = arith.constant dense<0xFF800000> : vector<8xf32>
    %792 = vector.multi_reduction <maximumf>, %791, %cst_145 [1] : vector<8x2xf32> to vector<8xf32>
    %793 = vector.shape_cast %792 : vector<8xf32> to vector<8x1xf32>
    %794 = vector.broadcast %793 : vector<8x1xf32> to vector<8x2xf32>
    %795 = arith.subf %791, %794 : vector<8x2xf32>
    %796 = math.exp %795 : vector<8x2xf32>
    %cst_146 = arith.constant dense<0.000000e+00> : vector<8xf32>
    %797 = vector.multi_reduction <add>, %796, %cst_146 [1] : vector<8x2xf32> to vector<8xf32>
    %798 = vector.shape_cast %797 : vector<8xf32> to vector<8x1xf32>
    %799 = tpu.reciprocal %798 {approx = true} : vector<8x1xf32> -> vector<8x1xf32>
    %800 = vector.broadcast %799 : vector<8x1xf32> to vector<8x2xf32>
    %801 = arith.mulf %796, %800 : vector<8x2xf32>
    %c0_147 = arith.constant 0 : index
    %c0_148 = arith.constant 0 : index
    %802 = vector.load %arg17[%c0_147, %c0_148] : memref<8x2xf32, #tpu.memory_space<vmem>>, vector<8x2xf32>
    tpu.vector_store %arg17[%c0_147, %c0_148], %801 {strides = array<i32>} : memref<8x2xf32, #tpu.memory_space<vmem>>, vector<8x2xf32>,
    return
  }
}

</mosaic_0001>

<llo_original>
// kernel: fin_rnn_forward.1
$region0: #{fin_rnn_forward.1}
  #allocation0 [shape = 'u32[]', space=smem, size = 0x4, offset = 0x4, fixed_abs, tag = 'smem constant byte address 0x4 - core index']
  #allocation1 [shape = 'u32[144,128]{1,0:T(1,128)}', space=vmem, size = 0x12000, scoped, tag = 'internal scratch']
  %s0 = inlined_call_operand.vmem [shape: f32[64,32], index: 0, kind: input, shape index: {}]
  %s1 = inlined_call_operand.hbm [shape: f32[32,32], index: 1, kind: input, shape index: {}]
  %s2 = inlined_call_operand.hbm [shape: f32[1,32], index: 2, kind: input, shape index: {}]
  %s3 = inlined_call_operand.hbm [shape: f32[32,192], index: 3, kind: input, shape index: {}]
  %s4 = inlined_call_operand.hbm [shape: f32[1,192], index: 4, kind: input, shape index: {}]
  %s5 = inlined_call_operand.hbm [shape: f32[32,96], index: 5, kind: input, shape index: {}]
  %s6 = inlined_call_operand.hbm [shape: f32[1,96], index: 6, kind: input, shape index: {}]
  %s7 = inlined_call_operand.hbm [shape: f32[32,96], index: 7, kind: input, shape index: {}]
  %s8 = inlined_call_operand.hbm [shape: f32[1,96], index: 8, kind: input, shape index: {}]
  %s9 = inlined_call_operand.vmem [shape: f32[64,192], index: 9, kind: input, shape index: {}]
  %s10 = inlined_call_operand.hbm [shape: f32[1,192], index: 10, kind: input, shape index: {}]
  %s11 = inlined_call_operand.hbm [shape: f32[32,96], index: 11, kind: input, shape index: {}]
  %s12 = inlined_call_operand.hbm [shape: f32[1,96], index: 12, kind: input, shape index: {}]
  %s13 = inlined_call_operand.vmem [shape: f32[32,96], index: 13, kind: input, shape index: {}]
  %s14 = inlined_call_operand.vmem [shape: f32[1,96], index: 14, kind: input, shape index: {}]
  %s15 = inlined_call_operand.hbm [shape: f32[64,2], index: 15, kind: input, shape index: {}]
  %s16 = inlined_call_operand.vmem [shape: f32[1,2], index: 16, kind: input, shape index: {}]
  %s17 = inlined_call_operand.vmem [shape: f32[8,2], index: 17, kind: output, shape index: {}]
  %s18 = sld [smem:[#allocation0]]
  $region126: #{fin_rnn_forward.1} parent=0
    _
  %s20 = ssub.s32 1, %s18
  %s21 = scalar_select 0, %s20, %s18
  $region1: #{fin_rnn_forward.1} parent=0
    #allocation2 [shape = 'u8[16384]{0}', space=vmem, size = 0x4000, scoped, tag = 'input window, operand 1, single buffered']
    #allocation3 [shape = 's32[1]{0}', space=sflag, size = 0x4, scoped, tag = 'scoped memory for fin_rnn_forward.1']
    #allocation4 [shape = 'u8[512]{0}', space=vmem, size = 0x400, scoped, tag = 'input window, operand 2, single buffered']
    #allocation5 [shape = 's32[1]{0}', space=sflag, size = 0x4, scoped, tag = 'scoped memory for fin_rnn_forward.1']
    #allocation6 [shape = 'u8[32768]{0}', space=vmem, size = 0x8000, scoped, tag = 'input window, operand 3, single buffered']
    #allocation7 [shape = 'u8[1024]{0}', space=vmem, size = 0x400, scoped, tag = 'input window, operand 4, single buffered']
    #allocation8 [shape = 's32[1]{0}', space=sflag, size = 0x4, scoped, tag = 'scoped memory for fin_rnn_forward.1']
    #allocation9 [shape = 'u8[16384]{0}', space=vmem, size = 0x4000, scoped, tag = 'input window, operand 5, single buffered']
    #allocation10 [shape = 'u8[512]{0}', space=vmem, size = 0x400, scoped, tag = 'input window, operand 6, single buffered']
    #allocation11 [shape = 's32[1]{0}', space=sflag, size = 0x4, scoped, tag = 'scoped memory for fin_rnn_forward.1']
    #allocation12 [shape = 'u8[16384]{0}', space=vmem, size = 0x4000, scoped, tag = 'input window, operand 7, single buffered']
    #allocation13 [shape = 'u8[512]{0}', space=vmem, size = 0x400, scoped, tag = 'input window, operand 8, single buffered']
    #allocation14 [shape = 's32[1]{0}', space=sflag, size = 0x4, scoped, tag = 'scoped memory for fin_rnn_forward.1']
    #allocation15 [shape = 'u8[1024]{0}', space=vmem, size = 0x400, scoped, tag = 'input window, operand 10, single buffered']
    #allocation16 [shape = 'u8[16384]{0}', space=vmem, size = 0x4000, scoped, tag = 'input window, operand 11, single buffered']
    #allocation17 [shape = 's32[1]{0}', space=sflag, size = 0x4, scoped, tag = 'scoped memory for fin_rnn_forward.1']
    #allocation18 [shape = 'u8[512]{0}', space=vmem, size = 0x400, scoped, tag = 'input window, operand 12, single buffered']
    #allocation19 [shape = 'u8[32768]{0}', space=vmem, size = 0x8000, scoped, tag = 'input window, operand 15, single buffered']
    #allocation20 [shape = 's32[1]{0}', space=sflag, size = 0x4, scoped, tag = 'scoped memory for fin_rnn_forward.1']
    %22 = vsyncpa [#allocation3], 0
    %23 = vsyncpa [#allocation5], 0
    %24 = vsyncpa [#allocation8], 0
    %25 = vsyncpa [#allocation11], 0
    %26 = vsyncpa [#allocation14], 0
    %27 = vsyncpa [#allocation17], 0
    %28 = vsyncpa [#allocation20], 0
    // Predicated region
    $region2: #{fin_rnn_forward.1} parent=1 // pred_check
      _
    $region3: #{fin_rnn_forward.1} parent=1 // pred_check_branch
      %30 = sbr.rel (0) target = $region5
    $region4: #{fin_rnn_forward.1} parent=1 // pred_region
      _
    $region5: #{fin_rnn_forward.1} parent=1 // pred_fallthru
      _
    // Predicated region
    $region6: #{fin_rnn_forward.1} parent=1 // pred_check
      _
    $region7: #{fin_rnn_forward.1} parent=1 // pred_check_branch
      %32 = sbr.rel (0) target = $region9
    $region8: #{fin_rnn_forward.1} parent=1 // pred_region
      %s34 = ssub.s32 512, 512
      %35 = vsyncadd [#allocation3], %s34
      %s36 = sshll.u32 [#allocation2], 4
      %s37 = int_to_ptr.vmem [resolvable:$true] %s36
      %42 = dma.hbm_to_vmem [thread:$0]  %s1, 512, %s37, [#allocation3], 128, 128, 8
    $region9: #{fin_rnn_forward.1} parent=1 // pred_fallthru
      _
    // Predicated region
    $region10: #{fin_rnn_forward.1} parent=1 // pred_check
      _
    $region11: #{fin_rnn_forward.1} parent=1 // pred_check_branch
      %44 = sbr.rel (0) target = $region13
    $region12: #{fin_rnn_forward.1} parent=1 // pred_region
      %s46 = ssub.s32 16, 16
      %47 = vsyncadd [#allocation5], %s46
      %s49 = sshll.u32 [#allocation4], 4
      %s50 = int_to_ptr.vmem [resolvable:$true] %s49
      %52 = dma.hbm_to_vmem [thread:$0]  %s2, 16, %s50, [#allocation5]
    $region13: #{fin_rnn_forward.1} parent=1 // pred_fallthru
      _
    // Predicated region
    $region14: #{fin_rnn_forward.1} parent=1 // pred_check
      _
    $region15: #{fin_rnn_forward.1} parent=1 // pred_check_branch
      %54 = sbr.rel (0) target = $region17
    $region16: #{fin_rnn_forward.1} parent=1 // pred_region
      %s56 = ssub.s32 1024, 1024
      %57 = vsyncadd [#allocation5], %s56
      %s58 = sshll.u32 [#allocation6], 4
      %s59 = int_to_ptr.vmem [resolvable:$true] %s58
      %64 = dma.hbm_to_vmem [thread:$0]  %s3, 1024, %s59, [#allocation5], 256, 256, 16
    $region17: #{fin_rnn_forward.1} parent=1 // pred_fallthru
      _
    // Predicated region
    $region18: #{fin_rnn_forward.1} parent=1 // pred_check
      _
    $region19: #{fin_rnn_forward.1} parent=1 // pred_check_branch
      %66 = sbr.rel (0) target = $region21
    $region20: #{fin_rnn_forward.1} parent=1 // pred_region
      %s68 = ssub.s32 32, 32
      %69 = vsyncadd [#allocation8], %s68
      %s71 = sshll.u32 [#allocation7], 4
      %s72 = int_to_ptr.vmem [resolvable:$true] %s71
      %74 = dma.hbm_to_vmem [thread:$0]  %s4, 32, %s72, [#allocation8]
    $region21: #{fin_rnn_forward.1} parent=1 // pred_fallthru
      _
    // Predicated region
    $region22: #{fin_rnn_forward.1} parent=1 // pred_check
      _
    $region23: #{fin_rnn_forward.1} parent=1 // pred_check_branch
      %76 = sbr.rel (0) target = $region25
    $region24: #{fin_rnn_forward.1} parent=1 // pred_region
      %s78 = ssub.s32 512, 512
      %79 = vsyncadd [#allocation8], %s78
      %s80 = sshll.u32 [#allocation9], 4
      %s81 = int_to_ptr.vmem [resolvable:$true] %s80
      %86 = dma.hbm_to_vmem [thread:$0]  %s5, 512, %s81, [#allocation8], 128, 128, 8
    $region25: #{fin_rnn_forward.1} parent=1 // pred_fallthru
      _
    // Predicated region
    $region26: #{fin_rnn_forward.1} parent=1 // pred_check
      _
    $region27: #{fin_rnn_forward.1} parent=1 // pred_check_branch
      %88 = sbr.rel (0) target = $region29
    $region28: #{fin_rnn_forward.1} parent=1 // pred_region
      %s90 = ssub.s32 16, 16
      %91 = vsyncadd [#allocation11], %s90
      %s93 = sshll.u32 [#allocation10], 4
      %s94 = int_to_ptr.vmem [resolvable:$true] %s93
      %96 = dma.hbm_to_vmem [thread:$0]  %s6, 16, %s94, [#allocation11]
    $region29: #{fin_rnn_forward.1} parent=1 // pred_fallthru
      _
    // Predicated region
    $region30: #{fin_rnn_forward.1} parent=1 // pred_check
      _
    $region31: #{fin_rnn_forward.1} parent=1 // pred_check_branch
      %98 = sbr.rel (0) target = $region33
    $region32: #{fin_rnn_forward.1} parent=1 // pred_region
      %s100 = ssub.s32 512, 512
      %101 = vsyncadd [#allocation11], %s100
      %s102 = sshll.u32 [#allocation12], 4
      %s103 = int_to_ptr.vmem [resolvable:$true] %s102
      %108 = dma.hbm_to_vmem [thread:$0]  %s7, 512, %s103, [#allocation11], 128, 128, 8
    $region33: #{fin_rnn_forward.1} parent=1 // pred_fallthru
      _
    // Predicated region
    $region34: #{fin_rnn_forward.1} parent=1 // pred_check
      _
    $region35: #{fin_rnn_forward.1} parent=1 // pred_check_branch
      %110 = sbr.rel (0) target = $region37
    $region36: #{fin_rnn_forward.1} parent=1 // pred_region
      %s112 = ssub.s32 16, 16
      %113 = vsyncadd [#allocation14], %s112
      %s115 = sshll.u32 [#allocation13], 4
      %s116 = int_to_ptr.vmem [resolvable:$true] %s115
      %118 = dma.hbm_to_vmem [thread:$0]  %s8, 16, %s116, [#allocation14]
    $region37: #{fin_rnn_forward.1} parent=1 // pred_fallthru
      _
    // Predicated region
    $region38: #{fin_rnn_forward.1} parent=1 // pred_check
      _
    $region39: #{fin_rnn_forward.1} parent=1 // pred_check_branch
      %120 = sbr.rel (0) target = $region41
    $region40: #{fin_rnn_forward.1} parent=1 // pred_region
      _
    $region41: #{fin_rnn_forward.1} parent=1 // pred_fallthru
      _
    // Predicated region
    $region42: #{fin_rnn_forward.1} parent=1 // pred_check
      _
    $region43: #{fin_rnn_forward.1} parent=1 // pred_check_branch
      %122 = sbr.rel (0) target = $region45
    $region44: #{fin_rnn_forward.1} parent=1 // pred_region
      %s124 = ssub.s32 32, 32
      %125 = vsyncadd [#allocation14], %s124
      %s127 = sshll.u32 [#allocation15], 4
      %s128 = int_to_ptr.vmem [resolvable:$true] %s127
      %130 = dma.hbm_to_vmem [thread:$0]  %s10, 32, %s128, [#allocation14]
    $region45: #{fin_rnn_forward.1} parent=1 // pred_fallthru
      _
    // Predicated region
    $region46: #{fin_rnn_forward.1} parent=1 // pred_check
      _
    $region47: #{fin_rnn_forward.1} parent=1 // pred_check_branch
      %132 = sbr.rel (0) target = $region49
    $region48: #{fin_rnn_forward.1} parent=1 // pred_region
      %s134 = ssub.s32 512, 512
      %135 = vsyncadd [#allocation17], %s134
      %s136 = sshll.u32 [#allocation16], 4
      %s137 = int_to_ptr.vmem [resolvable:$true] %s136
      %142 = dma.hbm_to_vmem [thread:$0]  %s11, 512, %s137, [#allocation17], 128, 128, 8
    $region49: #{fin_rnn_forward.1} parent=1 // pred_fallthru
      _
    // Predicated region
    $region50: #{fin_rnn_forward.1} parent=1 // pred_check
      _
    $region51: #{fin_rnn_forward.1} parent=1 // pred_check_branch
      %144 = sbr.rel (0) target = $region53
    $region52: #{fin_rnn_forward.1} parent=1 // pred_region
      %s146 = ssub.s32 16, 16
      %147 = vsyncadd [#allocation17], %s146
      %s149 = sshll.u32 [#allocation18], 4
      %s150 = int_to_ptr.vmem [resolvable:$true] %s149
      %152 = dma.hbm_to_vmem [thread:$0]  %s12, 16, %s150, [#allocation17]
    $region53: #{fin_rnn_forward.1} parent=1 // pred_fallthru
      _
    // Predicated region
    $region54: #{fin_rnn_forward.1} parent=1 // pred_check
      _
    $region55: #{fin_rnn_forward.1} parent=1 // pred_check_branch
      %154 = sbr.rel (0) target = $region57
    $region56: #{fin_rnn_forward.1} parent=1 // pred_region
      _
    $region57: #{fin_rnn_forward.1} parent=1 // pred_fallthru
      _
    // Predicated region
    $region58: #{fin_rnn_forward.1} parent=1 // pred_check
      _
    $region59: #{fin_rnn_forward.1} parent=1 // pred_check_branch
      %156 = sbr.rel (0) target = $region61
    $region60: #{fin_rnn_forward.1} parent=1 // pred_region
      _
    $region61: #{fin_rnn_forward.1} parent=1 // pred_fallthru
      _
    // Predicated region
    $region62: #{fin_rnn_forward.1} parent=1 // pred_check
      _
    $region63: #{fin_rnn_forward.1} parent=1 // pred_check_branch
      %158 = sbr.rel (0) target = $region65
    $region64: #{fin_rnn_forward.1} parent=1 // pred_region
      %s160 = ssub.s32 1024, 1024
      %161 = vsyncadd [#allocation20], %s160
      %s162 = sshll.u32 [#allocation19], 4
      %s163 = int_to_ptr.vmem [resolvable:$true] %s162
      %168 = dma.hbm_to_vmem [thread:$0]  %s15, 1024, %s163, [#allocation20], 128, 128, 8
    $region65: #{fin_rnn_forward.1} parent=1 // pred_fallthru
      _
    // Predicated region
    $region66: #{fin_rnn_forward.1} parent=1 // pred_check
      _
    $region67: #{fin_rnn_forward.1} parent=1 // pred_check_branch
      %170 = sbr.rel (0) target = $region69
    $region68: #{fin_rnn_forward.1} parent=1 // pred_region
      _
    $region69: #{fin_rnn_forward.1} parent=1 // pred_fallthru
      _
    // Predicated region
    $region70: #{fin_rnn_forward.1} parent=1 // pred_check
      _
    $region71: #{fin_rnn_forward.1} parent=1 // pred_check_branch
      %172 = sbr.rel (0) target = $region73
    $region72: #{fin_rnn_forward.1} parent=1 // pred_region
      %173 = dma.done [#allocation3], 512
    $region73: #{fin_rnn_forward.1} parent=1 // pred_fallthru
      _
    // Predicated region
    $region74: #{fin_rnn_forward.1} parent=1 // pred_check
      _
    $region75: #{fin_rnn_forward.1} parent=1 // pred_check_branch
      %175 = sbr.rel (0) target = $region77
    $region76: #{fin_rnn_forward.1} parent=1 // pred_region
      %176 = dma.done [#allocation5], 16
    $region77: #{fin_rnn_forward.1} parent=1 // pred_fallthru
      _
    // Predicated region
    $region78: #{fin_rnn_forward.1} parent=1 // pred_check
      _
    $region79: #{fin_rnn_forward.1} parent=1 // pred_check_branch
      %178 = sbr.rel (0) target = $region81
    $region80: #{fin_rnn_forward.1} parent=1 // pred_region
      %179 = dma.done [#allocation5], 1024
    $region81: #{fin_rnn_forward.1} parent=1 // pred_fallthru
      _
    // Predicated region
    $region82: #{fin_rnn_forward.1} parent=1 // pred_check
      _
    $region83: #{fin_rnn_forward.1} parent=1 // pred_check_branch
      %181 = sbr.rel (0) target = $region85
    $region84: #{fin_rnn_forward.1} parent=1 // pred_region
      %182 = dma.done [#allocation8], 32
    $region85: #{fin_rnn_forward.1} parent=1 // pred_fallthru
      _
    // Predicated region
    $region86: #{fin_rnn_forward.1} parent=1 // pred_check
      _
    $region87: #{fin_rnn_forward.1} parent=1 // pred_check_branch
      %184 = sbr.rel (0) target = $region89
    $region88: #{fin_rnn_forward.1} parent=1 // pred_region
      %185 = dma.done [#allocation8], 512
    $region89: #{fin_rnn_forward.1} parent=1 // pred_fallthru
      _
    // Predicated region
    $region90: #{fin_rnn_forward.1} parent=1 // pred_check
      _
    $region91: #{fin_rnn_forward.1} parent=1 // pred_check_branch
      %187 = sbr.rel (0) target = $region93
    $region92: #{fin_rnn_forward.1} parent=1 // pred_region
      %188 = dma.done [#allocation11], 16
    $region93: #{fin_rnn_forward.1} parent=1 // pred_fallthru
      _
    // Predicated region
    $region94: #{fin_rnn_forward.1} parent=1 // pred_check
      _
    $region95: #{fin_rnn_forward.1} parent=1 // pred_check_branch
      %190 = sbr.rel (0) target = $region97
    $region96: #{fin_rnn_forward.1} parent=1 // pred_region
      %191 = dma.done [#allocation11], 512
    $region97: #{fin_rnn_forward.1} parent=1 // pred_fallthru
      _
    // Predicated region
    $region98: #{fin_rnn_forward.1} parent=1 // pred_check
      _
    $region99: #{fin_rnn_forward.1} parent=1 // pred_check_branch
      %193 = sbr.rel (0) target = $region101
    $region100: #{fin_rnn_forward.1} parent=1 // pred_region
      %194 = dma.done [#allocation14], 16
    $region101: #{fin_rnn_forward.1} parent=1 // pred_fallthru
      _
    // Predicated region
    $region102: #{fin_rnn_forward.1} parent=1 // pred_check
      _
    $region103: #{fin_rnn_forward.1} parent=1 // pred_check_branch
      %196 = sbr.rel (0) target = $region105
    $region104: #{fin_rnn_forward.1} parent=1 // pred_region
      %197 = dma.done [#allocation14], 32
    $region105: #{fin_rnn_forward.1} parent=1 // pred_fallthru
      _
    // Predicated region
    $region106: #{fin_rnn_forward.1} parent=1 // pred_check
      _
    $region107: #{fin_rnn_forward.1} parent=1 // pred_check_branch
      %199 = sbr.rel (0) target = $region109
    $region108: #{fin_rnn_forward.1} parent=1 // pred_region
      %200 = dma.done [#allocation17], 512
    $region109: #{fin_rnn_forward.1} parent=1 // pred_fallthru
      _
    // Predicated region
    $region110: #{fin_rnn_forward.1} parent=1 // pred_check
      _
    $region111: #{fin_rnn_forward.1} parent=1 // pred_check_branch
      %202 = sbr.rel (0) target = $region113
    $region112: #{fin_rnn_forward.1} parent=1 // pred_region
      %203 = dma.done [#allocation17], 16
    $region113: #{fin_rnn_forward.1} parent=1 // pred_fallthru
      _
    // Predicated region
    $region114: #{fin_rnn_forward.1} parent=1 // pred_check
      _
    $region115: #{fin_rnn_forward.1} parent=1 // pred_check_branch
      %205 = sbr.rel (0) target = $region117
    $region116: #{fin_rnn_forward.1} parent=1 // pred_region
      %206 = dma.done [#allocation20], 1024
    $region117: #{fin_rnn_forward.1} parent=1 // pred_fallthru
      _
    %v207 = vld [vmem:[%s0] sm:$0xff]
    %v208 = vld [vmem:[%s0 + $0x8] sm:$0xff]
    %v209 = vld [vmem:[%s0 + $0x10] sm:$0xff]
    %v210 = vld [vmem:[%s0 + $0x18] sm:$0xff]
    %v211 = vld [vmem:[%s0 + $0x20] sm:$0xff]
    %v212 = vld [vmem:[%s0 + $0x28] sm:$0xff]
    %v213 = vld [vmem:[%s0 + $0x30] sm:$0xff]
    %v214 = vld [vmem:[%s0 + $0x38] sm:$0xff]
    %v215 = vld [vmem:[#allocation2] sm:$0xff]
    %v216 = vld [vmem:[#allocation2 + $0x8] sm:$0xff]
    %v217 = vld [vmem:[#allocation2 + $0x10] sm:$0xff]
    %v218 = vld [vmem:[#allocation2 + $0x18] sm:$0xff]
    %v219 = vld [vmem:[#allocation4] sm:$0x1]
    %v221 = vlaneseq
    %v222 = vshrl.u32 %v221, 7
    %v223 = vsub.s32 0, %v222
    %v224 = vrot.slane %v219, %v223
    %vm226 = vcmask 261120
    %v228 = vsel %vm226, %v207, 0
    %v231 = vsel %vm226, %v208, 0
    %v234 = vsel %vm226, %v209, 0
    %v237 = vsel %vm226, %v210, 0
    %v240 = vsel %vm226, %v211, 0
    %v243 = vsel %vm226, %v212, 0
    %v246 = vsel %vm226, %v213, 0
    %v249 = vsel %vm226, %v214, 0
    %251 = vmatprep.subr.mxu0 0.0
    %252 = vmatpush1.msra.mxu0 %v215
    %253 = vmatprep.subr.mxu0 0.0
    %254 = vmatpush1.msra.mxu0 %v216
    %255 = vmatprep.subr.mxu0 0.0
    %256 = vmatpush1.msra.mxu0 %v217
    %257 = vmatprep.subr.mxu0 0.0
    %258 = vmatpush1.msra.mxu0 %v218
    %259 = vmatprep.subr.mxu0 0.0
    %260 = vmatpush1.msra.mxu0 0.0
    %261 = vmatprep.subr.mxu0 0.0
    %262 = vmatpush1.msra.mxu0 0.0
    %263 = vmatprep.subr.mxu0 0.0
    %264 = vmatpush1.msra.mxu0 0.0
    %265 = vmatprep.subr.mxu0 0.0
    %266 = vmatpush1.msra.mxu0 0.0
    %267 = vmatprep.subr.mxu0 0.0
    %268 = vmatpush1.msra.mxu0 0.0
    %269 = vmatprep.subr.mxu0 0.0
    %270 = vmatpush1.msra.mxu0 0.0
    %271 = vmatprep.subr.mxu0 0.0
    %272 = vmatpush1.msra.mxu0 0.0
    %273 = vmatprep.subr.mxu0 0.0
    %274 = vmatpush1.msra.mxu0 0.0
    %275 = vmatprep.subr.mxu0 0.0
    %276 = vmatpush1.msra.mxu0 0.0
    %277 = vmatprep.subr.mxu0 0.0
    %278 = vmatpush1.msra.mxu0 0.0
    %279 = vmatprep.subr.mxu0 0.0
    %280 = vmatpush1.msra.mxu0 0.0
    %281 = vmatprep.subr.mxu0 0.0
    %282 = vmatpush1.msra.mxu0 0.0
    %283 = vmatprep.subr.mxu0 0.0
    %284 = vmatpush1.msra.mxu0 0.0
    %285 = vmatprep.subr.mxu0 0.0
    %286 = vmatpush1.msra.mxu0 0.0
    %287 = vmatprep.subr.mxu0 0.0
    %288 = vmatpush1.msra.mxu0 0.0
    %289 = vmatprep.subr.mxu0 0.0
    %290 = vmatpush1.msra.mxu0 0.0
    %291 = vmatprep.subr.mxu0 0.0
    %292 = vmatpush1.msra.mxu0 0.0
    %293 = vmatprep.subr.mxu0 0.0
    %294 = vmatpush1.msra.mxu0 0.0
    %295 = vmatprep.subr.mxu0 0.0
    %296 = vmatpush1.msra.mxu0 0.0
    %297 = vmatprep.subr.mxu0 0.0
    %298 = vmatpush1.msra.mxu0 0.0
    %299 = vmatprep.subr.mxu0 0.0
    %300 = vmatpush1.msra.mxu0 0.0
    %301 = vmatprep.subr.mxu0 0.0
    %302 = vmatpush1.msra.mxu0 0.0
    %303 = vmatprep.subr.mxu0 0.0
    %304 = vmatpush1.msra.mxu0 0.0
    %305 = vmatprep.subr.mxu0 0.0
    %306 = vmatpush1.msra.mxu0 0.0
    %307 = vmatprep.subr.mxu0 0.0
    %308 = vmatpush1.msra.mxu0 0.0
    %309 = vmatprep.subr.mxu0 0.0
    %310 = vmatpush1.msra.mxu0 0.0
    %311 = vmatprep.subr.mxu0 0.0
    %312 = vmatpush1.msra.mxu0 0.0
    %313 = vmatprep.subr.mxu0 0.0
    %314 = vmatpush1.msra.mxu0 0.0
    %315 = vmatprep.mubr.f32.mxu0 0.0
    %316 = vmatmul.mubr.f32.gmra.mrb[0].mxu0 %v228
    %v317 = vpop.f32.mrb[0].mxu0
    %v318 = vadd.f32 %v224, %v317
    %v319 = vpop.f32.mrb[0].mxu0
    %320 = vmatprep.mubr.f32.mxu0 0.0
    %321 = vmatmul.mubr.f32.gmra.mrb[0].mxu0 %v231
    %v322 = vpop.f32.mrb[0].mxu0
    %v323 = vadd.f32 %v224, %v322
    %v324 = vpop.f32.mrb[0].mxu0
    %325 = vmatprep.mubr.f32.mxu0 0.0
    %326 = vmatmul.mubr.f32.gmra.mrb[0].mxu0 %v234
    %v327 = vpop.f32.mrb[0].mxu0
    %v328 = vadd.f32 %v224, %v327
    %v329 = vpop.f32.mrb[0].mxu0
    %330 = vmatprep.mubr.f32.mxu0 0.0
    %331 = vmatmul.mubr.f32.gmra.mrb[0].mxu0 %v237
    %v332 = vpop.f32.mrb[0].mxu0
    %v333 = vadd.f32 %v224, %v332
    %v334 = vpop.f32.mrb[0].mxu0
    %335 = vmatprep.mubr.f32.mxu0 0.0
    %336 = vmatmul.mubr.f32.gmra.mrb[0].mxu0 %v240
    %v337 = vpop.f32.mrb[0].mxu0
    %v338 = vadd.f32 %v224, %v337
    %v339 = vpop.f32.mrb[0].mxu0
    %340 = vmatprep.mubr.f32.mxu0 0.0
    %341 = vmatmul.mubr.f32.gmra.mrb[0].mxu0 %v243
    %v342 = vpop.f32.mrb[0].mxu0
    %v343 = vadd.f32 %v224, %v342
    %v344 = vpop.f32.mrb[0].mxu0
    %345 = vmatprep.mubr.f32.mxu0 0.0
    %346 = vmatmul.mubr.f32.gmra.mrb[0].mxu0 %v246
    %v347 = vpop.f32.mrb[0].mxu0
    %v348 = vadd.f32 %v224, %v347
    %v349 = vpop.f32.mrb[0].mxu0
    %350 = vmatprep.mubr.f32.mxu0 0.0
    %351 = vmatmul.mubr.f32.gmra.mrb[0].mxu0 %v249
    %v352 = vpop.f32.mrb[0].mxu0
    %v353 = vadd.f32 %v224, %v352
    %v354 = vpop.f32.mrb[0].mxu0
    %355 = vdwg.mxu0
    %v356 = vtanh.pop %v318
    %v357 = vtanh.pop %v323
    %v358 = vtanh.pop %v328
    %v359 = vtanh.pop %v333
    %v360 = vtanh.pop %v338
    %v361 = vtanh.pop %v343
    %v362 = vtanh.pop %v348
    %v363 = vtanh.pop %v353
    %v364 = vld [vmem:[#allocation6] sm:$0xff]
    %v365 = vld [vmem:[#allocation6 + $0x8] sm:$0xff]
    %v366 = vld [vmem:[#allocation6 + $0x10] sm:$0xff]
    %v367 = vld [vmem:[#allocation6 + $0x18] sm:$0xff]
    %v368 = vld [vmem:[#allocation6 + $0x20] sm:$0xff]
    %v369 = vld [vmem:[#allocation6 + $0x28] sm:$0xff]
    %v370 = vld [vmem:[#allocation6 + $0x30] sm:$0xff]
    %v371 = vld [vmem:[#allocation6 + $0x38] sm:$0xff]
    %v372 = vld [vmem:[#allocation7] sm:$0x3]
    %v374 = vlaneseq
    %v375 = vshrl.u32 %v374, 7
    %v376 = vsub.s32 0, %v375
    %v377 = vrot.slane %v372, %v376
    %v378 = vlaneseq
    %v379 = vshrl.u32 %v378, 7
    %v380 = vsub.s32 1, %v379
    %v381 = vrot.slane %v372, %v380
    %v385 = vsel %vm226, %v356, 0
    %v388 = vsel %vm226, %v357, 0
    %v391 = vsel %vm226, %v358, 0
    %v394 = vsel %vm226, %v359, 0
    %v397 = vsel %vm226, %v360, 0
    %v400 = vsel %vm226, %v361, 0
    %v403 = vsel %vm226, %v362, 0
    %v406 = vsel %vm226, %v363, 0
    %408 = vmatprep.subr.mxu0 %v365
    %409 = vmatpush1.msra.mxu0 %v364
    %410 = vmatprep.subr.mxu0 %v367
    %411 = vmatpush1.msra.mxu0 %v366
    %412 = vmatprep.subr.mxu0 %v369
    %413 = vmatpush1.msra.mxu0 %v368
    %414 = vmatprep.subr.mxu0 %v371
    %415 = vmatpush1.msra.mxu0 %v370
    %416 = vmatprep.subr.mxu0 0.0
    %417 = vmatpush1.msra.mxu0 0.0
    %418 = vmatprep.subr.mxu0 0.0
    %419 = vmatpush1.msra.mxu0 0.0
    %420 = vmatprep.subr.mxu0 0.0
    %421 = vmatpush1.msra.mxu0 0.0
    %422 = vmatprep.subr.mxu0 0.0
    %423 = vmatpush1.msra.mxu0 0.0
    %424 = vmatprep.subr.mxu0 0.0
    %425 = vmatpush1.msra.mxu0 0.0
    %426 = vmatprep.subr.mxu0 0.0
    %427 = vmatpush1.msra.mxu0 0.0
    %428 = vmatprep.subr.mxu0 0.0
    %429 = vmatpush1.msra.mxu0 0.0
    %430 = vmatprep.subr.mxu0 0.0
    %431 = vmatpush1.msra.mxu0 0.0
    %432 = vmatprep.subr.mxu0 0.0
    %433 = vmatpush1.msra.mxu0 0.0
    %434 = vmatprep.subr.mxu0 0.0
    %435 = vmatpush1.msra.mxu0 0.0
    %436 = vmatprep.subr.mxu0 0.0
    %437 = vmatpush1.msra.mxu0 0.0
    %438 = vmatprep.subr.mxu0 0.0
    %439 = vmatpush1.msra.mxu0 0.0
    %440 = vmatprep.subr.mxu0 0.0
    %441 = vmatpush1.msra.mxu0 0.0
    %442 = vmatprep.subr.mxu0 0.0
    %443 = vmatpush1.msra.mxu0 0.0
    %444 = vmatprep.subr.mxu0 0.0
    %445 = vmatpush1.msra.mxu0 0.0
    %446 = vmatprep.subr.mxu0 0.0
    %447 = vmatpush1.msra.mxu0 0.0
    %448 = vmatprep.subr.mxu0 0.0
    %449 = vmatpush1.msra.mxu0 0.0
    %450 = vmatprep.subr.mxu0 0.0
    %451 = vmatpush1.msra.mxu0 0.0
    %452 = vmatprep.subr.mxu0 0.0
    %453 = vmatpush1.msra.mxu0 0.0
    %454 = vmatprep.subr.mxu0 0.0
    %455 = vmatpush1.msra.mxu0 0.0
    %456 = vmatprep.subr.mxu0 0.0
    %457 = vmatpush1.msra.mxu0 0.0
    %458 = vmatprep.subr.mxu0 0.0
    %459 = vmatpush1.msra.mxu0 0.0
    %460 = vmatprep.subr.mxu0 0.0
    %461 = vmatpush1.msra.mxu0 0.0
    %462 = vmatprep.subr.mxu0 0.0
    %463 = vmatpush1.msra.mxu0 0.0
    %464 = vmatprep.subr.mxu0 0.0
    %465 = vmatpush1.msra.mxu0 0.0
    %466 = vmatprep.subr.mxu0 0.0
    %467 = vmatpush1.msra.mxu0 0.0
    %468 = vmatprep.subr.mxu0 0.0
    %469 = vmatpush1.msra.mxu0 0.0
    %470 = vmatprep.subr.mxu0 0.0
    %471 = vmatpush1.msra.mxu0 0.0
    %472 = vmatprep.mubr.f32.mxu0 0.0
    %473 = vmatmul.mubr.f32.gmra.mrb[0].mxu0 %v385
    %v474 = vpop.f32.mrb[0].mxu0
    %v475 = vadd.f32 %v377, %v474
    %v476 = vpop.f32.mrb[0].mxu0
    %v477 = vadd.f32 %v381, %v476
    %478 = vmatprep.mubr.f32.mxu0 0.0
    %479 = vmatmul.mubr.f32.gmra.mrb[0].mxu0 %v388
    %v480 = vpop.f32.mrb[0].mxu0
    %v481 = vadd.f32 %v377, %v480
    %v482 = vpop.f32.mrb[0].mxu0
    %v483 = vadd.f32 %v381, %v482
    %484 = vmatprep.mubr.f32.mxu0 0.0
    %485 = vmatmul.mubr.f32.gmra.mrb[0].mxu0 %v391
    %v486 = vpop.f32.mrb[0].mxu0
    %v487 = vadd.f32 %v377, %v486
    %v488 = vpop.f32.mrb[0].mxu0
    %v489 = vadd.f32 %v381, %v488
    %490 = vmatprep.mubr.f32.mxu0 0.0
    %491 = vmatmul.mubr.f32.gmra.mrb[0].mxu0 %v394
    %v492 = vpop.f32.mrb[0].mxu0
    %v493 = vadd.f32 %v377, %v492
    %v494 = vpop.f32.mrb[0].mxu0
    %v495 = vadd.f32 %v381, %v494
    %496 = vmatprep.mubr.f32.mxu0 0.0
    %497 = vmatmul.mubr.f32.gmra.mrb[0].mxu0 %v397
    %v498 = vpop.f32.mrb[0].mxu0
    %v499 = vadd.f32 %v377, %v498
    %v500 = vpop.f32.mrb[0].mxu0
    %v501 = vadd.f32 %v381, %v500
    %502 = vmatprep.mubr.f32.mxu0 0.0
    %503 = vmatmul.mubr.f32.gmra.mrb[0].mxu0 %v400
    %v504 = vpop.f32.mrb[0].mxu0
    %v505 = vadd.f32 %v377, %v504
    %v506 = vpop.f32.mrb[0].mxu0
    %v507 = vadd.f32 %v381, %v506
    %508 = vmatprep.mubr.f32.mxu0 0.0
    %509 = vmatmul.mubr.f32.gmra.mrb[0].mxu0 %v403
    %v510 = vpop.f32.mrb[0].mxu0
    %v511 = vadd.f32 %v377, %v510
    %v512 = vpop.f32.mrb[0].mxu0
    %v513 = vadd.f32 %v381, %v512
    %514 = vmatprep.mubr.f32.mxu0 0.0
    %515 = vmatmul.mubr.f32.gmra.mrb[0].mxu0 %v406
    %v516 = vpop.f32.mrb[0].mxu0
    %v517 = vadd.f32 %v377, %v516
    %v518 = vpop.f32.mrb[0].mxu0
    %v519 = vadd.f32 %v381, %v518
    %520 = vdwg.mxu0
    %v521 = vld [vmem:[#allocation9] sm:$0xff]
    %v522 = vld [vmem:[#allocation9 + $0x8] sm:$0xff]
    %v523 = vld [vmem:[#allocation9 + $0x10] sm:$0xff]
    %v524 = vld [vmem:[#allocation9 + $0x18] sm:$0xff]
    %v525 = vld [vmem:[#allocation10] sm:$0x1]
    %v526 = vld [vmem:[#allocation12] sm:$0xff]
    %v527 = vld [vmem:[#allocation12 + $0x8] sm:$0xff]
    %v528 = vld [vmem:[#allocation12 + $0x10] sm:$0xff]
    %v529 = vld [vmem:[#allocation12 + $0x18] sm:$0xff]
    %v530 = vld [vmem:[#allocation13] sm:$0x1]
    %v532 = vlaneseq
    %v533 = vshrl.u32 %v532, 7
    %v534 = vsub.s32 0, %v533
    %v535 = vrot.slane %v525, %v534
    %v538 = vsel %vm226, 0.0, 0
    %540 = vmatprep.subr.mxu0 0.0
    %541 = vmatpush1.msra.mxu0 %v521
    %542 = vmatprep.subr.mxu0 0.0
    %543 = vmatpush1.msra.mxu0 %v522
    %544 = vmatprep.subr.mxu0 0.0
    %545 = vmatpush1.msra.mxu0 %v523
    %546 = vmatprep.subr.mxu0 0.0
    %547 = vmatpush1.msra.mxu0 %v524
    %548 = vmatprep.subr.mxu0 0.0
    %549 = vmatpush1.msra.mxu0 0.0
    %550 = vmatprep.subr.mxu0 0.0
    %551 = vmatpush1.msra.mxu0 0.0
    %552 = vmatprep.subr.mxu0 0.0
    %553 = vmatpush1.msra.mxu0 0.0
    %554 = vmatprep.subr.mxu0 0.0
    %555 = vmatpush1.msra.mxu0 0.0
    %556 = vmatprep.subr.mxu0 0.0
    %557 = vmatpush1.msra.mxu0 0.0
    %558 = vmatprep.subr.mxu0 0.0
    %559 = vmatpush1.msra.mxu0 0.0
    %560 = vmatprep.subr.mxu0 0.0
    %561 = vmatpush1.msra.mxu0 0.0
    %562 = vmatprep.subr.mxu0 0.0
    %563 = vmatpush1.msra.mxu0 0.0
    %564 = vmatprep.subr.mxu0 0.0
    %565 = vmatpush1.msra.mxu0 0.0
    %566 = vmatprep.subr.mxu0 0.0
    %567 = vmatpush1.msra.mxu0 0.0
    %568 = vmatprep.subr.mxu0 0.0
    %569 = vmatpush1.msra.mxu0 0.0
    %570 = vmatprep.subr.mxu0 0.0
    %571 = vmatpush1.msra.mxu0 0.0
    %572 = vmatprep.subr.mxu0 0.0
    %573 = vmatpush1.msra.mxu0 0.0
    %574 = vmatprep.subr.mxu0 0.0
    %575 = vmatpush1.msra.mxu0 0.0
    %576 = vmatprep.subr.mxu0 0.0
    %577 = vmatpush1.msra.mxu0 0.0
    %578 = vmatprep.subr.mxu0 0.0
    %579 = vmatpush1.msra.mxu0 0.0
    %580 = vmatprep.subr.mxu0 0.0
    %581 = vmatpush1.msra.mxu0 0.0
    %582 = vmatprep.subr.mxu0 0.0
    %583 = vmatpush1.msra.mxu0 0.0
    %584 = vmatprep.subr.mxu0 0.0
    %585 = vmatpush1.msra.mxu0 0.0
    %586 = vmatprep.subr.mxu0 0.0
    %587 = vmatpush1.msra.mxu0 0.0
    %588 = vmatprep.subr.mxu0 0.0
    %589 = vmatpush1.msra.mxu0 0.0
    %590 = vmatprep.subr.mxu0 0.0
    %591 = vmatpush1.msra.mxu0 0.0
    %592 = vmatprep.subr.mxu0 0.0
    %593 = vmatpush1.msra.mxu0 0.0
    %594 = vmatprep.subr.mxu0 0.0
    %595 = vmatpush1.msra.mxu0 0.0
    %596 = vmatprep.subr.mxu0 0.0
    %597 = vmatpush1.msra.mxu0 0.0
    %598 = vmatprep.subr.mxu0 0.0
    %599 = vmatpush1.msra.mxu0 0.0
    %600 = vmatprep.subr.mxu0 0.0
    %601 = vmatpush1.msra.mxu0 0.0
    %602 = vmatprep.subr.mxu0 0.0
    %603 = vmatpush1.msra.mxu0 0.0
    %604 = vmatprep.mubr.f32.mxu0 0.0
    %605 = vmatmul.mubr.f32.gmra.mrb[0].mxu0 %v538
    %v606 = vpop.f32.mrb[0].mxu0
    %v607 = vadd.f32 %v535, %v606
    %v608 = vpop.f32.mrb[0].mxu0
    %609 = vdwg.mxu0
    %v610 = vadd.f32 %v475, %v607
    %v611 = vxor.u32 %v610, 2147483648
    %v612 = vmul.f32 %v611, 1.442695
    %v613 = vpow.pop %v612
    %v614 = vadd.f32 %v613, 1.0
    %v615 = vrcp.pop %v614
    %v616 = vmul.f32 1.0, %v615
    %618 = vrot.lane.b32.xlu0 %v607, 64
    %v619 = vpop.permute.xlu0 %618
    %v621 = vmul.f32 %v616, %v619
    %623 = vrot.lane.b32.xlu0 %v621, 64
    %v624 = vpop.permute.xlu0 %623
    %v626 = vadd.f32 %v475, %v624
    %v627 = vtanh.pop %v626
    %v628 = vsub.f32 1.0, %v616
    %630 = vrot.lane.b32.xlu0 %v627, 96
    %v631 = vpop.permute.xlu0 %630
    %v633 = vmul.f32 %v628, %v631
    %v634 = vmul.f32 %v616, 0.0
    %v635 = vadd.f32 %v633, %v634
    %v637 = vlaneseq
    %v638 = vshrl.u32 %v637, 7
    %v639 = vsub.s32 0, %v638
    %v640 = vrot.slane %v530, %v639
    %642 = vmatprep.subr.mxu0 0.0
    %643 = vmatpush1.msra.mxu0 %v526
    %644 = vmatprep.subr.mxu0 0.0
    %645 = vmatpush1.msra.mxu0 %v527
    %646 = vmatprep.subr.mxu0 0.0
    %647 = vmatpush1.msra.mxu0 %v528
    %648 = vmatprep.subr.mxu0 0.0
    %649 = vmatpush1.msra.mxu0 %v529
    %650 = vmatprep.subr.mxu0 0.0
    %651 = vmatpush1.msra.mxu0 0.0
    %652 = vmatprep.subr.mxu0 0.0
    %653 = vmatpush1.msra.mxu0 0.0
    %654 = vmatprep.subr.mxu0 0.0
    %655 = vmatpush1.msra.mxu0 0.0
    %656 = vmatprep.subr.mxu0 0.0
    %657 = vmatpush1.msra.mxu0 0.0
    %658 = vmatprep.subr.mxu0 0.0
    %659 = vmatpush1.msra.mxu0 0.0
    %660 = vmatprep.subr.mxu0 0.0
    %661 = vmatpush1.msra.mxu0 0.0
    %662 = vmatprep.subr.mxu0 0.0
    %663 = vmatpush1.msra.mxu0 0.0
    %664 = vmatprep.subr.mxu0 0.0
    %665 = vmatpush1.msra.mxu0 0.0
    %666 = vmatprep.subr.mxu0 0.0
    %667 = vmatpush1.msra.mxu0 0.0
    %668 = vmatprep.subr.mxu0 0.0
    %669 = vmatpush1.msra.mxu0 0.0
    %670 = vmatprep.subr.mxu0 0.0
    %671 = vmatpush1.msra.mxu0 0.0
    %672 = vmatprep.subr.mxu0 0.0
    %673 = vmatpush1.msra.mxu0 0.0
    %674 = vmatprep.subr.mxu0 0.0
    %675 = vmatpush1.msra.mxu0 0.0
    %676 = vmatprep.subr.mxu0 0.0
    %677 = vmatpush1.msra.mxu0 0.0
    %678 = vmatprep.subr.mxu0 0.0
    %679 = vmatpush1.msra.mxu0 0.0
    %680 = vmatprep.subr.mxu0 0.0
    %681 = vmatpush1.msra.mxu0 0.0
    %682 = vmatprep.subr.mxu0 0.0
    %683 = vmatpush1.msra.mxu0 0.0
    %684 = vmatprep.subr.mxu0 0.0
    %685 = vmatpush1.msra.mxu0 0.0
    %686 = vmatprep.subr.mxu0 0.0
    %687 = vmatpush1.msra.mxu0 0.0
    %688 = vmatprep.subr.mxu0 0.0
    %689 = vmatpush1.msra.mxu0 0.0
    %690 = vmatprep.subr.mxu0 0.0
    %691 = vmatpush1.msra.mxu0 0.0
    %692 = vmatprep.subr.mxu0 0.0
    %693 = vmatpush1.msra.mxu0 0.0
    %694 = vmatprep.subr.mxu0 0.0
    %695 = vmatpush1.msra.mxu0 0.0
    %696 = vmatprep.subr.mxu0 0.0
    %697 = vmatpush1.msra.mxu0 0.0
    %698 = vmatprep.subr.mxu0 0.0
    %699 = vmatpush1.msra.mxu0 0.0
    %700 = vmatprep.subr.mxu0 0.0
    %701 = vmatpush1.msra.mxu0 0.0
    %702 = vmatprep.subr.mxu0 0.0
    %703 = vmatpush1.msra.mxu0 0.0
    %704 = vmatprep.subr.mxu0 0.0
    %705 = vmatpush1.msra.mxu0 0.0
    %706 = vmatprep.mubr.f32.mxu0 0.0
    %707 = vmatmul.mubr.f32.gmra.mrb[0].mxu0 %v538
    %v708 = vpop.f32.mrb[0].mxu0
    %v709 = vadd.f32 %v640, %v708
    %v710 = vpop.f32.mrb[0].mxu0
    %711 = vdwg.mxu0
    %713 = vrot.lane.b32.xlu0 %v709, 96
    %v714 = vpop.permute.xlu0 %713
    %v716 = vadd.f32 %v517, %v714
    %v717 = vxor.u32 %v716, 2147483648
    %v718 = vmul.f32 %v717, 1.442695
    %v719 = vpow.pop %v718
    %v720 = vadd.f32 %v719, 1.0
    %v721 = vrcp.pop %v720
    %v722 = vmul.f32 1.0, %v721
    %v723 = vadd.f32 %v519, %v714
    %v724 = vxor.u32 %v723, 2147483648
    %v725 = vmul.f32 %v724, 1.442695
    %v726 = vpow.pop %v725
    %v727 = vadd.f32 %v726, 1.0
    %v728 = vrcp.pop %v727
    %v729 = vmul.f32 1.0, %v728
    %730 = vrot.lane.b32.xlu0 %v709, 32
    %v731 = vpop.permute.xlu0 %730
    %v733 = vmul.f32 %v722, %v731
    %735 = vrot.lane.b32.xlu0 %v733, 64
    %v736 = vpop.permute.xlu0 %735
    %v738 = vadd.f32 %v519, %v736
    %v739 = vtanh.pop %v738
    %v740 = vsub.f32 1.0, %v729
    %742 = vrot.lane.b32.xlu0 %v739, 96
    %v743 = vpop.permute.xlu0 %742
    %v745 = vmul.f32 %v740, %v743
    %v746 = vmul.f32 %v729, 0.0
    %v747 = vadd.f32 %v745, %v746
    %749 = vrot.lane.b32.xlu0 %v635, 96
    %v750 = vpop.permute.xlu0 %749
    %v751 = vsel %vm226, %v750, 0
    %753 = vmatprep.subr.mxu0 0.0
    %754 = vmatpush1.msra.mxu0 %v521
    %755 = vmatprep.subr.mxu0 0.0
    %756 = vmatpush1.msra.mxu0 %v522
    %757 = vmatprep.subr.mxu0 0.0
    %758 = vmatpush1.msra.mxu0 %v523
    %759 = vmatprep.subr.mxu0 0.0
    %760 = vmatpush1.msra.mxu0 %v524
    %761 = vmatprep.subr.mxu0 0.0
    %762 = vmatpush1.msra.mxu0 0.0
    %763 = vmatprep.subr.mxu0 0.0
    %764 = vmatpush1.msra.mxu0 0.0
    %765 = vmatprep.subr.mxu0 0.0
    %766 = vmatpush1.msra.mxu0 0.0
    %767 = vmatprep.subr.mxu0 0.0
    %768 = vmatpush1.msra.mxu0 0.0
    %769 = vmatprep.subr.mxu0 0.0
    %770 = vmatpush1.msra.mxu0 0.0
    %771 = vmatprep.subr.mxu0 0.0
    %772 = vmatpush1.msra.mxu0 0.0
    %773 = vmatprep.subr.mxu0 0.0
    %774 = vmatpush1.msra.mxu0 0.0
    %775 = vmatprep.subr.mxu0 0.0
    %776 = vmatpush1.msra.mxu0 0.0
    %777 = vmatprep.subr.mxu0 0.0
    %778 = vmatpush1.msra.mxu0 0.0
    %779 = vmatprep.subr.mxu0 0.0
    %780 = vmatpush1.msra.mxu0 0.0
    %781 = vmatprep.subr.mxu0 0.0
    %782 = vmatpush1.msra.mxu0 0.0
    %783 = vmatprep.subr.mxu0 0.0
    %784 = vmatpush1.msra.mxu0 0.0
    %785 = vmatprep.subr.mxu0 0.0
    %786 = vmatpush1.msra.mxu0 0.0
    %787 = vmatprep.subr.mxu0 0.0
    %788 = vmatpush1.msra.mxu0 0.0
    %789 = vmatprep.subr.mxu0 0.0
    %790 = vmatpush1.msra.mxu0 0.0
    %791 = vmatprep.subr.mxu0 0.0
    %792 = vmatpush1.msra.mxu0 0.0
    %793 = vmatprep.subr.mxu0 0.0
    %794 = vmatpush1.msra.mxu0 0.0
    %795 = vmatprep.subr.mxu0 0.0
    %796 = vmatpush1.msra.mxu0 0.0
    %797 = vmatprep.subr.mxu0 0.0
    %798 = vmatpush1.msra.mxu0 0.0
    %799 = vmatprep.subr.mxu0 0.0
    %800 = vmatpush1.msra.mxu0 0.0
    %801 = vmatprep.subr.mxu0 0.0
    %802 = vmatpush1.msra.mxu0 0.0
    %803 = vmatprep.subr.mxu0 0.0
    %804 = vmatpush1.msra.mxu0 0.0
    %805 = vmatprep.subr.mxu0 0.0
    %806 = vmatpush1.msra.mxu0 0.0
    %807 = vmatprep.subr.mxu0 0.0
    %808 = vmatpush1.msra.mxu0 0.0
    %809 = vmatprep.subr.mxu0 0.0
    %810 = vmatpush1.msra.mxu0 0.0
    %811 = vmatprep.subr.mxu0 0.0
    %812 = vmatpush1.msra.mxu0 0.0
    %813 = vmatprep.subr.mxu0 0.0
    %814 = vmatpush1.msra.mxu0 0.0
    %815 = vmatprep.subr.mxu0 0.0
    %816 = vmatpush1.msra.mxu0 0.0
    %817 = vmatprep.mubr.f32.mxu0 0.0
    %818 = vmatmul.mubr.f32.gmra.mrb[0].mxu0 %v751
    %v819 = vpop.f32.mrb[0].mxu0
    %v820 = vadd.f32 %v535, %v819
    %v821 = vpop.f32.mrb[0].mxu0
    %822 = vdwg.mxu0
    %v823 = vadd.f32 %v481, %v820
    %v824 = vxor.u32 %v823, 2147483648
    %v825 = vmul.f32 %v824, 1.442695
    %v826 = vpow.pop %v825
    %v827 = vadd.f32 %v826, 1.0
    %v828 = vrcp.pop %v827
    %v829 = vmul.f32 1.0, %v828
    %831 = vrot.lane.b32.xlu0 %v820, 64
    %v832 = vpop.permute.xlu0 %831
    %v834 = vmul.f32 %v829, %v832
    %836 = vrot.lane.b32.xlu0 %v834, 64
    %v837 = vpop.permute.xlu0 %836
    %v839 = vadd.f32 %v481, %v837
    %v840 = vtanh.pop %v839
    %v841 = vsub.f32 1.0, %v829
    %843 = vrot.lane.b32.xlu0 %v840, 96
    %v844 = vpop.permute.xlu0 %843
    %v846 = vmul.f32 %v841, %v844
    %v847 = vmul.f32 %v829, %v635
    %v848 = vadd.f32 %v846, %v847
    %v850 = vsel %vm226, %v747, 0
    %852 = vmatprep.subr.mxu0 0.0
    %853 = vmatpush1.msra.mxu0 %v526
    %854 = vmatprep.subr.mxu0 0.0
    %855 = vmatpush1.msra.mxu0 %v527
    %856 = vmatprep.subr.mxu0 0.0
    %857 = vmatpush1.msra.mxu0 %v528
    %858 = vmatprep.subr.mxu0 0.0
    %859 = vmatpush1.msra.mxu0 %v529
    %860 = vmatprep.subr.mxu0 0.0
    %861 = vmatpush1.msra.mxu0 0.0
    %862 = vmatprep.subr.mxu0 0.0
    %863 = vmatpush1.msra.mxu0 0.0
    %864 = vmatprep.subr.mxu0 0.0
    %865 = vmatpush1.msra.mxu0 0.0
    %866 = vmatprep.subr.mxu0 0.0
    %867 = vmatpush1.msra.mxu0 0.0
    %868 = vmatprep.subr.mxu0 0.0
    %869 = vmatpush1.msra.mxu0 0.0
    %870 = vmatprep.subr.mxu0 0.0
    %871 = vmatpush1.msra.mxu0 0.0
    %872 = vmatprep.subr.mxu0 0.0
    %873 = vmatpush1.msra.mxu0 0.0
    %874 = vmatprep.subr.mxu0 0.0
    %875 = vmatpush1.msra.mxu0 0.0
    %876 = vmatprep.subr.mxu0 0.0
    %877 = vmatpush1.msra.mxu0 0.0
    %878 = vmatprep.subr.mxu0 0.0
    %879 = vmatpush1.msra.mxu0 0.0
    %880 = vmatprep.subr.mxu0 0.0
    %881 = vmatpush1.msra.mxu0 0.0
    %882 = vmatprep.subr.mxu0 0.0
    %883 = vmatpush1.msra.mxu0 0.0
    %884 = vmatprep.subr.mxu0 0.0
    %885 = vmatpush1.msra.mxu0 0.0
    %886 = vmatprep.subr.mxu0 0.0
    %887 = vmatpush1.msra.mxu0 0.0
    %888 = vmatprep.subr.mxu0 0.0
    %889 = vmatpush1.msra.mxu0 0.0
    %890 = vmatprep.subr.mxu0 0.0
    %891 = vmatpush1.msra.mxu0 0.0
    %892 = vmatprep.subr.mxu0 0.0
    %893 = vmatpush1.msra.mxu0 0.0
    %894 = vmatprep.subr.mxu0 0.0
    %895 = vmatpush1.msra.mxu0 0.0
    %896 = vmatprep.subr.mxu0 0.0
    %897 = vmatpush1.msra.mxu0 0.0
    %898 = vmatprep.subr.mxu0 0.0
    %899 = vmatpush1.msra.mxu0 0.0
    %900 = vmatprep.subr.mxu0 0.0
    %901 = vmatpush1.msra.mxu0 0.0
    %902 = vmatprep.subr.mxu0 0.0
    %903 = vmatpush1.msra.mxu0 0.0
    %904 = vmatprep.subr.mxu0 0.0
    %905 = vmatpush1.msra.mxu0 0.0
    %906 = vmatprep.subr.mxu0 0.0
    %907 = vmatpush1.msra.mxu0 0.0
    %908 = vmatprep.subr.mxu0 0.0
    %909 = vmatpush1.msra.mxu0 0.0
    %910 = vmatprep.subr.mxu0 0.0
    %911 = vmatpush1.msra.mxu0 0.0
    %912 = vmatprep.subr.mxu0 0.0
    %913 = vmatpush1.msra.mxu0 0.0
    %914 = vmatprep.subr.mxu0 0.0
    %915 = vmatpush1.msra.mxu0 0.0
    %916 = vmatprep.mubr.f32.mxu0 0.0
    %917 = vmatmul.mubr.f32.gmra.mrb[0].mxu0 %v850
    %v918 = vpop.f32.mrb[0].mxu0
    %v919 = vadd.f32 %v640, %v918
    %v920 = vpop.f32.mrb[0].mxu0
    %921 = vdwg.mxu0
    %923 = vrot.lane.b32.xlu0 %v919, 96
    %v924 = vpop.permute.xlu0 %923
    %v926 = vadd.f32 %v511, %v924
    %v927 = vxor.u32 %v926, 2147483648
    %v928 = vmul.f32 %v927, 1.442695
    %v929 = vpow.pop %v928
    %v930 = vadd.f32 %v929, 1.0
    %v931 = vrcp.pop %v930
    %v932 = vmul.f32 1.0, %v931
    %v933 = vadd.f32 %v513, %v924
    %v934 = vxor.u32 %v933, 2147483648
    %v935 = vmul.f32 %v934, 1.442695
    %v936 = vpow.pop %v935
    %v937 = vadd.f32 %v936, 1.0
    %v938 = vrcp.pop %v937
    %v939 = vmul.f32 1.0, %v938
    %940 = vrot.lane.b32.xlu0 %v919, 32
    %v941 = vpop.permute.xlu0 %940
    %v943 = vmul.f32 %v932, %v941
    %945 = vrot.lane.b32.xlu0 %v943, 64
    %v946 = vpop.permute.xlu0 %945
    %v948 = vadd.f32 %v513, %v946
    %v949 = vtanh.pop %v948
    %v950 = vsub.f32 1.0, %v939
    %952 = vrot.lane.b32.xlu0 %v949, 96
    %v953 = vpop.permute.xlu0 %952
    %v955 = vmul.f32 %v950, %v953
    %v956 = vmul.f32 %v939, %v747
    %v957 = vadd.f32 %v955, %v956
    %959 = vrot.lane.b32.xlu0 %v848, 96
    %v960 = vpop.permute.xlu0 %959
    %v961 = vsel %vm226, %v960, 0
    %963 = vmatprep.subr.mxu0 0.0
    %964 = vmatpush1.msra.mxu0 %v521
    %965 = vmatprep.subr.mxu0 0.0
    %966 = vmatpush1.msra.mxu0 %v522
    %967 = vmatprep.subr.mxu0 0.0
    %968 = vmatpush1.msra.mxu0 %v523
    %969 = vmatprep.subr.mxu0 0.0
    %970 = vmatpush1.msra.mxu0 %v524
    %971 = vmatprep.subr.mxu0 0.0
    %972 = vmatpush1.msra.mxu0 0.0
    %973 = vmatprep.subr.mxu0 0.0
    %974 = vmatpush1.msra.mxu0 0.0
    %975 = vmatprep.subr.mxu0 0.0
    %976 = vmatpush1.msra.mxu0 0.0
    %977 = vmatprep.subr.mxu0 0.0
    %978 = vmatpush1.msra.mxu0 0.0
    %979 = vmatprep.subr.mxu0 0.0
    %980 = vmatpush1.msra.mxu0 0.0
    %981 = vmatprep.subr.mxu0 0.0
    %982 = vmatpush1.msra.mxu0 0.0
    %983 = vmatprep.subr.mxu0 0.0
    %984 = vmatpush1.msra.mxu0 0.0
    %985 = vmatprep.subr.mxu0 0.0
    %986 = vmatpush1.msra.mxu0 0.0
    %987 = vmatprep.subr.mxu0 0.0
    %988 = vmatpush1.msra.mxu0 0.0
    %989 = vmatprep.subr.mxu0 0.0
    %990 = vmatpush1.msra.mxu0 0.0
    %991 = vmatprep.subr.mxu0 0.0
    %992 = vmatpush1.msra.mxu0 0.0
    %993 = vmatprep.subr.mxu0 0.0
    %994 = vmatpush1.msra.mxu0 0.0
    %995 = vmatprep.subr.mxu0 0.0
    %996 = vmatpush1.msra.mxu0 0.0
    %997 = vmatprep.subr.mxu0 0.0
    %998 = vmatpush1.msra.mxu0 0.0
    %999 = vmatprep.subr.mxu0 0.0
    %1000 = vmatpush1.msra.mxu0 0.0
    %1001 = vmatprep.subr.mxu0 0.0
    %1002 = vmatpush1.msra.mxu0 0.0
    %1003 = vmatprep.subr.mxu0 0.0
    %1004 = vmatpush1.msra.mxu0 0.0
    %1005 = vmatprep.subr.mxu0 0.0
    %1006 = vmatpush1.msra.mxu0 0.0
    %1007 = vmatprep.subr.mxu0 0.0
    %1008 = vmatpush1.msra.mxu0 0.0
    %1009 = vmatprep.subr.mxu0 0.0
    %1010 = vmatpush1.msra.mxu0 0.0
    %1011 = vmatprep.subr.mxu0 0.0
    %1012 = vmatpush1.msra.mxu0 0.0
    %1013 = vmatprep.subr.mxu0 0.0
    %1014 = vmatpush1.msra.mxu0 0.0
    %1015 = vmatprep.subr.mxu0 0.0
    %1016 = vmatpush1.msra.mxu0 0.0
    %1017 = vmatprep.subr.mxu0 0.0
    %1018 = vmatpush1.msra.mxu0 0.0
    %1019 = vmatprep.subr.mxu0 0.0
    %1020 = vmatpush1.msra.mxu0 0.0
    %1021 = vmatprep.subr.mxu0 0.0
    %1022 = vmatpush1.msra.mxu0 0.0
    %1023 = vmatprep.subr.mxu0 0.0
    %1024 = vmatpush1.msra.mxu0 0.0
    %1025 = vmatprep.subr.mxu0 0.0
    %1026 = vmatpush1.msra.mxu0 0.0
    %1027 = vmatprep.mubr.f32.mxu0 0.0
    %1028 = vmatmul.mubr.f32.gmra.mrb[0].mxu0 %v961
    %v1029 = vpop.f32.mrb[0].mxu0
    %v1030 = vadd.f32 %v535, %v1029
    %v1031 = vpop.f32.mrb[0].mxu0
    %1032 = vdwg.mxu0
    %v1033 = vadd.f32 %v487, %v1030
    %v1034 = vxor.u32 %v1033, 2147483648
    %v1035 = vmul.f32 %v1034, 1.442695
    %v1036 = vpow.pop %v1035
    %v1037 = vadd.f32 %v1036, 1.0
    %v1038 = vrcp.pop %v1037
    %v1039 = vmul.f32 1.0, %v1038
    %1041 = vrot.lane.b32.xlu0 %v1030, 64
    %v1042 = vpop.permute.xlu0 %1041
    %v1044 = vmul.f32 %v1039, %v1042
    %1046 = vrot.lane.b32.xlu0 %v1044, 64
    %v1047 = vpop.permute.xlu0 %1046
    %v1049 = vadd.f32 %v487, %v1047
    %v1050 = vtanh.pop %v1049
    %v1051 = vsub.f32 1.0, %v1039
    %1053 = vrot.lane.b32.xlu0 %v1050, 96
    %v1054 = vpop.permute.xlu0 %1053
    %v1056 = vmul.f32 %v1051, %v1054
    %v1057 = vmul.f32 %v1039, %v848
    %v1058 = vadd.f32 %v1056, %v1057
    %v1060 = vsel %vm226, %v957, 0
    %1062 = vmatprep.subr.mxu0 0.0
    %1063 = vmatpush1.msra.mxu0 %v526
    %1064 = vmatprep.subr.mxu0 0.0
    %1065 = vmatpush1.msra.mxu0 %v527
    %1066 = vmatprep.subr.mxu0 0.0
    %1067 = vmatpush1.msra.mxu0 %v528
    %1068 = vmatprep.subr.mxu0 0.0
    %1069 = vmatpush1.msra.mxu0 %v529
    %1070 = vmatprep.subr.mxu0 0.0
    %1071 = vmatpush1.msra.mxu0 0.0
    %1072 = vmatprep.subr.mxu0 0.0
    %1073 = vmatpush1.msra.mxu0 0.0
    %1074 = vmatprep.subr.mxu0 0.0
    %1075 = vmatpush1.msra.mxu0 0.0
    %1076 = vmatprep.subr.mxu0 0.0
    %1077 = vmatpush1.msra.mxu0 0.0
    %1078 = vmatprep.subr.mxu0 0.0
    %1079 = vmatpush1.msra.mxu0 0.0
    %1080 = vmatprep.subr.mxu0 0.0
    %1081 = vmatpush1.msra.mxu0 0.0
    %1082 = vmatprep.subr.mxu0 0.0
    %1083 = vmatpush1.msra.mxu0 0.0
    %1084 = vmatprep.subr.mxu0 0.0
    %1085 = vmatpush1.msra.mxu0 0.0
    %1086 = vmatprep.subr.mxu0 0.0
    %1087 = vmatpush1.msra.mxu0 0.0
    %1088 = vmatprep.subr.mxu0 0.0
    %1089 = vmatpush1.msra.mxu0 0.0
    %1090 = vmatprep.subr.mxu0 0.0
    %1091 = vmatpush1.msra.mxu0 0.0
    %1092 = vmatprep.subr.mxu0 0.0
    %1093 = vmatpush1.msra.mxu0 0.0
    %1094 = vmatprep.subr.mxu0 0.0
    %1095 = vmatpush1.msra.mxu0 0.0
    %1096 = vmatprep.subr.mxu0 0.0
    %1097 = vmatpush1.msra.mxu0 0.0
    %1098 = vmatprep.subr.mxu0 0.0
    %1099 = vmatpush1.msra.mxu0 0.0
    %1100 = vmatprep.subr.mxu0 0.0
    %1101 = vmatpush1.msra.mxu0 0.0
    %1102 = vmatprep.subr.mxu0 0.0
    %1103 = vmatpush1.msra.mxu0 0.0
    %1104 = vmatprep.subr.mxu0 0.0
    %1105 = vmatpush1.msra.mxu0 0.0
    %1106 = vmatprep.subr.mxu0 0.0
    %1107 = vmatpush1.msra.mxu0 0.0
    %1108 = vmatprep.subr.mxu0 0.0
    %1109 = vmatpush1.msra.mxu0 0.0
    %1110 = vmatprep.subr.mxu0 0.0
    %1111 = vmatpush1.msra.mxu0 0.0
    %1112 = vmatprep.subr.mxu0 0.0
    %1113 = vmatpush1.msra.mxu0 0.0
    %1114 = vmatprep.subr.mxu0 0.0
    %1115 = vmatpush1.msra.mxu0 0.0
    %1116 = vmatprep.subr.mxu0 0.0
    %1117 = vmatpush1.msra.mxu0 0.0
    %1118 = vmatprep.subr.mxu0 0.0
    %1119 = vmatpush1.msra.mxu0 0.0
    %1120 = vmatprep.subr.mxu0 0.0
    %1121 = vmatpush1.msra.mxu0 0.0
    %1122 = vmatprep.subr.mxu0 0.0
    %1123 = vmatpush1.msra.mxu0 0.0
    %1124 = vmatprep.subr.mxu0 0.0
    %1125 = vmatpush1.msra.mxu0 0.0
    %1126 = vmatprep.mubr.f32.mxu0 0.0
    %1127 = vmatmul.mubr.f32.gmra.mrb[0].mxu0 %v1060
    %v1128 = vpop.f32.mrb[0].mxu0
    %v1129 = vadd.f32 %v640, %v1128
    %v1130 = vpop.f32.mrb[0].mxu0
    %1131 = vdwg.mxu0
    %1133 = vrot.lane.b32.xlu0 %v1129, 96
    %v1134 = vpop.permute.xlu0 %1133
    %v1136 = vadd.f32 %v505, %v1134
    %v1137 = vxor.u32 %v1136, 2147483648
    %v1138 = vmul.f32 %v1137, 1.442695
    %v1139 = vpow.pop %v1138
    %v1140 = vadd.f32 %v1139, 1.0
    %v1141 = vrcp.pop %v1140
    %v1142 = vmul.f32 1.0, %v1141
    %v1143 = vadd.f32 %v507, %v1134
    %v1144 = vxor.u32 %v1143, 2147483648
    %v1145 = vmul.f32 %v1144, 1.442695
    %v1146 = vpow.pop %v1145
    %v1147 = vadd.f32 %v1146, 1.0
    %v1148 = vrcp.pop %v1147
    %v1149 = vmul.f32 1.0, %v1148
    %1150 = vrot.lane.b32.xlu0 %v1129, 32
    %v1151 = vpop.permute.xlu0 %1150
    %v1153 = vmul.f32 %v1142, %v1151
    %1155 = vrot.lane.b32.xlu0 %v1153, 64
    %v1156 = vpop.permute.xlu0 %1155
    %v1158 = vadd.f32 %v507, %v1156
    %v1159 = vtanh.pop %v1158
    %v1160 = vsub.f32 1.0, %v1149
    %1162 = vrot.lane.b32.xlu0 %v1159, 96
    %v1163 = vpop.permute.xlu0 %1162
    %v1165 = vmul.f32 %v1160, %v1163
    %v1166 = vmul.f32 %v1149, %v957
    %v1167 = vadd.f32 %v1165, %v1166
    %1169 = vrot.lane.b32.xlu0 %v1058, 96
    %v1170 = vpop.permute.xlu0 %1169
    %v1171 = vsel %vm226, %v1170, 0
    %1173 = vmatprep.subr.mxu0 0.0
    %1174 = vmatpush1.msra.mxu0 %v521
    %1175 = vmatprep.subr.mxu0 0.0
    %1176 = vmatpush1.msra.mxu0 %v522
    %1177 = vmatprep.subr.mxu0 0.0
    %1178 = vmatpush1.msra.mxu0 %v523
    %1179 = vmatprep.subr.mxu0 0.0
    %1180 = vmatpush1.msra.mxu0 %v524
    %1181 = vmatprep.subr.mxu0 0.0
    %1182 = vmatpush1.msra.mxu0 0.0
    %1183 = vmatprep.subr.mxu0 0.0
    %1184 = vmatpush1.msra.mxu0 0.0
    %1185 = vmatprep.subr.mxu0 0.0
    %1186 = vmatpush1.msra.mxu0 0.0
    %1187 = vmatprep.subr.mxu0 0.0
    %1188 = vmatpush1.msra.mxu0 0.0
    %1189 = vmatprep.subr.mxu0 0.0
    %1190 = vmatpush1.msra.mxu0 0.0
    %1191 = vmatprep.subr.mxu0 0.0
    %1192 = vmatpush1.msra.mxu0 0.0
    %1193 = vmatprep.subr.mxu0 0.0
    %1194 = vmatpush1.msra.mxu0 0.0
    %1195 = vmatprep.subr.mxu0 0.0
    %1196 = vmatpush1.msra.mxu0 0.0
    %1197 = vmatprep.subr.mxu0 0.0
    %1198 = vmatpush1.msra.mxu0 0.0
    %1199 = vmatprep.subr.mxu0 0.0
    %1200 = vmatpush1.msra.mxu0 0.0
    %1201 = vmatprep.subr.mxu0 0.0
    %1202 = vmatpush1.msra.mxu0 0.0
    %1203 = vmatprep.subr.mxu0 0.0
    %1204 = vmatpush1.msra.mxu0 0.0
    %1205 = vmatprep.subr.mxu0 0.0
    %1206 = vmatpush1.msra.mxu0 0.0
    %1207 = vmatprep.subr.mxu0 0.0
    %1208 = vmatpush1.msra.mxu0 0.0
    %1209 = vmatprep.subr.mxu0 0.0
    %1210 = vmatpush1.msra.mxu0 0.0
    %1211 = vmatprep.subr.mxu0 0.0
    %1212 = vmatpush1.msra.mxu0 0.0
    %1213 = vmatprep.subr.mxu0 0.0
    %1214 = vmatpush1.msra.mxu0 0.0
    %1215 = vmatprep.subr.mxu0 0.0
    %1216 = vmatpush1.msra.mxu0 0.0
    %1217 = vmatprep.subr.mxu0 0.0
    %1218 = vmatpush1.msra.mxu0 0.0
    %1219 = vmatprep.subr.mxu0 0.0
    %1220 = vmatpush1.msra.mxu0 0.0
    %1221 = vmatprep.subr.mxu0 0.0
    %1222 = vmatpush1.msra.mxu0 0.0
    %1223 = vmatprep.subr.mxu0 0.0
    %1224 = vmatpush1.msra.mxu0 0.0
    %1225 = vmatprep.subr.mxu0 0.0
    %1226 = vmatpush1.msra.mxu0 0.0
    %1227 = vmatprep.subr.mxu0 0.0
    %1228 = vmatpush1.msra.mxu0 0.0
    %1229 = vmatprep.subr.mxu0 0.0
    %1230 = vmatpush1.msra.mxu0 0.0
    %1231 = vmatprep.subr.mxu0 0.0
    %1232 = vmatpush1.msra.mxu0 0.0
    %1233 = vmatprep.subr.mxu0 0.0
    %1234 = vmatpush1.msra.mxu0 0.0
    %1235 = vmatprep.subr.mxu0 0.0
    %1236 = vmatpush1.msra.mxu0 0.0
    %1237 = vmatprep.mubr.f32.mxu0 0.0
    %1238 = vmatmul.mubr.f32.gmra.mrb[0].mxu0 %v1171
    %v1239 = vpop.f32.mrb[0].mxu0
    %v1240 = vadd.f32 %v535, %v1239
    %v1241 = vpop.f32.mrb[0].mxu0
    %1242 = vdwg.mxu0
    %v1243 = vadd.f32 %v493, %v1240
    %v1244 = vxor.u32 %v1243, 2147483648
    %v1245 = vmul.f32 %v1244, 1.442695
    %v1246 = vpow.pop %v1245
    %v1247 = vadd.f32 %v1246, 1.0
    %v1248 = vrcp.pop %v1247
    %v1249 = vmul.f32 1.0, %v1248
    %1251 = vrot.lane.b32.xlu0 %v1240, 64
    %v1252 = vpop.permute.xlu0 %1251
    %v1254 = vmul.f32 %v1249, %v1252
    %1256 = vrot.lane.b32.xlu0 %v1254, 64
    %v1257 = vpop.permute.xlu0 %1256
    %v1259 = vadd.f32 %v493, %v1257
    %v1260 = vtanh.pop %v1259
    %v1261 = vsub.f32 1.0, %v1249
    %1263 = vrot.lane.b32.xlu0 %v1260, 96
    %v1264 = vpop.permute.xlu0 %1263
    %v1266 = vmul.f32 %v1261, %v1264
    %v1267 = vmul.f32 %v1249, %v1058
    %v1268 = vadd.f32 %v1266, %v1267
    %v1270 = vsel %vm226, %v1167, 0
    %1272 = vmatprep.subr.mxu0 0.0
    %1273 = vmatpush1.msra.mxu0 %v526
    %1274 = vmatprep.subr.mxu0 0.0
    %1275 = vmatpush1.msra.mxu0 %v527
    %1276 = vmatprep.subr.mxu0 0.0
    %1277 = vmatpush1.msra.mxu0 %v528
    %1278 = vmatprep.subr.mxu0 0.0
    %1279 = vmatpush1.msra.mxu0 %v529
    %1280 = vmatprep.subr.mxu0 0.0
    %1281 = vmatpush1.msra.mxu0 0.0
    %1282 = vmatprep.subr.mxu0 0.0
    %1283 = vmatpush1.msra.mxu0 0.0
    %1284 = vmatprep.subr.mxu0 0.0
    %1285 = vmatpush1.msra.mxu0 0.0
    %1286 = vmatprep.subr.mxu0 0.0
    %1287 = vmatpush1.msra.mxu0 0.0
    %1288 = vmatprep.subr.mxu0 0.0
    %1289 = vmatpush1.msra.mxu0 0.0
    %1290 = vmatprep.subr.mxu0 0.0
    %1291 = vmatpush1.msra.mxu0 0.0
    %1292 = vmatprep.subr.mxu0 0.0
    %1293 = vmatpush1.msra.mxu0 0.0
    %1294 = vmatprep.subr.mxu0 0.0
    %1295 = vmatpush1.msra.mxu0 0.0
    %1296 = vmatprep.subr.mxu0 0.0
    %1297 = vmatpush1.msra.mxu0 0.0
    %1298 = vmatprep.subr.mxu0 0.0
    %1299 = vmatpush1.msra.mxu0 0.0
    %1300 = vmatprep.subr.mxu0 0.0
    %1301 = vmatpush1.msra.mxu0 0.0
    %1302 = vmatprep.subr.mxu0 0.0
    %1303 = vmatpush1.msra.mxu0 0.0
    %1304 = vmatprep.subr.mxu0 0.0
    %1305 = vmatpush1.msra.mxu0 0.0
    %1306 = vmatprep.subr.mxu0 0.0
    %1307 = vmatpush1.msra.mxu0 0.0
    %1308 = vmatprep.subr.mxu0 0.0
    %1309 = vmatpush1.msra.mxu0 0.0
    %1310 = vmatprep.subr.mxu0 0.0
    %1311 = vmatpush1.msra.mxu0 0.0
    %1312 = vmatprep.subr.mxu0 0.0
    %1313 = vmatpush1.msra.mxu0 0.0
    %1314 = vmatprep.subr.mxu0 0.0
    %1315 = vmatpush1.msra.mxu0 0.0
    %1316 = vmatprep.subr.mxu0 0.0
    %1317 = vmatpush1.msra.mxu0 0.0
    %1318 = vmatprep.subr.mxu0 0.0
    %1319 = vmatpush1.msra.mxu0 0.0
    %1320 = vmatprep.subr.mxu0 0.0
    %1321 = vmatpush1.msra.mxu0 0.0
    %1322 = vmatprep.subr.mxu0 0.0
    %1323 = vmatpush1.msra.mxu0 0.0
    %1324 = vmatprep.subr.mxu0 0.0
    %1325 = vmatpush1.msra.mxu0 0.0
    %1326 = vmatprep.subr.mxu0 0.0
    %1327 = vmatpush1.msra.mxu0 0.0
    %1328 = vmatprep.subr.mxu0 0.0
    %1329 = vmatpush1.msra.mxu0 0.0
    %1330 = vmatprep.subr.mxu0 0.0
    %1331 = vmatpush1.msra.mxu0 0.0
    %1332 = vmatprep.subr.mxu0 0.0
    %1333 = vmatpush1.msra.mxu0 0.0
    %1334 = vmatprep.subr.mxu0 0.0
    %1335 = vmatpush1.msra.mxu0 0.0
    %1336 = vmatprep.mubr.f32.mxu0 0.0
    %1337 = vmatmul.mubr.f32.gmra.mrb[0].mxu0 %v1270
    %v1338 = vpop.f32.mrb[0].mxu0
    %v1339 = vadd.f32 %v640, %v1338
    %v1340 = vpop.f32.mrb[0].mxu0
    %1341 = vdwg.mxu0
    %1343 = vrot.lane.b32.xlu0 %v1339, 96
    %v1344 = vpop.permute.xlu0 %1343
    %v1346 = vadd.f32 %v499, %v1344
    %v1347 = vxor.u32 %v1346, 2147483648
    %v1348 = vmul.f32 %v1347, 1.442695
    %v1349 = vpow.pop %v1348
    %v1350 = vadd.f32 %v1349, 1.0
    %v1351 = vrcp.pop %v1350
    %v1352 = vmul.f32 1.0, %v1351
    %v1353 = vadd.f32 %v501, %v1344
    %v1354 = vxor.u32 %v1353, 2147483648
    %v1355 = vmul.f32 %v1354, 1.442695
    %v1356 = vpow.pop %v1355
    %v1357 = vadd.f32 %v1356, 1.0
    %v1358 = vrcp.pop %v1357
    %v1359 = vmul.f32 1.0, %v1358
    %1360 = vrot.lane.b32.xlu0 %v1339, 32
    %v1361 = vpop.permute.xlu0 %1360
    %v1363 = vmul.f32 %v1352, %v1361
    %1365 = vrot.lane.b32.xlu0 %v1363, 64
    %v1366 = vpop.permute.xlu0 %1365
    %v1368 = vadd.f32 %v501, %v1366
    %v1369 = vtanh.pop %v1368
    %v1370 = vsub.f32 1.0, %v1359
    %1372 = vrot.lane.b32.xlu0 %v1369, 96
    %v1373 = vpop.permute.xlu0 %1372
    %v1375 = vmul.f32 %v1370, %v1373
    %v1376 = vmul.f32 %v1359, %v1167
    %v1377 = vadd.f32 %v1375, %v1376
    %1379 = vrot.lane.b32.xlu0 %v1268, 96
    %v1380 = vpop.permute.xlu0 %1379
    %v1381 = vsel %vm226, %v1380, 0
    %1383 = vmatprep.subr.mxu0 0.0
    %1384 = vmatpush1.msra.mxu0 %v521
    %1385 = vmatprep.subr.mxu0 0.0
    %1386 = vmatpush1.msra.mxu0 %v522
    %1387 = vmatprep.subr.mxu0 0.0
    %1388 = vmatpush1.msra.mxu0 %v523
    %1389 = vmatprep.subr.mxu0 0.0
    %1390 = vmatpush1.msra.mxu0 %v524
    %1391 = vmatprep.subr.mxu0 0.0
    %1392 = vmatpush1.msra.mxu0 0.0
    %1393 = vmatprep.subr.mxu0 0.0
    %1394 = vmatpush1.msra.mxu0 0.0
    %1395 = vmatprep.subr.mxu0 0.0
    %1396 = vmatpush1.msra.mxu0 0.0
    %1397 = vmatprep.subr.mxu0 0.0
    %1398 = vmatpush1.msra.mxu0 0.0
    %1399 = vmatprep.subr.mxu0 0.0
    %1400 = vmatpush1.msra.mxu0 0.0
    %1401 = vmatprep.subr.mxu0 0.0
    %1402 = vmatpush1.msra.mxu0 0.0
    %1403 = vmatprep.subr.mxu0 0.0
    %1404 = vmatpush1.msra.mxu0 0.0
    %1405 = vmatprep.subr.mxu0 0.0
    %1406 = vmatpush1.msra.mxu0 0.0
    %1407 = vmatprep.subr.mxu0 0.0
    %1408 = vmatpush1.msra.mxu0 0.0
    %1409 = vmatprep.subr.mxu0 0.0
    %1410 = vmatpush1.msra.mxu0 0.0
    %1411 = vmatprep.subr.mxu0 0.0
    %1412 = vmatpush1.msra.mxu0 0.0
    %1413 = vmatprep.subr.mxu0 0.0
    %1414 = vmatpush1.msra.mxu0 0.0
    %1415 = vmatprep.subr.mxu0 0.0
    %1416 = vmatpush1.msra.mxu0 0.0
    %1417 = vmatprep.subr.mxu0 0.0
    %1418 = vmatpush1.msra.mxu0 0.0
    %1419 = vmatprep.subr.mxu0 0.0
    %1420 = vmatpush1.msra.mxu0 0.0
    %1421 = vmatprep.subr.mxu0 0.0
    %1422 = vmatpush1.msra.mxu0 0.0
    %1423 = vmatprep.subr.mxu0 0.0
    %1424 = vmatpush1.msra.mxu0 0.0
    %1425 = vmatprep.subr.mxu0 0.0
    %1426 = vmatpush1.msra.mxu0 0.0
    %1427 = vmatprep.subr.mxu0 0.0
    %1428 = vmatpush1.msra.mxu0 0.0
    %1429 = vmatprep.subr.mxu0 0.0
    %1430 = vmatpush1.msra.mxu0 0.0
    %1431 = vmatprep.subr.mxu0 0.0
    %1432 = vmatpush1.msra.mxu0 0.0
    %1433 = vmatprep.subr.mxu0 0.0
    %1434 = vmatpush1.msra.mxu0 0.0
    %1435 = vmatprep.subr.mxu0 0.0
    %1436 = vmatpush1.msra.mxu0 0.0
    %1437 = vmatprep.subr.mxu0 0.0
    %1438 = vmatpush1.msra.mxu0 0.0
    %1439 = vmatprep.subr.mxu0 0.0
    %1440 = vmatpush1.msra.mxu0 0.0
    %1441 = vmatprep.subr.mxu0 0.0
    %1442 = vmatpush1.msra.mxu0 0.0
    %1443 = vmatprep.subr.mxu0 0.0
    %1444 = vmatpush1.msra.mxu0 0.0
    %1445 = vmatprep.subr.mxu0 0.0
    %1446 = vmatpush1.msra.mxu0 0.0
    %1447 = vmatprep.mubr.f32.mxu0 0.0
    %1448 = vmatmul.mubr.f32.gmra.mrb[0].mxu0 %v1381
    %v1449 = vpop.f32.mrb[0].mxu0
    %v1450 = vadd.f32 %v535, %v1449
    %v1451 = vpop.f32.mrb[0].mxu0
    %1452 = vdwg.mxu0
    %v1453 = vadd.f32 %v499, %v1450
    %v1454 = vxor.u32 %v1453, 2147483648
    %v1455 = vmul.f32 %v1454, 1.442695
    %v1456 = vpow.pop %v1455
    %v1457 = vadd.f32 %v1456, 1.0
    %v1458 = vrcp.pop %v1457
    %v1459 = vmul.f32 1.0, %v1458
    %1461 = vrot.lane.b32.xlu0 %v1450, 64
    %v1462 = vpop.permute.xlu0 %1461
    %v1464 = vmul.f32 %v1459, %v1462
    %1466 = vrot.lane.b32.xlu0 %v1464, 64
    %v1467 = vpop.permute.xlu0 %1466
    %v1469 = vadd.f32 %v499, %v1467
    %v1470 = vtanh.pop %v1469
    %v1471 = vsub.f32 1.0, %v1459
    %1473 = vrot.lane.b32.xlu0 %v1470, 96
    %v1474 = vpop.permute.xlu0 %1473
    %v1476 = vmul.f32 %v1471, %v1474
    %v1477 = vmul.f32 %v1459, %v1268
    %v1478 = vadd.f32 %v1476, %v1477
    %v1480 = vsel %vm226, %v1377, 0
    %1482 = vmatprep.subr.mxu0 0.0
    %1483 = vmatpush1.msra.mxu0 %v526
    %1484 = vmatprep.subr.mxu0 0.0
    %1485 = vmatpush1.msra.mxu0 %v527
    %1486 = vmatprep.subr.mxu0 0.0
    %1487 = vmatpush1.msra.mxu0 %v528
    %1488 = vmatprep.subr.mxu0 0.0
    %1489 = vmatpush1.msra.mxu0 %v529
    %1490 = vmatprep.subr.mxu0 0.0
    %1491 = vmatpush1.msra.mxu0 0.0
    %1492 = vmatprep.subr.mxu0 0.0
    %1493 = vmatpush1.msra.mxu0 0.0
    %1494 = vmatprep.subr.mxu0 0.0
    %1495 = vmatpush1.msra.mxu0 0.0
    %1496 = vmatprep.subr.mxu0 0.0
    %1497 = vmatpush1.msra.mxu0 0.0
    %1498 = vmatprep.subr.mxu0 0.0
    %1499 = vmatpush1.msra.mxu0 0.0
    %1500 = vmatprep.subr.mxu0 0.0
    %1501 = vmatpush1.msra.mxu0 0.0
    %1502 = vmatprep.subr.mxu0 0.0
    %1503 = vmatpush1.msra.mxu0 0.0
    %1504 = vmatprep.subr.mxu0 0.0
    %1505 = vmatpush1.msra.mxu0 0.0
    %1506 = vmatprep.subr.mxu0 0.0
    %1507 = vmatpush1.msra.mxu0 0.0
    %1508 = vmatprep.subr.mxu0 0.0
    %1509 = vmatpush1.msra.mxu0 0.0
    %1510 = vmatprep.subr.mxu0 0.0
    %1511 = vmatpush1.msra.mxu0 0.0
    %1512 = vmatprep.subr.mxu0 0.0
    %1513 = vmatpush1.msra.mxu0 0.0
    %1514 = vmatprep.subr.mxu0 0.0
    %1515 = vmatpush1.msra.mxu0 0.0
    %1516 = vmatprep.subr.mxu0 0.0
    %1517 = vmatpush1.msra.mxu0 0.0
    %1518 = vmatprep.subr.mxu0 0.0
    %1519 = vmatpush1.msra.mxu0 0.0
    %1520 = vmatprep.subr.mxu0 0.0
    %1521 = vmatpush1.msra.mxu0 0.0
    %1522 = vmatprep.subr.mxu0 0.0
    %1523 = vmatpush1.msra.mxu0 0.0
    %1524 = vmatprep.subr.mxu0 0.0
    %1525 = vmatpush1.msra.mxu0 0.0
    %1526 = vmatprep.subr.mxu0 0.0
    %1527 = vmatpush1.msra.mxu0 0.0
    %1528 = vmatprep.subr.mxu0 0.0
    %1529 = vmatpush1.msra.mxu0 0.0
    %1530 = vmatprep.subr.mxu0 0.0
    %1531 = vmatpush1.msra.mxu0 0.0
    %1532 = vmatprep.subr.mxu0 0.0
    %1533 = vmatpush1.msra.mxu0 0.0
    %1534 = vmatprep.subr.mxu0 0.0
    %1535 = vmatpush1.msra.mxu0 0.0
    %1536 = vmatprep.subr.mxu0 0.0
    %1537 = vmatpush1.msra.mxu0 0.0
    %1538 = vmatprep.subr.mxu0 0.0
    %1539 = vmatpush1.msra.mxu0 0.0
    %1540 = vmatprep.subr.mxu0 0.0
    %1541 = vmatpush1.msra.mxu0 0.0
    %1542 = vmatprep.subr.mxu0 0.0
    %1543 = vmatpush1.msra.mxu0 0.0
    %1544 = vmatprep.subr.mxu0 0.0
    %1545 = vmatpush1.msra.mxu0 0.0
    %1546 = vmatprep.mubr.f32.mxu0 0.0
    %1547 = vmatmul.mubr.f32.gmra.mrb[0].mxu0 %v1480
    %v1548 = vpop.f32.mrb[0].mxu0
    %v1549 = vadd.f32 %v640, %v1548
    %v1550 = vpop.f32.mrb[0].mxu0
    %1551 = vdwg.mxu0
    %1553 = vrot.lane.b32.xlu0 %v1549, 96
    %v1554 = vpop.permute.xlu0 %1553
    %v1556 = vadd.f32 %v493, %v1554
    %v1557 = vxor.u32 %v1556, 2147483648
    %v1558 = vmul.f32 %v1557, 1.442695
    %v1559 = vpow.pop %v1558
    %v1560 = vadd.f32 %v1559, 1.0
    %v1561 = vrcp.pop %v1560
    %v1562 = vmul.f32 1.0, %v1561
    %v1563 = vadd.f32 %v495, %v1554
    %v1564 = vxor.u32 %v1563, 2147483648
    %v1565 = vmul.f32 %v1564, 1.442695
    %v1566 = vpow.pop %v1565
    %v1567 = vadd.f32 %v1566, 1.0
    %v1568 = vrcp.pop %v1567
    %v1569 = vmul.f32 1.0, %v1568
    %1570 = vrot.lane.b32.xlu0 %v1549, 32
    %v1571 = vpop.permute.xlu0 %1570
    %v1573 = vmul.f32 %v1562, %v1571
    %1575 = vrot.lane.b32.xlu0 %v1573, 64
    %v1576 = vpop.permute.xlu0 %1575
    %v1578 = vadd.f32 %v495, %v1576
    %v1579 = vtanh.pop %v1578
    %v1580 = vsub.f32 1.0, %v1569
    %1582 = vrot.lane.b32.xlu0 %v1579, 96
    %v1583 = vpop.permute.xlu0 %1582
    %v1585 = vmul.f32 %v1580, %v1583
    %v1586 = vmul.f32 %v1569, %v1377
    %v1587 = vadd.f32 %v1585, %v1586
    %1589 = vrot.lane.b32.xlu0 %v1478, 96
    %v1590 = vpop.permute.xlu0 %1589
    %v1591 = vsel %vm226, %v1590, 0
    %1593 = vmatprep.subr.mxu0 0.0
    %1594 = vmatpush1.msra.mxu0 %v521
    %1595 = vmatprep.subr.mxu0 0.0
    %1596 = vmatpush1.msra.mxu0 %v522
    %1597 = vmatprep.subr.mxu0 0.0
    %1598 = vmatpush1.msra.mxu0 %v523
    %1599 = vmatprep.subr.mxu0 0.0
    %1600 = vmatpush1.msra.mxu0 %v524
    %1601 = vmatprep.subr.mxu0 0.0
    %1602 = vmatpush1.msra.mxu0 0.0
    %1603 = vmatprep.subr.mxu0 0.0
    %1604 = vmatpush1.msra.mxu0 0.0
    %1605 = vmatprep.subr.mxu0 0.0
    %1606 = vmatpush1.msra.mxu0 0.0
    %1607 = vmatprep.subr.mxu0 0.0
    %1608 = vmatpush1.msra.mxu0 0.0
    %1609 = vmatprep.subr.mxu0 0.0
    %1610 = vmatpush1.msra.mxu0 0.0
    %1611 = vmatprep.subr.mxu0 0.0
    %1612 = vmatpush1.msra.mxu0 0.0
    %1613 = vmatprep.subr.mxu0 0.0
    %1614 = vmatpush1.msra.mxu0 0.0
    %1615 = vmatprep.subr.mxu0 0.0
    %1616 = vmatpush1.msra.mxu0 0.0
    %1617 = vmatprep.subr.mxu0 0.0
    %1618 = vmatpush1.msra.mxu0 0.0
    %1619 = vmatprep.subr.mxu0 0.0
    %1620 = vmatpush1.msra.mxu0 0.0
    %1621 = vmatprep.subr.mxu0 0.0
    %1622 = vmatpush1.msra.mxu0 0.0
    %1623 = vmatprep.subr.mxu0 0.0
    %1624 = vmatpush1.msra.mxu0 0.0
    %1625 = vmatprep.subr.mxu0 0.0
    %1626 = vmatpush1.msra.mxu0 0.0
    %1627 = vmatprep.subr.mxu0 0.0
    %1628 = vmatpush1.msra.mxu0 0.0
    %1629 = vmatprep.subr.mxu0 0.0
    %1630 = vmatpush1.msra.mxu0 0.0
    %1631 = vmatprep.subr.mxu0 0.0
    %1632 = vmatpush1.msra.mxu0 0.0
    %1633 = vmatprep.subr.mxu0 0.0
    %1634 = vmatpush1.msra.mxu0 0.0
    %1635 = vmatprep.subr.mxu0 0.0
    %1636 = vmatpush1.msra.mxu0 0.0
    %1637 = vmatprep.subr.mxu0 0.0
    %1638 = vmatpush1.msra.mxu0 0.0
    %1639 = vmatprep.subr.mxu0 0.0
    %1640 = vmatpush1.msra.mxu0 0.0
    %1641 = vmatprep.subr.mxu0 0.0
    %1642 = vmatpush1.msra.mxu0 0.0
    %1643 = vmatprep.subr.mxu0 0.0
    %1644 = vmatpush1.msra.mxu0 0.0
    %1645 = vmatprep.subr.mxu0 0.0
    %1646 = vmatpush1.msra.mxu0 0.0
    %1647 = vmatprep.subr.mxu0 0.0
    %1648 = vmatpush1.msra.mxu0 0.0
    %1649 = vmatprep.subr.mxu0 0.0
    %1650 = vmatpush1.msra.mxu0 0.0
    %1651 = vmatprep.subr.mxu0 0.0
    %1652 = vmatpush1.msra.mxu0 0.0
    %1653 = vmatprep.subr.mxu0 0.0
    %1654 = vmatpush1.msra.mxu0 0.0
    %1655 = vmatprep.subr.mxu0 0.0
    %1656 = vmatpush1.msra.mxu0 0.0
    %1657 = vmatprep.mubr.f32.mxu0 0.0
    %1658 = vmatmul.mubr.f32.gmra.mrb[0].mxu0 %v1591
    %v1659 = vpop.f32.mrb[0].mxu0
    %v1660 = vadd.f32 %v535, %v1659
    %v1661 = vpop.f32.mrb[0].mxu0
    %1662 = vdwg.mxu0
    %v1663 = vadd.f32 %v505, %v1660
    %v1664 = vxor.u32 %v1663, 2147483648
    %v1665 = vmul.f32 %v1664, 1.442695
    %v1666 = vpow.pop %v1665
    %v1667 = vadd.f32 %v1666, 1.0
    %v1668 = vrcp.pop %v1667
    %v1669 = vmul.f32 1.0, %v1668
    %1671 = vrot.lane.b32.xlu0 %v1660, 64
    %v1672 = vpop.permute.xlu0 %1671
    %v1674 = vmul.f32 %v1669, %v1672
    %1676 = vrot.lane.b32.xlu0 %v1674, 64
    %v1677 = vpop.permute.xlu0 %1676
    %v1679 = vadd.f32 %v505, %v1677
    %v1680 = vtanh.pop %v1679
    %v1681 = vsub.f32 1.0, %v1669
    %1683 = vrot.lane.b32.xlu0 %v1680, 96
    %v1684 = vpop.permute.xlu0 %1683
    %v1686 = vmul.f32 %v1681, %v1684
    %v1687 = vmul.f32 %v1669, %v1478
    %v1688 = vadd.f32 %v1686, %v1687
    %v1690 = vsel %vm226, %v1587, 0
    %1692 = vmatprep.subr.mxu0 0.0
    %1693 = vmatpush1.msra.mxu0 %v526
    %1694 = vmatprep.subr.mxu0 0.0
    %1695 = vmatpush1.msra.mxu0 %v527
    %1696 = vmatprep.subr.mxu0 0.0
    %1697 = vmatpush1.msra.mxu0 %v528
    %1698 = vmatprep.subr.mxu0 0.0
    %1699 = vmatpush1.msra.mxu0 %v529
    %1700 = vmatprep.subr.mxu0 0.0
    %1701 = vmatpush1.msra.mxu0 0.0
    %1702 = vmatprep.subr.mxu0 0.0
    %1703 = vmatpush1.msra.mxu0 0.0
    %1704 = vmatprep.subr.mxu0 0.0
    %1705 = vmatpush1.msra.mxu0 0.0
    %1706 = vmatprep.subr.mxu0 0.0
    %1707 = vmatpush1.msra.mxu0 0.0
    %1708 = vmatprep.subr.mxu0 0.0
    %1709 = vmatpush1.msra.mxu0 0.0
    %1710 = vmatprep.subr.mxu0 0.0
    %1711 = vmatpush1.msra.mxu0 0.0
    %1712 = vmatprep.subr.mxu0 0.0
    %1713 = vmatpush1.msra.mxu0 0.0
    %1714 = vmatprep.subr.mxu0 0.0
    %1715 = vmatpush1.msra.mxu0 0.0
    %1716 = vmatprep.subr.mxu0 0.0
    %1717 = vmatpush1.msra.mxu0 0.0
    %1718 = vmatprep.subr.mxu0 0.0
    %1719 = vmatpush1.msra.mxu0 0.0
    %1720 = vmatprep.subr.mxu0 0.0
    %1721 = vmatpush1.msra.mxu0 0.0
    %1722 = vmatprep.subr.mxu0 0.0
    %1723 = vmatpush1.msra.mxu0 0.0
    %1724 = vmatprep.subr.mxu0 0.0
    %1725 = vmatpush1.msra.mxu0 0.0
    %1726 = vmatprep.subr.mxu0 0.0
    %1727 = vmatpush1.msra.mxu0 0.0
    %1728 = vmatprep.subr.mxu0 0.0
    %1729 = vmatpush1.msra.mxu0 0.0
    %1730 = vmatprep.subr.mxu0 0.0
    %1731 = vmatpush1.msra.mxu0 0.0
    %1732 = vmatprep.subr.mxu0 0.0
    %1733 = vmatpush1.msra.mxu0 0.0
    %1734 = vmatprep.subr.mxu0 0.0
    %1735 = vmatpush1.msra.mxu0 0.0
    %1736 = vmatprep.subr.mxu0 0.0
    %1737 = vmatpush1.msra.mxu0 0.0
    %1738 = vmatprep.subr.mxu0 0.0
    %1739 = vmatpush1.msra.mxu0 0.0
    %1740 = vmatprep.subr.mxu0 0.0
    %1741 = vmatpush1.msra.mxu0 0.0
    %1742 = vmatprep.subr.mxu0 0.0
    %1743 = vmatpush1.msra.mxu0 0.0
    %1744 = vmatprep.subr.mxu0 0.0
    %1745 = vmatpush1.msra.mxu0 0.0
    %1746 = vmatprep.subr.mxu0 0.0
    %1747 = vmatpush1.msra.mxu0 0.0
    %1748 = vmatprep.subr.mxu0 0.0
    %1749 = vmatpush1.msra.mxu0 0.0
    %1750 = vmatprep.subr.mxu0 0.0
    %1751 = vmatpush1.msra.mxu0 0.0
    %1752 = vmatprep.subr.mxu0 0.0
    %1753 = vmatpush1.msra.mxu0 0.0
    %1754 = vmatprep.subr.mxu0 0.0
    %1755 = vmatpush1.msra.mxu0 0.0
    %1756 = vmatprep.mubr.f32.mxu0 0.0
    %1757 = vmatmul.mubr.f32.gmra.mrb[0].mxu0 %v1690
    %v1758 = vpop.f32.mrb[0].mxu0
    %v1759 = vadd.f32 %v640, %v1758
    %v1760 = vpop.f32.mrb[0].mxu0
    %1761 = vdwg.mxu0
    %1763 = vrot.lane.b32.xlu0 %v1759, 96
    %v1764 = vpop.permute.xlu0 %1763
    %v1766 = vadd.f32 %v487, %v1764
    %v1767 = vxor.u32 %v1766, 2147483648
    %v1768 = vmul.f32 %v1767, 1.442695
    %v1769 = vpow.pop %v1768
    %v1770 = vadd.f32 %v1769, 1.0
    %v1771 = vrcp.pop %v1770
    %v1772 = vmul.f32 1.0, %v1771
    %v1773 = vadd.f32 %v489, %v1764
    %v1774 = vxor.u32 %v1773, 2147483648
    %v1775 = vmul.f32 %v1774, 1.442695
    %v1776 = vpow.pop %v1775
    %v1777 = vadd.f32 %v1776, 1.0
    %v1778 = vrcp.pop %v1777
    %v1779 = vmul.f32 1.0, %v1778
    %1780 = vrot.lane.b32.xlu0 %v1759, 32
    %v1781 = vpop.permute.xlu0 %1780
    %v1783 = vmul.f32 %v1772, %v1781
    %1785 = vrot.lane.b32.xlu0 %v1783, 64
    %v1786 = vpop.permute.xlu0 %1785
    %v1788 = vadd.f32 %v489, %v1786
    %v1789 = vtanh.pop %v1788
    %v1790 = vsub.f32 1.0, %v1779
    %1792 = vrot.lane.b32.xlu0 %v1789, 96
    %v1793 = vpop.permute.xlu0 %1792
    %v1795 = vmul.f32 %v1790, %v1793
    %v1796 = vmul.f32 %v1779, %v1587
    %v1797 = vadd.f32 %v1795, %v1796
    %1799 = vrot.lane.b32.xlu0 %v1688, 96
    %v1800 = vpop.permute.xlu0 %1799
    %v1801 = vsel %vm226, %v1800, 0
    %1803 = vmatprep.subr.mxu0 0.0
    %1804 = vmatpush1.msra.mxu0 %v521
    %1805 = vmatprep.subr.mxu0 0.0
    %1806 = vmatpush1.msra.mxu0 %v522
    %1807 = vmatprep.subr.mxu0 0.0
    %1808 = vmatpush1.msra.mxu0 %v523
    %1809 = vmatprep.subr.mxu0 0.0
    %1810 = vmatpush1.msra.mxu0 %v524
    %1811 = vmatprep.subr.mxu0 0.0
    %1812 = vmatpush1.msra.mxu0 0.0
    %1813 = vmatprep.subr.mxu0 0.0
    %1814 = vmatpush1.msra.mxu0 0.0
    %1815 = vmatprep.subr.mxu0 0.0
    %1816 = vmatpush1.msra.mxu0 0.0
    %1817 = vmatprep.subr.mxu0 0.0
    %1818 = vmatpush1.msra.mxu0 0.0
    %1819 = vmatprep.subr.mxu0 0.0
    %1820 = vmatpush1.msra.mxu0 0.0
    %1821 = vmatprep.subr.mxu0 0.0
    %1822 = vmatpush1.msra.mxu0 0.0
    %1823 = vmatprep.subr.mxu0 0.0
    %1824 = vmatpush1.msra.mxu0 0.0
    %1825 = vmatprep.subr.mxu0 0.0
    %1826 = vmatpush1.msra.mxu0 0.0
    %1827 = vmatprep.subr.mxu0 0.0
    %1828 = vmatpush1.msra.mxu0 0.0
    %1829 = vmatprep.subr.mxu0 0.0
    %1830 = vmatpush1.msra.mxu0 0.0
    %1831 = vmatprep.subr.mxu0 0.0
    %1832 = vmatpush1.msra.mxu0 0.0
    %1833 = vmatprep.subr.mxu0 0.0
    %1834 = vmatpush1.msra.mxu0 0.0
    %1835 = vmatprep.subr.mxu0 0.0
    %1836 = vmatpush1.msra.mxu0 0.0
    %1837 = vmatprep.subr.mxu0 0.0
    %1838 = vmatpush1.msra.mxu0 0.0
    %1839 = vmatprep.subr.mxu0 0.0
    %1840 = vmatpush1.msra.mxu0 0.0
    %1841 = vmatprep.subr.mxu0 0.0
    %1842 = vmatpush1.msra.mxu0 0.0
    %1843 = vmatprep.subr.mxu0 0.0
    %1844 = vmatpush1.msra.mxu0 0.0
    %1845 = vmatprep.subr.mxu0 0.0
    %1846 = vmatpush1.msra.mxu0 0.0
    %1847 = vmatprep.subr.mxu0 0.0
    %1848 = vmatpush1.msra.mxu0 0.0
    %1849 = vmatprep.subr.mxu0 0.0
    %1850 = vmatpush1.msra.mxu0 0.0
    %1851 = vmatprep.subr.mxu0 0.0
    %1852 = vmatpush1.msra.mxu0 0.0
    %1853 = vmatprep.subr.mxu0 0.0
    %1854 = vmatpush1.msra.mxu0 0.0
    %1855 = vmatprep.subr.mxu0 0.0
    %1856 = vmatpush1.msra.mxu0 0.0
    %1857 = vmatprep.subr.mxu0 0.0
    %1858 = vmatpush1.msra.mxu0 0.0
    %1859 = vmatprep.subr.mxu0 0.0
    %1860 = vmatpush1.msra.mxu0 0.0
    %1861 = vmatprep.subr.mxu0 0.0
    %1862 = vmatpush1.msra.mxu0 0.0
    %1863 = vmatprep.subr.mxu0 0.0
    %1864 = vmatpush1.msra.mxu0 0.0
    %1865 = vmatprep.subr.mxu0 0.0
    %1866 = vmatpush1.msra.mxu0 0.0
    %1867 = vmatprep.mubr.f32.mxu0 0.0
    %1868 = vmatmul.mubr.f32.gmra.mrb[0].mxu0 %v1801
    %v1869 = vpop.f32.mrb[0].mxu0
    %v1870 = vadd.f32 %v535, %v1869
    %v1871 = vpop.f32.mrb[0].mxu0
    %1872 = vdwg.mxu0
    %v1873 = vadd.f32 %v511, %v1870
    %v1874 = vxor.u32 %v1873, 2147483648
    %v1875 = vmul.f32 %v1874, 1.442695
    %v1876 = vpow.pop %v1875
    %v1877 = vadd.f32 %v1876, 1.0
    %v1878 = vrcp.pop %v1877
    %v1879 = vmul.f32 1.0, %v1878
    %1881 = vrot.lane.b32.xlu0 %v1870, 64
    %v1882 = vpop.permute.xlu0 %1881
    %v1884 = vmul.f32 %v1879, %v1882
    %1886 = vrot.lane.b32.xlu0 %v1884, 64
    %v1887 = vpop.permute.xlu0 %1886
    %v1889 = vadd.f32 %v511, %v1887
    %v1890 = vtanh.pop %v1889
    %v1891 = vsub.f32 1.0, %v1879
    %1893 = vrot.lane.b32.xlu0 %v1890, 96
    %v1894 = vpop.permute.xlu0 %1893
    %v1896 = vmul.f32 %v1891, %v1894
    %v1897 = vmul.f32 %v1879, %v1688
    %v1898 = vadd.f32 %v1896, %v1897
    %v1900 = vsel %vm226, %v1797, 0
    %1902 = vmatprep.subr.mxu0 0.0
    %1903 = vmatpush1.msra.mxu0 %v526
    %1904 = vmatprep.subr.mxu0 0.0
    %1905 = vmatpush1.msra.mxu0 %v527
    %1906 = vmatprep.subr.mxu0 0.0
    %1907 = vmatpush1.msra.mxu0 %v528
    %1908 = vmatprep.subr.mxu0 0.0
    %1909 = vmatpush1.msra.mxu0 %v529
    %1910 = vmatprep.subr.mxu0 0.0
    %1911 = vmatpush1.msra.mxu0 0.0
    %1912 = vmatprep.subr.mxu0 0.0
    %1913 = vmatpush1.msra.mxu0 0.0
    %1914 = vmatprep.subr.mxu0 0.0
    %1915 = vmatpush1.msra.mxu0 0.0
    %1916 = vmatprep.subr.mxu0 0.0
    %1917 = vmatpush1.msra.mxu0 0.0
    %1918 = vmatprep.subr.mxu0 0.0
    %1919 = vmatpush1.msra.mxu0 0.0
    %1920 = vmatprep.subr.mxu0 0.0
    %1921 = vmatpush1.msra.mxu0 0.0
    %1922 = vmatprep.subr.mxu0 0.0
    %1923 = vmatpush1.msra.mxu0 0.0
    %1924 = vmatprep.subr.mxu0 0.0
    %1925 = vmatpush1.msra.mxu0 0.0
    %1926 = vmatprep.subr.mxu0 0.0
    %1927 = vmatpush1.msra.mxu0 0.0
    %1928 = vmatprep.subr.mxu0 0.0
    %1929 = vmatpush1.msra.mxu0 0.0
    %1930 = vmatprep.subr.mxu0 0.0
    %1931 = vmatpush1.msra.mxu0 0.0
    %1932 = vmatprep.subr.mxu0 0.0
    %1933 = vmatpush1.msra.mxu0 0.0
    %1934 = vmatprep.subr.mxu0 0.0
    %1935 = vmatpush1.msra.mxu0 0.0
    %1936 = vmatprep.subr.mxu0 0.0
    %1937 = vmatpush1.msra.mxu0 0.0
    %1938 = vmatprep.subr.mxu0 0.0
    %1939 = vmatpush1.msra.mxu0 0.0
    %1940 = vmatprep.subr.mxu0 0.0
    %1941 = vmatpush1.msra.mxu0 0.0
    %1942 = vmatprep.subr.mxu0 0.0
    %1943 = vmatpush1.msra.mxu0 0.0
    %1944 = vmatprep.subr.mxu0 0.0
    %1945 = vmatpush1.msra.mxu0 0.0
    %1946 = vmatprep.subr.mxu0 0.0
    %1947 = vmatpush1.msra.mxu0 0.0
    %1948 = vmatprep.subr.mxu0 0.0
    %1949 = vmatpush1.msra.mxu0 0.0
    %1950 = vmatprep.subr.mxu0 0.0
    %1951 = vmatpush1.msra.mxu0 0.0
    %1952 = vmatprep.subr.mxu0 0.0
    %1953 = vmatpush1.msra.mxu0 0.0
    %1954 = vmatprep.subr.mxu0 0.0
    %1955 = vmatpush1.msra.mxu0 0.0
    %1956 = vmatprep.subr.mxu0 0.0
    %1957 = vmatpush1.msra.mxu0 0.0
    %1958 = vmatprep.subr.mxu0 0.0
    %1959 = vmatpush1.msra.mxu0 0.0
    %1960 = vmatprep.subr.mxu0 0.0
    %1961 = vmatpush1.msra.mxu0 0.0
    %1962 = vmatprep.subr.mxu0 0.0
    %1963 = vmatpush1.msra.mxu0 0.0
    %1964 = vmatprep.subr.mxu0 0.0
    %1965 = vmatpush1.msra.mxu0 0.0
    %1966 = vmatprep.mubr.f32.mxu0 0.0
    %1967 = vmatmul.mubr.f32.gmra.mrb[0].mxu0 %v1900
    %v1968 = vpop.f32.mrb[0].mxu0
    %v1969 = vadd.f32 %v640, %v1968
    %v1970 = vpop.f32.mrb[0].mxu0
    %1971 = vdwg.mxu0
    %1973 = vrot.lane.b32.xlu0 %v1969, 96
    %v1974 = vpop.permute.xlu0 %1973
    %v1976 = vadd.f32 %v481, %v1974
    %v1977 = vxor.u32 %v1976, 2147483648
    %v1978 = vmul.f32 %v1977, 1.442695
    %v1979 = vpow.pop %v1978
    %v1980 = vadd.f32 %v1979, 1.0
    %v1981 = vrcp.pop %v1980
    %v1982 = vmul.f32 1.0, %v1981
    %v1983 = vadd.f32 %v483, %v1974
    %v1984 = vxor.u32 %v1983, 2147483648
    %v1985 = vmul.f32 %v1984, 1.442695
    %v1986 = vpow.pop %v1985
    %v1987 = vadd.f32 %v1986, 1.0
    %v1988 = vrcp.pop %v1987
    %v1989 = vmul.f32 1.0, %v1988
    %1990 = vrot.lane.b32.xlu0 %v1969, 32
    %v1991 = vpop.permute.xlu0 %1990
    %v1993 = vmul.f32 %v1982, %v1991
    %1995 = vrot.lane.b32.xlu0 %v1993, 64
    %v1996 = vpop.permute.xlu0 %1995
    %v1998 = vadd.f32 %v483, %v1996
    %v1999 = vtanh.pop %v1998
    %v2000 = vsub.f32 1.0, %v1989
    %2002 = vrot.lane.b32.xlu0 %v1999, 96
    %v2003 = vpop.permute.xlu0 %2002
    %v2005 = vmul.f32 %v2000, %v2003
    %v2006 = vmul.f32 %v1989, %v1797
    %v2007 = vadd.f32 %v2005, %v2006
    %2009 = vrot.lane.b32.xlu0 %v1898, 96
    %v2010 = vpop.permute.xlu0 %2009
    %v2011 = vsel %vm226, %v2010, 0
    %2013 = vmatprep.subr.mxu0 0.0
    %2014 = vmatpush1.msra.mxu0 %v521
    %2015 = vmatprep.subr.mxu0 0.0
    %2016 = vmatpush1.msra.mxu0 %v522
    %2017 = vmatprep.subr.mxu0 0.0
    %2018 = vmatpush1.msra.mxu0 %v523
    %2019 = vmatprep.subr.mxu0 0.0
    %2020 = vmatpush1.msra.mxu0 %v524
    %2021 = vmatprep.subr.mxu0 0.0
    %2022 = vmatpush1.msra.mxu0 0.0
    %2023 = vmatprep.subr.mxu0 0.0
    %2024 = vmatpush1.msra.mxu0 0.0
    %2025 = vmatprep.subr.mxu0 0.0
    %2026 = vmatpush1.msra.mxu0 0.0
    %2027 = vmatprep.subr.mxu0 0.0
    %2028 = vmatpush1.msra.mxu0 0.0
    %2029 = vmatprep.subr.mxu0 0.0
    %2030 = vmatpush1.msra.mxu0 0.0
    %2031 = vmatprep.subr.mxu0 0.0
    %2032 = vmatpush1.msra.mxu0 0.0
    %2033 = vmatprep.subr.mxu0 0.0
    %2034 = vmatpush1.msra.mxu0 0.0
    %2035 = vmatprep.subr.mxu0 0.0
    %2036 = vmatpush1.msra.mxu0 0.0
    %2037 = vmatprep.subr.mxu0 0.0
    %2038 = vmatpush1.msra.mxu0 0.0
    %2039 = vmatprep.subr.mxu0 0.0
    %2040 = vmatpush1.msra.mxu0 0.0
    %2041 = vmatprep.subr.mxu0 0.0
    %2042 = vmatpush1.msra.mxu0 0.0
    %2043 = vmatprep.subr.mxu0 0.0
    %2044 = vmatpush1.msra.mxu0 0.0
    %2045 = vmatprep.subr.mxu0 0.0
    %2046 = vmatpush1.msra.mxu0 0.0
    %2047 = vmatprep.subr.mxu0 0.0
    %2048 = vmatpush1.msra.mxu0 0.0
    %2049 = vmatprep.subr.mxu0 0.0
    %2050 = vmatpush1.msra.mxu0 0.0
    %2051 = vmatprep.subr.mxu0 0.0
    %2052 = vmatpush1.msra.mxu0 0.0
    %2053 = vmatprep.subr.mxu0 0.0
    %2054 = vmatpush1.msra.mxu0 0.0
    %2055 = vmatprep.subr.mxu0 0.0
    %2056 = vmatpush1.msra.mxu0 0.0
    %2057 = vmatprep.subr.mxu0 0.0
    %2058 = vmatpush1.msra.mxu0 0.0
    %2059 = vmatprep.subr.mxu0 0.0
    %2060 = vmatpush1.msra.mxu0 0.0
    %2061 = vmatprep.subr.mxu0 0.0
    %2062 = vmatpush1.msra.mxu0 0.0
    %2063 = vmatprep.subr.mxu0 0.0
    %2064 = vmatpush1.msra.mxu0 0.0
    %2065 = vmatprep.subr.mxu0 0.0
    %2066 = vmatpush1.msra.mxu0 0.0
    %2067 = vmatprep.subr.mxu0 0.0
    %2068 = vmatpush1.msra.mxu0 0.0
    %2069 = vmatprep.subr.mxu0 0.0
    %2070 = vmatpush1.msra.mxu0 0.0
    %2071 = vmatprep.subr.mxu0 0.0
    %2072 = vmatpush1.msra.mxu0 0.0
    %2073 = vmatprep.subr.mxu0 0.0
    %2074 = vmatpush1.msra.mxu0 0.0
    %2075 = vmatprep.subr.mxu0 0.0
    %2076 = vmatpush1.msra.mxu0 0.0
    %2077 = vmatprep.mubr.f32.mxu0 0.0
    %2078 = vmatmul.mubr.f32.gmra.mrb[0].mxu0 %v2011
    %v2079 = vpop.f32.mrb[0].mxu0
    %v2080 = vadd.f32 %v535, %v2079
    %v2081 = vpop.f32.mrb[0].mxu0
    %2082 = vdwg.mxu0
    %v2083 = vadd.f32 %v517, %v2080
    %v2084 = vxor.u32 %v2083, 2147483648
    %v2085 = vmul.f32 %v2084, 1.442695
    %v2086 = vpow.pop %v2085
    %v2087 = vadd.f32 %v2086, 1.0
    %v2088 = vrcp.pop %v2087
    %v2089 = vmul.f32 1.0, %v2088
    %2091 = vrot.lane.b32.xlu0 %v2080, 64
    %v2092 = vpop.permute.xlu0 %2091
    %v2094 = vmul.f32 %v2089, %v2092
    %2096 = vrot.lane.b32.xlu0 %v2094, 64
    %v2097 = vpop.permute.xlu0 %2096
    %v2099 = vadd.f32 %v517, %v2097
    %v2100 = vtanh.pop %v2099
    %v2101 = vsub.f32 1.0, %v2089
    %2103 = vrot.lane.b32.xlu0 %v2100, 96
    %v2104 = vpop.permute.xlu0 %2103
    %v2106 = vmul.f32 %v2101, %v2104
    %v2107 = vmul.f32 %v2089, %v1898
    %v2108 = vadd.f32 %v2106, %v2107
    %v2110 = vsel %vm226, %v2007, 0
    %2112 = vmatprep.subr.mxu0 0.0
    %2113 = vmatpush1.msra.mxu0 %v526
    %2114 = vmatprep.subr.mxu0 0.0
    %2115 = vmatpush1.msra.mxu0 %v527
    %2116 = vmatprep.subr.mxu0 0.0
    %2117 = vmatpush1.msra.mxu0 %v528
    %2118 = vmatprep.subr.mxu0 0.0
    %2119 = vmatpush1.msra.mxu0 %v529
    %2120 = vmatprep.subr.mxu0 0.0
    %2121 = vmatpush1.msra.mxu0 0.0
    %2122 = vmatprep.subr.mxu0 0.0
    %2123 = vmatpush1.msra.mxu0 0.0
    %2124 = vmatprep.subr.mxu0 0.0
    %2125 = vmatpush1.msra.mxu0 0.0
    %2126 = vmatprep.subr.mxu0 0.0
    %2127 = vmatpush1.msra.mxu0 0.0
    %2128 = vmatprep.subr.mxu0 0.0
    %2129 = vmatpush1.msra.mxu0 0.0
    %2130 = vmatprep.subr.mxu0 0.0
    %2131 = vmatpush1.msra.mxu0 0.0
    %2132 = vmatprep.subr.mxu0 0.0
    %2133 = vmatpush1.msra.mxu0 0.0
    %2134 = vmatprep.subr.mxu0 0.0
    %2135 = vmatpush1.msra.mxu0 0.0
    %2136 = vmatprep.subr.mxu0 0.0
    %2137 = vmatpush1.msra.mxu0 0.0
    %2138 = vmatprep.subr.mxu0 0.0
    %2139 = vmatpush1.msra.mxu0 0.0
    %2140 = vmatprep.subr.mxu0 0.0
    %2141 = vmatpush1.msra.mxu0 0.0
    %2142 = vmatprep.subr.mxu0 0.0
    %2143 = vmatpush1.msra.mxu0 0.0
    %2144 = vmatprep.subr.mxu0 0.0
    %2145 = vmatpush1.msra.mxu0 0.0
    %2146 = vmatprep.subr.mxu0 0.0
    %2147 = vmatpush1.msra.mxu0 0.0
    %2148 = vmatprep.subr.mxu0 0.0
    %2149 = vmatpush1.msra.mxu0 0.0
    %2150 = vmatprep.subr.mxu0 0.0
    %2151 = vmatpush1.msra.mxu0 0.0
    %2152 = vmatprep.subr.mxu0 0.0
    %2153 = vmatpush1.msra.mxu0 0.0
    %2154 = vmatprep.subr.mxu0 0.0
    %2155 = vmatpush1.msra.mxu0 0.0
    %2156 = vmatprep.subr.mxu0 0.0
    %2157 = vmatpush1.msra.mxu0 0.0
    %2158 = vmatprep.subr.mxu0 0.0
    %2159 = vmatpush1.msra.mxu0 0.0
    %2160 = vmatprep.subr.mxu0 0.0
    %2161 = vmatpush1.msra.mxu0 0.0
    %2162 = vmatprep.subr.mxu0 0.0
    %2163 = vmatpush1.msra.mxu0 0.0
    %2164 = vmatprep.subr.mxu0 0.0
    %2165 = vmatpush1.msra.mxu0 0.0
    %2166 = vmatprep.subr.mxu0 0.0
    %2167 = vmatpush1.msra.mxu0 0.0
    %2168 = vmatprep.subr.mxu0 0.0
    %2169 = vmatpush1.msra.mxu0 0.0
    %2170 = vmatprep.subr.mxu0 0.0
    %2171 = vmatpush1.msra.mxu0 0.0
    %2172 = vmatprep.subr.mxu0 0.0
    %2173 = vmatpush1.msra.mxu0 0.0
    %2174 = vmatprep.subr.mxu0 0.0
    %2175 = vmatpush1.msra.mxu0 0.0
    %2176 = vmatprep.mubr.f32.mxu0 0.0
    %2177 = vmatmul.mubr.f32.gmra.mrb[0].mxu0 %v2110
    %v2178 = vpop.f32.mrb[0].mxu0
    %v2179 = vadd.f32 %v640, %v2178
    %v2180 = vpop.f32.mrb[0].mxu0
    %2181 = vdwg.mxu0
    %2183 = vrot.lane.b32.xlu0 %v2179, 96
    %v2184 = vpop.permute.xlu0 %2183
    %v2186 = vadd.f32 %v475, %v2184
    %v2187 = vxor.u32 %v2186, 2147483648
    %v2188 = vmul.f32 %v2187, 1.442695
    %v2189 = vpow.pop %v2188
    %v2190 = vadd.f32 %v2189, 1.0
    %v2191 = vrcp.pop %v2190
    %v2192 = vmul.f32 1.0, %v2191
    %v2193 = vadd.f32 %v477, %v2184
    %v2194 = vxor.u32 %v2193, 2147483648
    %v2195 = vmul.f32 %v2194, 1.442695
    %v2196 = vpow.pop %v2195
    %v2197 = vadd.f32 %v2196, 1.0
    %v2198 = vrcp.pop %v2197
    %v2199 = vmul.f32 1.0, %v2198
    %2200 = vrot.lane.b32.xlu0 %v2179, 32
    %v2201 = vpop.permute.xlu0 %2200
    %v2203 = vmul.f32 %v2192, %v2201
    %2205 = vrot.lane.b32.xlu0 %v2203, 64
    %v2206 = vpop.permute.xlu0 %2205
    %v2208 = vadd.f32 %v477, %v2206
    %v2209 = vtanh.pop %v2208
    %v2210 = vsub.f32 1.0, %v2199
    %2212 = vrot.lane.b32.xlu0 %v2209, 96
    %v2213 = vpop.permute.xlu0 %2212
    %v2215 = vmul.f32 %v2210, %v2213
    %v2216 = vmul.f32 %v2199, %v2007
    %v2217 = vadd.f32 %v2215, %v2216
    %v2218 = vld [vmem:[%s9] sm:$0xff]
    %v2219 = vld [vmem:[%s9 + $0x8] sm:$0xff]
    %v2220 = vld [vmem:[%s9 + $0x10] sm:$0xff]
    %v2221 = vld [vmem:[%s9 + $0x18] sm:$0xff]
    %v2222 = vld [vmem:[%s9 + $0x20] sm:$0xff]
    %v2223 = vld [vmem:[%s9 + $0x28] sm:$0xff]
    %v2224 = vld [vmem:[%s9 + $0x30] sm:$0xff]
    %v2225 = vld [vmem:[%s9 + $0x38] sm:$0xff]
    %v2226 = vld [vmem:[%s9 + $0x40] sm:$0xff]
    %v2227 = vld [vmem:[%s9 + $0x48] sm:$0xff]
    %v2228 = vld [vmem:[%s9 + $0x50] sm:$0xff]
    %v2229 = vld [vmem:[%s9 + $0x58] sm:$0xff]
    %v2230 = vld [vmem:[%s9 + $0x60] sm:$0xff]
    %v2231 = vld [vmem:[%s9 + $0x68] sm:$0xff]
    %v2232 = vld [vmem:[%s9 + $0x70] sm:$0xff]
    %v2233 = vld [vmem:[%s9 + $0x78] sm:$0xff]
    %v2235 = vsel %vm226, %v2217, 0
    %2237 = vmatprep.subr.mxu0 %v2227
    %2238 = vmatpush1.msra.mxu0 %v2226
    %2239 = vmatprep.subr.mxu0 %v2229
    %2240 = vmatpush1.msra.mxu0 %v2228
    %2241 = vmatprep.subr.mxu0 %v2231
    %2242 = vmatpush1.msra.mxu0 %v2230
    %2243 = vmatprep.subr.mxu0 %v2233
    %2244 = vmatpush1.msra.mxu0 %v2232
    %2245 = vmatprep.subr.mxu0 0.0
    %2246 = vmatpush1.msra.mxu0 0.0
    %2247 = vmatprep.subr.mxu0 0.0
    %2248 = vmatpush1.msra.mxu0 0.0
    %2249 = vmatprep.subr.mxu0 0.0
    %2250 = vmatpush1.msra.mxu0 0.0
    %2251 = vmatprep.subr.mxu0 0.0
    %2252 = vmatpush1.msra.mxu0 0.0
    %2253 = vmatprep.subr.mxu0 0.0
    %2254 = vmatpush1.msra.mxu0 0.0
    %2255 = vmatprep.subr.mxu0 0.0
    %2256 = vmatpush1.msra.mxu0 0.0
    %2257 = vmatprep.subr.mxu0 0.0
    %2258 = vmatpush1.msra.mxu0 0.0
    %2259 = vmatprep.subr.mxu0 0.0
    %2260 = vmatpush1.msra.mxu0 0.0
    %2261 = vmatprep.subr.mxu0 0.0
    %2262 = vmatpush1.msra.mxu0 0.0
    %2263 = vmatprep.subr.mxu0 0.0
    %2264 = vmatpush1.msra.mxu0 0.0
    %2265 = vmatprep.subr.mxu0 0.0
    %2266 = vmatpush1.msra.mxu0 0.0
    %2267 = vmatprep.subr.mxu0 0.0
    %2268 = vmatpush1.msra.mxu0 0.0
    %2269 = vmatprep.subr.mxu0 0.0
    %2270 = vmatpush1.msra.mxu0 0.0
    %2271 = vmatprep.subr.mxu0 0.0
    %2272 = vmatpush1.msra.mxu0 0.0
    %2273 = vmatprep.subr.mxu0 0.0
    %2274 = vmatpush1.msra.mxu0 0.0
    %2275 = vmatprep.subr.mxu0 0.0
    %2276 = vmatpush1.msra.mxu0 0.0
    %2277 = vmatprep.subr.mxu0 0.0
    %2278 = vmatpush1.msra.mxu0 0.0
    %2279 = vmatprep.subr.mxu0 0.0
    %2280 = vmatpush1.msra.mxu0 0.0
    %2281 = vmatprep.subr.mxu0 0.0
    %2282 = vmatpush1.msra.mxu0 0.0
    %2283 = vmatprep.subr.mxu0 0.0
    %2284 = vmatpush1.msra.mxu0 0.0
    %2285 = vmatprep.subr.mxu0 0.0
    %2286 = vmatpush1.msra.mxu0 0.0
    %2287 = vmatprep.subr.mxu0 0.0
    %2288 = vmatpush1.msra.mxu0 0.0
    %2289 = vmatprep.subr.mxu0 0.0
    %2290 = vmatpush1.msra.mxu0 0.0
    %2291 = vmatprep.subr.mxu0 0.0
    %2292 = vmatpush1.msra.mxu0 0.0
    %2293 = vmatprep.subr.mxu0 0.0
    %2294 = vmatpush1.msra.mxu0 0.0
    %2295 = vmatprep.subr.mxu0 0.0
    %2296 = vmatpush1.msra.mxu0 0.0
    %2297 = vmatprep.subr.mxu0 0.0
    %2298 = vmatpush1.msra.mxu0 0.0
    %2299 = vmatprep.subr.mxu0 0.0
    %2300 = vmatpush1.msra.mxu0 0.0
    %2301 = vmatprep.mubr.f32.mxu0 0.0
    %2302 = vmatmul.mubr.f32.gmra.mrb[0].mxu0 %v2235
    %v2303 = vpop.f32.mrb[0].mxu0
    %v2304 = vadd.f32 0.0, %v2303
    %v2305 = vpop.f32.mrb[0].mxu0
    %2306 = vmatprep.mubr.f32.mxu0 0.0
    %2307 = vmatmul.mubr.f32.gmra.mrb[0].mxu0 %v2110
    %v2308 = vpop.f32.mrb[0].mxu0
    %v2309 = vadd.f32 0.0, %v2308
    %v2310 = vpop.f32.mrb[0].mxu0
    %2311 = vmatprep.mubr.f32.mxu0 0.0
    %2312 = vmatmul.mubr.f32.gmra.mrb[0].mxu0 %v1900
    %v2313 = vpop.f32.mrb[0].mxu0
    %v2314 = vadd.f32 0.0, %v2313
    %v2315 = vpop.f32.mrb[0].mxu0
    %2316 = vmatprep.mubr.f32.mxu0 0.0
    %2317 = vmatmul.mubr.f32.gmra.mrb[0].mxu0 %v1690
    %v2318 = vpop.f32.mrb[0].mxu0
    %v2319 = vadd.f32 0.0, %v2318
    %v2320 = vpop.f32.mrb[0].mxu0
    %2321 = vmatprep.mubr.f32.mxu0 0.0
    %2322 = vmatmul.mubr.f32.gmra.mrb[0].mxu0 %v1480
    %v2323 = vpop.f32.mrb[0].mxu0
    %v2324 = vadd.f32 0.0, %v2323
    %v2325 = vpop.f32.mrb[0].mxu0
    %2326 = vmatprep.mubr.f32.mxu0 0.0
    %2327 = vmatmul.mubr.f32.gmra.mrb[0].mxu0 %v1270
    %v2328 = vpop.f32.mrb[0].mxu0
    %v2329 = vadd.f32 0.0, %v2328
    %v2330 = vpop.f32.mrb[0].mxu0
    %2331 = vmatprep.mubr.f32.mxu0 0.0
    %2332 = vmatmul.mubr.f32.gmra.mrb[0].mxu0 %v1060
    %v2333 = vpop.f32.mrb[0].mxu0
    %v2334 = vadd.f32 0.0, %v2333
    %v2335 = vpop.f32.mrb[0].mxu0
    %2336 = vmatprep.mubr.f32.mxu0 0.0
    %2337 = vmatmul.mubr.f32.gmra.mrb[0].mxu0 %v850
    %v2338 = vpop.f32.mrb[0].mxu0
    %v2339 = vadd.f32 0.0, %v2338
    %v2340 = vpop.f32.mrb[0].mxu0
    %v2341 = vadd.f32 0.0, %v2340
    %2342 = vdwg.mxu0
    %2344 = vrot.lane.b32.xlu0 %v2108, 96
    %v2345 = vpop.permute.xlu0 %2344
    %v2346 = vsel %vm226, %v2345, 0
    %2348 = vmatprep.subr.mxu0 %v2219
    %2349 = vmatpush1.msra.mxu0 %v2218
    %2350 = vmatprep.subr.mxu0 %v2221
    %2351 = vmatpush1.msra.mxu0 %v2220
    %2352 = vmatprep.subr.mxu0 %v2223
    %2353 = vmatpush1.msra.mxu0 %v2222
    %2354 = vmatprep.subr.mxu0 %v2225
    %2355 = vmatpush1.msra.mxu0 %v2224
    %2356 = vmatprep.subr.mxu0 0.0
    %2357 = vmatpush1.msra.mxu0 0.0
    %2358 = vmatprep.subr.mxu0 0.0
    %2359 = vmatpush1.msra.mxu0 0.0
    %2360 = vmatprep.subr.mxu0 0.0
    %2361 = vmatpush1.msra.mxu0 0.0
    %2362 = vmatprep.subr.mxu0 0.0
    %2363 = vmatpush1.msra.mxu0 0.0
    %2364 = vmatprep.subr.mxu0 0.0
    %2365 = vmatpush1.msra.mxu0 0.0
    %2366 = vmatprep.subr.mxu0 0.0
    %2367 = vmatpush1.msra.mxu0 0.0
    %2368 = vmatprep.subr.mxu0 0.0
    %2369 = vmatpush1.msra.mxu0 0.0
    %2370 = vmatprep.subr.mxu0 0.0
    %2371 = vmatpush1.msra.mxu0 0.0
    %2372 = vmatprep.subr.mxu0 0.0
    %2373 = vmatpush1.msra.mxu0 0.0
    %2374 = vmatprep.subr.mxu0 0.0
    %2375 = vmatpush1.msra.mxu0 0.0
    %2376 = vmatprep.subr.mxu0 0.0
    %2377 = vmatpush1.msra.mxu0 0.0
    %2378 = vmatprep.subr.mxu0 0.0
    %2379 = vmatpush1.msra.mxu0 0.0
    %2380 = vmatprep.subr.mxu0 0.0
    %2381 = vmatpush1.msra.mxu0 0.0
    %2382 = vmatprep.subr.mxu0 0.0
    %2383 = vmatpush1.msra.mxu0 0.0
    %2384 = vmatprep.subr.mxu0 0.0
    %2385 = vmatpush1.msra.mxu0 0.0
    %2386 = vmatprep.subr.mxu0 0.0
    %2387 = vmatpush1.msra.mxu0 0.0
    %2388 = vmatprep.subr.mxu0 0.0
    %2389 = vmatpush1.msra.mxu0 0.0
    %2390 = vmatprep.subr.mxu0 0.0
    %2391 = vmatpush1.msra.mxu0 0.0
    %2392 = vmatprep.subr.mxu0 0.0
    %2393 = vmatpush1.msra.mxu0 0.0
    %2394 = vmatprep.subr.mxu0 0.0
    %2395 = vmatpush1.msra.mxu0 0.0
    %2396 = vmatprep.subr.mxu0 0.0
    %2397 = vmatpush1.msra.mxu0 0.0
    %2398 = vmatprep.subr.mxu0 0.0
    %2399 = vmatpush1.msra.mxu0 0.0
    %2400 = vmatprep.subr.mxu0 0.0
    %2401 = vmatpush1.msra.mxu0 0.0
    %2402 = vmatprep.subr.mxu0 0.0
    %2403 = vmatpush1.msra.mxu0 0.0
    %2404 = vmatprep.subr.mxu0 0.0
    %2405 = vmatpush1.msra.mxu0 0.0
    %2406 = vmatprep.subr.mxu0 0.0
    %2407 = vmatpush1.msra.mxu0 0.0
    %2408 = vmatprep.subr.mxu0 0.0
    %2409 = vmatpush1.msra.mxu0 0.0
    %2410 = vmatprep.subr.mxu0 0.0
    %2411 = vmatpush1.msra.mxu0 0.0
    %2412 = vmatprep.mubr.f32.mxu0 0.0
    %2413 = vmatmul.mubr.f32.gmra.mrb[0].mxu0 %v751
    %v2414 = vpop.f32.mrb[0].mxu0
    %v2415 = vadd.f32 %v2304, %v2414
    %v2416 = vpop.f32.mrb[0].mxu0
    %2417 = vmatprep.mubr.f32.mxu0 0.0
    %2418 = vmatmul.mubr.f32.gmra.mrb[0].mxu0 %v961
    %v2419 = vpop.f32.mrb[0].mxu0
    %v2420 = vadd.f32 %v2309, %v2419
    %v2421 = vpop.f32.mrb[0].mxu0
    %2422 = vmatprep.mubr.f32.mxu0 0.0
    %2423 = vmatmul.mubr.f32.gmra.mrb[0].mxu0 %v1171
    %v2424 = vpop.f32.mrb[0].mxu0
    %v2425 = vadd.f32 %v2314, %v2424
    %v2426 = vpop.f32.mrb[0].mxu0
    %2427 = vmatprep.mubr.f32.mxu0 0.0
    %2428 = vmatmul.mubr.f32.gmra.mrb[0].mxu0 %v1381
    %v2429 = vpop.f32.mrb[0].mxu0
    %v2430 = vadd.f32 %v2319, %v2429
    %v2431 = vpop.f32.mrb[0].mxu0
    %2432 = vmatprep.mubr.f32.mxu0 0.0
    %2433 = vmatmul.mubr.f32.gmra.mrb[0].mxu0 %v1591
    %v2434 = vpop.f32.mrb[0].mxu0
    %v2435 = vadd.f32 %v2324, %v2434
    %v2436 = vpop.f32.mrb[0].mxu0
    %2437 = vmatprep.mubr.f32.mxu0 0.0
    %2438 = vmatmul.mubr.f32.gmra.mrb[0].mxu0 %v1801
    %v2439 = vpop.f32.mrb[0].mxu0
    %v2440 = vadd.f32 %v2329, %v2439
    %v2441 = vpop.f32.mrb[0].mxu0
    %2442 = vmatprep.mubr.f32.mxu0 0.0
    %2443 = vmatmul.mubr.f32.gmra.mrb[0].mxu0 %v2011
    %v2444 = vpop.f32.mrb[0].mxu0
    %v2445 = vadd.f32 %v2334, %v2444
    %v2446 = vpop.f32.mrb[0].mxu0
    %2447 = vmatprep.mubr.f32.mxu0 0.0
    %2448 = vmatmul.mubr.f32.gmra.mrb[0].mxu0 %v2346
    %v2449 = vpop.f32.mrb[0].mxu0
    %v2450 = vadd.f32 %v2339, %v2449
    %v2451 = vpop.f32.mrb[0].mxu0
    %v2452 = vadd.f32 %v2341, %v2451
    %2453 = vdwg.mxu0
    %v2454 = vld [vmem:[#allocation15] sm:$0x3]
    %v2456 = vlaneseq
    %v2457 = vshrl.u32 %v2456, 7
    %v2458 = vsub.s32 0, %v2457
    %v2459 = vrot.slane %v2454, %v2458
    %v2460 = vlaneseq
    %v2461 = vshrl.u32 %v2460, 7
    %v2462 = vsub.s32 1, %v2461
    %v2463 = vrot.slane %v2454, %v2462
    %v2466 = vadd.f32 %v2415, %v2459
    %v2467 = vadd.f32 %v2420, %v2459
    %v2468 = vadd.f32 %v2425, %v2459
    %v2469 = vadd.f32 %v2430, %v2459
    %v2470 = vadd.f32 %v2435, %v2459
    %v2471 = vadd.f32 %v2440, %v2459
    %v2472 = vadd.f32 %v2445, %v2459
    %v2473 = vadd.f32 %v2450, %v2459
    %v2474 = vadd.f32 %v2452, %v2463
    %v2475 = vld [vmem:[#allocation16] sm:$0xff]
    %v2476 = vld [vmem:[#allocation16 + $0x8] sm:$0xff]
    %v2477 = vld [vmem:[#allocation16 + $0x10] sm:$0xff]
    %v2478 = vld [vmem:[#allocation16 + $0x18] sm:$0xff]
    %v2479 = vld [vmem:[#allocation18] sm:$0x1]
    %v2480 = vld [vmem:[%s13] sm:$0xff]
    %v2481 = vld [vmem:[%s13 + $0x8] sm:$0xff]
    %v2482 = vld [vmem:[%s13 + $0x10] sm:$0xff]
    %v2483 = vld [vmem:[%s13 + $0x18] sm:$0xff]
    %v2484 = vld [vmem:[%s14] sm:$0x1]
    %v2486 = vlaneseq
    %v2487 = vshrl.u32 %v2486, 7
    %v2488 = vsub.s32 0, %v2487
    %v2489 = vrot.slane %v2479, %v2488
    %2491 = vmatprep.subr.mxu0 0.0
    %2492 = vmatpush1.msra.mxu0 %v2475
    %2493 = vmatprep.subr.mxu0 0.0
    %2494 = vmatpush1.msra.mxu0 %v2476
    %2495 = vmatprep.subr.mxu0 0.0
    %2496 = vmatpush1.msra.mxu0 %v2477
    %2497 = vmatprep.subr.mxu0 0.0
    %2498 = vmatpush1.msra.mxu0 %v2478
    %2499 = vmatprep.subr.mxu0 0.0
    %2500 = vmatpush1.msra.mxu0 0.0
    %2501 = vmatprep.subr.mxu0 0.0
    %2502 = vmatpush1.msra.mxu0 0.0
    %2503 = vmatprep.subr.mxu0 0.0
    %2504 = vmatpush1.msra.mxu0 0.0
    %2505 = vmatprep.subr.mxu0 0.0
    %2506 = vmatpush1.msra.mxu0 0.0
    %2507 = vmatprep.subr.mxu0 0.0
    %2508 = vmatpush1.msra.mxu0 0.0
    %2509 = vmatprep.subr.mxu0 0.0
    %2510 = vmatpush1.msra.mxu0 0.0
    %2511 = vmatprep.subr.mxu0 0.0
    %2512 = vmatpush1.msra.mxu0 0.0
    %2513 = vmatprep.subr.mxu0 0.0
    %2514 = vmatpush1.msra.mxu0 0.0
    %2515 = vmatprep.subr.mxu0 0.0
    %2516 = vmatpush1.msra.mxu0 0.0
    %2517 = vmatprep.subr.mxu0 0.0
    %2518 = vmatpush1.msra.mxu0 0.0
    %2519 = vmatprep.subr.mxu0 0.0
    %2520 = vmatpush1.msra.mxu0 0.0
    %2521 = vmatprep.subr.mxu0 0.0
    %2522 = vmatpush1.msra.mxu0 0.0
    %2523 = vmatprep.subr.mxu0 0.0
    %2524 = vmatpush1.msra.mxu0 0.0
    %2525 = vmatprep.subr.mxu0 0.0
    %2526 = vmatpush1.msra.mxu0 0.0
    %2527 = vmatprep.subr.mxu0 0.0
    %2528 = vmatpush1.msra.mxu0 0.0
    %2529 = vmatprep.subr.mxu0 0.0
    %2530 = vmatpush1.msra.mxu0 0.0
    %2531 = vmatprep.subr.mxu0 0.0
    %2532 = vmatpush1.msra.mxu0 0.0
    %2533 = vmatprep.subr.mxu0 0.0
    %2534 = vmatpush1.msra.mxu0 0.0
    %2535 = vmatprep.subr.mxu0 0.0
    %2536 = vmatpush1.msra.mxu0 0.0
    %2537 = vmatprep.subr.mxu0 0.0
    %2538 = vmatpush1.msra.mxu0 0.0
    %2539 = vmatprep.subr.mxu0 0.0
    %2540 = vmatpush1.msra.mxu0 0.0
    %2541 = vmatprep.subr.mxu0 0.0
    %2542 = vmatpush1.msra.mxu0 0.0
    %2543 = vmatprep.subr.mxu0 0.0
    %2544 = vmatpush1.msra.mxu0 0.0
    %2545 = vmatprep.subr.mxu0 0.0
    %2546 = vmatpush1.msra.mxu0 0.0
    %2547 = vmatprep.subr.mxu0 0.0
    %2548 = vmatpush1.msra.mxu0 0.0
    %2549 = vmatprep.subr.mxu0 0.0
    %2550 = vmatpush1.msra.mxu0 0.0
    %2551 = vmatprep.subr.mxu0 0.0
    %2552 = vmatpush1.msra.mxu0 0.0
    %2553 = vmatprep.subr.mxu0 0.0
    %2554 = vmatpush1.msra.mxu0 0.0
    %2555 = vmatprep.mubr.f32.mxu0 0.0
    %2556 = vmatmul.mubr.f32.gmra.mrb[0].mxu0 %v538
    %v2557 = vpop.f32.mrb[0].mxu0
    %v2558 = vadd.f32 %v2489, %v2557
    %v2559 = vpop.f32.mrb[0].mxu0
    %2560 = vdwg.mxu0
    %v2561 = vadd.f32 %v2466, %v2558
    %v2562 = vxor.u32 %v2561, 2147483648
    %v2563 = vmul.f32 %v2562, 1.442695
    %v2564 = vpow.pop %v2563
    %v2565 = vadd.f32 %v2564, 1.0
    %v2566 = vrcp.pop %v2565
    %v2567 = vmul.f32 1.0, %v2566
    %2569 = vrot.lane.b32.xlu0 %v2558, 64
    %v2570 = vpop.permute.xlu0 %2569
    %v2572 = vmul.f32 %v2567, %v2570
    %2574 = vrot.lane.b32.xlu0 %v2572, 64
    %v2575 = vpop.permute.xlu0 %2574
    %v2577 = vadd.f32 %v2466, %v2575
    %v2578 = vtanh.pop %v2577
    %v2579 = vsub.f32 1.0, %v2567
    %2581 = vrot.lane.b32.xlu0 %v2578, 96
    %v2582 = vpop.permute.xlu0 %2581
    %v2584 = vmul.f32 %v2579, %v2582
    %v2585 = vmul.f32 %v2567, 0.0
    %v2586 = vadd.f32 %v2584, %v2585
    %v2588 = vlaneseq
    %v2589 = vshrl.u32 %v2588, 7
    %v2590 = vsub.s32 0, %v2589
    %v2591 = vrot.slane %v2484, %v2590
    %2593 = vmatprep.subr.mxu0 0.0
    %2594 = vmatpush1.msra.mxu0 %v2480
    %2595 = vmatprep.subr.mxu0 0.0
    %2596 = vmatpush1.msra.mxu0 %v2481
    %2597 = vmatprep.subr.mxu0 0.0
    %2598 = vmatpush1.msra.mxu0 %v2482
    %2599 = vmatprep.subr.mxu0 0.0
    %2600 = vmatpush1.msra.mxu0 %v2483
    %2601 = vmatprep.subr.mxu0 0.0
    %2602 = vmatpush1.msra.mxu0 0.0
    %2603 = vmatprep.subr.mxu0 0.0
    %2604 = vmatpush1.msra.mxu0 0.0
    %2605 = vmatprep.subr.mxu0 0.0
    %2606 = vmatpush1.msra.mxu0 0.0
    %2607 = vmatprep.subr.mxu0 0.0
    %2608 = vmatpush1.msra.mxu0 0.0
    %2609 = vmatprep.subr.mxu0 0.0
    %2610 = vmatpush1.msra.mxu0 0.0
    %2611 = vmatprep.subr.mxu0 0.0
    %2612 = vmatpush1.msra.mxu0 0.0
    %2613 = vmatprep.subr.mxu0 0.0
    %2614 = vmatpush1.msra.mxu0 0.0
    %2615 = vmatprep.subr.mxu0 0.0
    %2616 = vmatpush1.msra.mxu0 0.0
    %2617 = vmatprep.subr.mxu0 0.0
    %2618 = vmatpush1.msra.mxu0 0.0
    %2619 = vmatprep.subr.mxu0 0.0
    %2620 = vmatpush1.msra.mxu0 0.0
    %2621 = vmatprep.subr.mxu0 0.0
    %2622 = vmatpush1.msra.mxu0 0.0
    %2623 = vmatprep.subr.mxu0 0.0
    %2624 = vmatpush1.msra.mxu0 0.0
    %2625 = vmatprep.subr.mxu0 0.0
    %2626 = vmatpush1.msra.mxu0 0.0
    %2627 = vmatprep.subr.mxu0 0.0
    %2628 = vmatpush1.msra.mxu0 0.0
    %2629 = vmatprep.subr.mxu0 0.0
    %2630 = vmatpush1.msra.mxu0 0.0
    %2631 = vmatprep.subr.mxu0 0.0
    %2632 = vmatpush1.msra.mxu0 0.0
    %2633 = vmatprep.subr.mxu0 0.0
    %2634 = vmatpush1.msra.mxu0 0.0
    %2635 = vmatprep.subr.mxu0 0.0
    %2636 = vmatpush1.msra.mxu0 0.0
    %2637 = vmatprep.subr.mxu0 0.0
    %2638 = vmatpush1.msra.mxu0 0.0
    %2639 = vmatprep.subr.mxu0 0.0
    %2640 = vmatpush1.msra.mxu0 0.0
    %2641 = vmatprep.subr.mxu0 0.0
    %2642 = vmatpush1.msra.mxu0 0.0
    %2643 = vmatprep.subr.mxu0 0.0
    %2644 = vmatpush1.msra.mxu0 0.0
    %2645 = vmatprep.subr.mxu0 0.0
    %2646 = vmatpush1.msra.mxu0 0.0
    %2647 = vmatprep.subr.mxu0 0.0
    %2648 = vmatpush1.msra.mxu0 0.0
    %2649 = vmatprep.subr.mxu0 0.0
    %2650 = vmatpush1.msra.mxu0 0.0
    %2651 = vmatprep.subr.mxu0 0.0
    %2652 = vmatpush1.msra.mxu0 0.0
    %2653 = vmatprep.subr.mxu0 0.0
    %2654 = vmatpush1.msra.mxu0 0.0
    %2655 = vmatprep.subr.mxu0 0.0
    %2656 = vmatpush1.msra.mxu0 0.0
    %2657 = vmatprep.mubr.f32.mxu0 0.0
    %2658 = vmatmul.mubr.f32.gmra.mrb[0].mxu0 %v538
    %v2659 = vpop.f32.mrb[0].mxu0
    %v2660 = vadd.f32 %v2591, %v2659
    %v2661 = vpop.f32.mrb[0].mxu0
    %2662 = vdwg.mxu0
    %2664 = vrot.lane.b32.xlu0 %v2660, 96
    %v2665 = vpop.permute.xlu0 %2664
    %v2667 = vadd.f32 %v2473, %v2665
    %v2668 = vxor.u32 %v2667, 2147483648
    %v2669 = vmul.f32 %v2668, 1.442695
    %v2670 = vpow.pop %v2669
    %v2671 = vadd.f32 %v2670, 1.0
    %v2672 = vrcp.pop %v2671
    %v2673 = vmul.f32 1.0, %v2672
    %v2674 = vadd.f32 %v2474, %v2665
    %v2675 = vxor.u32 %v2674, 2147483648
    %v2676 = vmul.f32 %v2675, 1.442695
    %v2677 = vpow.pop %v2676
    %v2678 = vadd.f32 %v2677, 1.0
    %v2679 = vrcp.pop %v2678
    %v2680 = vmul.f32 1.0, %v2679
    %2681 = vrot.lane.b32.xlu0 %v2660, 32
    %v2682 = vpop.permute.xlu0 %2681
    %v2684 = vmul.f32 %v2673, %v2682
    %2686 = vrot.lane.b32.xlu0 %v2684, 64
    %v2687 = vpop.permute.xlu0 %2686
    %v2689 = vadd.f32 %v2474, %v2687
    %v2690 = vtanh.pop %v2689
    %v2691 = vsub.f32 1.0, %v2680
    %2693 = vrot.lane.b32.xlu0 %v2690, 96
    %v2694 = vpop.permute.xlu0 %2693
    %v2696 = vmul.f32 %v2691, %v2694
    %v2697 = vmul.f32 %v2680, 0.0
    %v2698 = vadd.f32 %v2696, %v2697
    %2700 = vrot.lane.b32.xlu0 %v2586, 96
    %v2701 = vpop.permute.xlu0 %2700
    %v2702 = vsel %vm226, %v2701, 0
    %2704 = vmatprep.subr.mxu0 0.0
    %2705 = vmatpush1.msra.mxu0 %v2475
    %2706 = vmatprep.subr.mxu0 0.0
    %2707 = vmatpush1.msra.mxu0 %v2476
    %2708 = vmatprep.subr.mxu0 0.0
    %2709 = vmatpush1.msra.mxu0 %v2477
    %2710 = vmatprep.subr.mxu0 0.0
    %2711 = vmatpush1.msra.mxu0 %v2478
    %2712 = vmatprep.subr.mxu0 0.0
    %2713 = vmatpush1.msra.mxu0 0.0
    %2714 = vmatprep.subr.mxu0 0.0
    %2715 = vmatpush1.msra.mxu0 0.0
    %2716 = vmatprep.subr.mxu0 0.0
    %2717 = vmatpush1.msra.mxu0 0.0
    %2718 = vmatprep.subr.mxu0 0.0
    %2719 = vmatpush1.msra.mxu0 0.0
    %2720 = vmatprep.subr.mxu0 0.0
    %2721 = vmatpush1.msra.mxu0 0.0
    %2722 = vmatprep.subr.mxu0 0.0
    %2723 = vmatpush1.msra.mxu0 0.0
    %2724 = vmatprep.subr.mxu0 0.0
    %2725 = vmatpush1.msra.mxu0 0.0
    %2726 = vmatprep.subr.mxu0 0.0
    %2727 = vmatpush1.msra.mxu0 0.0
    %2728 = vmatprep.subr.mxu0 0.0
    %2729 = vmatpush1.msra.mxu0 0.0
    %2730 = vmatprep.subr.mxu0 0.0
    %2731 = vmatpush1.msra.mxu0 0.0
    %2732 = vmatprep.subr.mxu0 0.0
    %2733 = vmatpush1.msra.mxu0 0.0
    %2734 = vmatprep.subr.mxu0 0.0
    %2735 = vmatpush1.msra.mxu0 0.0
    %2736 = vmatprep.subr.mxu0 0.0
    %2737 = vmatpush1.msra.mxu0 0.0
    %2738 = vmatprep.subr.mxu0 0.0
    %2739 = vmatpush1.msra.mxu0 0.0
    %2740 = vmatprep.subr.mxu0 0.0
    %2741 = vmatpush1.msra.mxu0 0.0
    %2742 = vmatprep.subr.mxu0 0.0
    %2743 = vmatpush1.msra.mxu0 0.0
    %2744 = vmatprep.subr.mxu0 0.0
    %2745 = vmatpush1.msra.mxu0 0.0
    %2746 = vmatprep.subr.mxu0 0.0
    %2747 = vmatpush1.msra.mxu0 0.0
    %2748 = vmatprep.subr.mxu0 0.0
    %2749 = vmatpush1.msra.mxu0 0.0
    %2750 = vmatprep.subr.mxu0 0.0
    %2751 = vmatpush1.msra.mxu0 0.0
    %2752 = vmatprep.subr.mxu0 0.0
    %2753 = vmatpush1.msra.mxu0 0.0
    %2754 = vmatprep.subr.mxu0 0.0
    %2755 = vmatpush1.msra.mxu0 0.0
    %2756 = vmatprep.subr.mxu0 0.0
    %2757 = vmatpush1.msra.mxu0 0.0
    %2758 = vmatprep.subr.mxu0 0.0
    %2759 = vmatpush1.msra.mxu0 0.0
    %2760 = vmatprep.subr.mxu0 0.0
    %2761 = vmatpush1.msra.mxu0 0.0
    %2762 = vmatprep.subr.mxu0 0.0
    %2763 = vmatpush1.msra.mxu0 0.0
    %2764 = vmatprep.subr.mxu0 0.0
    %2765 = vmatpush1.msra.mxu0 0.0
    %2766 = vmatprep.subr.mxu0 0.0
    %2767 = vmatpush1.msra.mxu0 0.0
    %2768 = vmatprep.mubr.f32.mxu0 0.0
    %2769 = vmatmul.mubr.f32.gmra.mrb[0].mxu0 %v2702
    %v2770 = vpop.f32.mrb[0].mxu0
    %v2771 = vadd.f32 %v2489, %v2770
    %v2772 = vpop.f32.mrb[0].mxu0
    %2773 = vdwg.mxu0
    %v2774 = vadd.f32 %v2467, %v2771
    %v2775 = vxor.u32 %v2774, 2147483648
    %v2776 = vmul.f32 %v2775, 1.442695
    %v2777 = vpow.pop %v2776
    %v2778 = vadd.f32 %v2777, 1.0
    %v2779 = vrcp.pop %v2778
    %v2780 = vmul.f32 1.0, %v2779
    %2782 = vrot.lane.b32.xlu0 %v2771, 64
    %v2783 = vpop.permute.xlu0 %2782
    %v2785 = vmul.f32 %v2780, %v2783
    %2787 = vrot.lane.b32.xlu0 %v2785, 64
    %v2788 = vpop.permute.xlu0 %2787
    %v2790 = vadd.f32 %v2467, %v2788
    %v2791 = vtanh.pop %v2790
    %v2792 = vsub.f32 1.0, %v2780
    %2794 = vrot.lane.b32.xlu0 %v2791, 96
    %v2795 = vpop.permute.xlu0 %2794
    %v2797 = vmul.f32 %v2792, %v2795
    %v2798 = vmul.f32 %v2780, %v2586
    %v2799 = vadd.f32 %v2797, %v2798
    %2801 = vrot.lane.b32.xlu0 %v2799, 96
    %v2802 = vpop.permute.xlu0 %2801
    %v2803 = vsel %vm226, %v2802, 0
    %2805 = vmatprep.subr.mxu0 0.0
    %2806 = vmatpush1.msra.mxu0 %v2475
    %2807 = vmatprep.subr.mxu0 0.0
    %2808 = vmatpush1.msra.mxu0 %v2476
    %2809 = vmatprep.subr.mxu0 0.0
    %2810 = vmatpush1.msra.mxu0 %v2477
    %2811 = vmatprep.subr.mxu0 0.0
    %2812 = vmatpush1.msra.mxu0 %v2478
    %2813 = vmatprep.subr.mxu0 0.0
    %2814 = vmatpush1.msra.mxu0 0.0
    %2815 = vmatprep.subr.mxu0 0.0
    %2816 = vmatpush1.msra.mxu0 0.0
    %2817 = vmatprep.subr.mxu0 0.0
    %2818 = vmatpush1.msra.mxu0 0.0
    %2819 = vmatprep.subr.mxu0 0.0
    %2820 = vmatpush1.msra.mxu0 0.0
    %2821 = vmatprep.subr.mxu0 0.0
    %2822 = vmatpush1.msra.mxu0 0.0
    %2823 = vmatprep.subr.mxu0 0.0
    %2824 = vmatpush1.msra.mxu0 0.0
    %2825 = vmatprep.subr.mxu0 0.0
    %2826 = vmatpush1.msra.mxu0 0.0
    %2827 = vmatprep.subr.mxu0 0.0
    %2828 = vmatpush1.msra.mxu0 0.0
    %2829 = vmatprep.subr.mxu0 0.0
    %2830 = vmatpush1.msra.mxu0 0.0
    %2831 = vmatprep.subr.mxu0 0.0
    %2832 = vmatpush1.msra.mxu0 0.0
    %2833 = vmatprep.subr.mxu0 0.0
    %2834 = vmatpush1.msra.mxu0 0.0
    %2835 = vmatprep.subr.mxu0 0.0
    %2836 = vmatpush1.msra.mxu0 0.0
    %2837 = vmatprep.subr.mxu0 0.0
    %2838 = vmatpush1.msra.mxu0 0.0
    %2839 = vmatprep.subr.mxu0 0.0
    %2840 = vmatpush1.msra.mxu0 0.0
    %2841 = vmatprep.subr.mxu0 0.0
    %2842 = vmatpush1.msra.mxu0 0.0
    %2843 = vmatprep.subr.mxu0 0.0
    %2844 = vmatpush1.msra.mxu0 0.0
    %2845 = vmatprep.subr.mxu0 0.0
    %2846 = vmatpush1.msra.mxu0 0.0
    %2847 = vmatprep.subr.mxu0 0.0
    %2848 = vmatpush1.msra.mxu0 0.0
    %2849 = vmatprep.subr.mxu0 0.0
    %2850 = vmatpush1.msra.mxu0 0.0
    %2851 = vmatprep.subr.mxu0 0.0
    %2852 = vmatpush1.msra.mxu0 0.0
    %2853 = vmatprep.subr.mxu0 0.0
    %2854 = vmatpush1.msra.mxu0 0.0
    %2855 = vmatprep.subr.mxu0 0.0
    %2856 = vmatpush1.msra.mxu0 0.0
    %2857 = vmatprep.subr.mxu0 0.0
    %2858 = vmatpush1.msra.mxu0 0.0
    %2859 = vmatprep.subr.mxu0 0.0
    %2860 = vmatpush1.msra.mxu0 0.0
    %2861 = vmatprep.subr.mxu0 0.0
    %2862 = vmatpush1.msra.mxu0 0.0
    %2863 = vmatprep.subr.mxu0 0.0
    %2864 = vmatpush1.msra.mxu0 0.0
    %2865 = vmatprep.subr.mxu0 0.0
    %2866 = vmatpush1.msra.mxu0 0.0
    %2867 = vmatprep.subr.mxu0 0.0
    %2868 = vmatpush1.msra.mxu0 0.0
    %2869 = vmatprep.mubr.f32.mxu0 0.0
    %2870 = vmatmul.mubr.f32.gmra.mrb[0].mxu0 %v2803
    %v2871 = vpop.f32.mrb[0].mxu0
    %v2872 = vadd.f32 %v2489, %v2871
    %v2873 = vpop.f32.mrb[0].mxu0
    %2874 = vdwg.mxu0
    %v2875 = vadd.f32 %v2468, %v2872
    %v2876 = vxor.u32 %v2875, 2147483648
    %v2877 = vmul.f32 %v2876, 1.442695
    %v2878 = vpow.pop %v2877
    %v2879 = vadd.f32 %v2878, 1.0
    %v2880 = vrcp.pop %v2879
    %v2881 = vmul.f32 1.0, %v2880
    %2883 = vrot.lane.b32.xlu0 %v2872, 64
    %v2884 = vpop.permute.xlu0 %2883
    %v2886 = vmul.f32 %v2881, %v2884
    %2888 = vrot.lane.b32.xlu0 %v2886, 64
    %v2889 = vpop.permute.xlu0 %2888
    %v2891 = vadd.f32 %v2468, %v2889
    %v2892 = vtanh.pop %v2891
    %v2893 = vsub.f32 1.0, %v2881
    %2895 = vrot.lane.b32.xlu0 %v2892, 96
    %v2896 = vpop.permute.xlu0 %2895
    %v2898 = vmul.f32 %v2893, %v2896
    %v2899 = vmul.f32 %v2881, %v2799
    %v2900 = vadd.f32 %v2898, %v2899
    %2902 = vrot.lane.b32.xlu0 %v2900, 96
    %v2903 = vpop.permute.xlu0 %2902
    %v2904 = vsel %vm226, %v2903, 0
    %2906 = vmatprep.subr.mxu0 0.0
    %2907 = vmatpush1.msra.mxu0 %v2475
    %2908 = vmatprep.subr.mxu0 0.0
    %2909 = vmatpush1.msra.mxu0 %v2476
    %2910 = vmatprep.subr.mxu0 0.0
    %2911 = vmatpush1.msra.mxu0 %v2477
    %2912 = vmatprep.subr.mxu0 0.0
    %2913 = vmatpush1.msra.mxu0 %v2478
    %2914 = vmatprep.subr.mxu0 0.0
    %2915 = vmatpush1.msra.mxu0 0.0
    %2916 = vmatprep.subr.mxu0 0.0
    %2917 = vmatpush1.msra.mxu0 0.0
    %2918 = vmatprep.subr.mxu0 0.0
    %2919 = vmatpush1.msra.mxu0 0.0
    %2920 = vmatprep.subr.mxu0 0.0
    %2921 = vmatpush1.msra.mxu0 0.0
    %2922 = vmatprep.subr.mxu0 0.0
    %2923 = vmatpush1.msra.mxu0 0.0
    %2924 = vmatprep.subr.mxu0 0.0
    %2925 = vmatpush1.msra.mxu0 0.0
    %2926 = vmatprep.subr.mxu0 0.0
    %2927 = vmatpush1.msra.mxu0 0.0
    %2928 = vmatprep.subr.mxu0 0.0
    %2929 = vmatpush1.msra.mxu0 0.0
    %2930 = vmatprep.subr.mxu0 0.0
    %2931 = vmatpush1.msra.mxu0 0.0
    %2932 = vmatprep.subr.mxu0 0.0
    %2933 = vmatpush1.msra.mxu0 0.0
    %2934 = vmatprep.subr.mxu0 0.0
    %2935 = vmatpush1.msra.mxu0 0.0
    %2936 = vmatprep.subr.mxu0 0.0
    %2937 = vmatpush1.msra.mxu0 0.0
    %2938 = vmatprep.subr.mxu0 0.0
    %2939 = vmatpush1.msra.mxu0 0.0
    %2940 = vmatprep.subr.mxu0 0.0
    %2941 = vmatpush1.msra.mxu0 0.0
    %2942 = vmatprep.subr.mxu0 0.0
    %2943 = vmatpush1.msra.mxu0 0.0
    %2944 = vmatprep.subr.mxu0 0.0
    %2945 = vmatpush1.msra.mxu0 0.0
    %2946 = vmatprep.subr.mxu0 0.0
    %2947 = vmatpush1.msra.mxu0 0.0
    %2948 = vmatprep.subr.mxu0 0.0
    %2949 = vmatpush1.msra.mxu0 0.0
    %2950 = vmatprep.subr.mxu0 0.0
    %2951 = vmatpush1.msra.mxu0 0.0
    %2952 = vmatprep.subr.mxu0 0.0
    %2953 = vmatpush1.msra.mxu0 0.0
    %2954 = vmatprep.subr.mxu0 0.0
    %2955 = vmatpush1.msra.mxu0 0.0
    %2956 = vmatprep.subr.mxu0 0.0
    %2957 = vmatpush1.msra.mxu0 0.0
    %2958 = vmatprep.subr.mxu0 0.0
    %2959 = vmatpush1.msra.mxu0 0.0
    %2960 = vmatprep.subr.mxu0 0.0
    %2961 = vmatpush1.msra.mxu0 0.0
    %2962 = vmatprep.subr.mxu0 0.0
    %2963 = vmatpush1.msra.mxu0 0.0
    %2964 = vmatprep.subr.mxu0 0.0
    %2965 = vmatpush1.msra.mxu0 0.0
    %2966 = vmatprep.subr.mxu0 0.0
    %2967 = vmatpush1.msra.mxu0 0.0
    %2968 = vmatprep.subr.mxu0 0.0
    %2969 = vmatpush1.msra.mxu0 0.0
    %2970 = vmatprep.mubr.f32.mxu0 0.0
    %2971 = vmatmul.mubr.f32.gmra.mrb[0].mxu0 %v2904
    %v2972 = vpop.f32.mrb[0].mxu0
    %v2973 = vadd.f32 %v2489, %v2972
    %v2974 = vpop.f32.mrb[0].mxu0
    %2975 = vdwg.mxu0
    %v2976 = vadd.f32 %v2469, %v2973
    %v2977 = vxor.u32 %v2976, 2147483648
    %v2978 = vmul.f32 %v2977, 1.442695
    %v2979 = vpow.pop %v2978
    %v2980 = vadd.f32 %v2979, 1.0
    %v2981 = vrcp.pop %v2980
    %v2982 = vmul.f32 1.0, %v2981
    %2984 = vrot.lane.b32.xlu0 %v2973, 64
    %v2985 = vpop.permute.xlu0 %2984
    %v2987 = vmul.f32 %v2982, %v2985
    %2989 = vrot.lane.b32.xlu0 %v2987, 64
    %v2990 = vpop.permute.xlu0 %2989
    %v2992 = vadd.f32 %v2469, %v2990
    %v2993 = vtanh.pop %v2992
    %v2994 = vsub.f32 1.0, %v2982
    %2996 = vrot.lane.b32.xlu0 %v2993, 96
    %v2997 = vpop.permute.xlu0 %2996
    %v2999 = vmul.f32 %v2994, %v2997
    %v3000 = vmul.f32 %v2982, %v2900
    %v3001 = vadd.f32 %v2999, %v3000
    %3003 = vrot.lane.b32.xlu0 %v3001, 96
    %v3004 = vpop.permute.xlu0 %3003
    %v3005 = vsel %vm226, %v3004, 0
    %3007 = vmatprep.subr.mxu0 0.0
    %3008 = vmatpush1.msra.mxu0 %v2475
    %3009 = vmatprep.subr.mxu0 0.0
    %3010 = vmatpush1.msra.mxu0 %v2476
    %3011 = vmatprep.subr.mxu0 0.0
    %3012 = vmatpush1.msra.mxu0 %v2477
    %3013 = vmatprep.subr.mxu0 0.0
    %3014 = vmatpush1.msra.mxu0 %v2478
    %3015 = vmatprep.subr.mxu0 0.0
    %3016 = vmatpush1.msra.mxu0 0.0
    %3017 = vmatprep.subr.mxu0 0.0
    %3018 = vmatpush1.msra.mxu0 0.0
    %3019 = vmatprep.subr.mxu0 0.0
    %3020 = vmatpush1.msra.mxu0 0.0
    %3021 = vmatprep.subr.mxu0 0.0
    %3022 = vmatpush1.msra.mxu0 0.0
    %3023 = vmatprep.subr.mxu0 0.0
    %3024 = vmatpush1.msra.mxu0 0.0
    %3025 = vmatprep.subr.mxu0 0.0
    %3026 = vmatpush1.msra.mxu0 0.0
    %3027 = vmatprep.subr.mxu0 0.0
    %3028 = vmatpush1.msra.mxu0 0.0
    %3029 = vmatprep.subr.mxu0 0.0
    %3030 = vmatpush1.msra.mxu0 0.0
    %3031 = vmatprep.subr.mxu0 0.0
    %3032 = vmatpush1.msra.mxu0 0.0
    %3033 = vmatprep.subr.mxu0 0.0
    %3034 = vmatpush1.msra.mxu0 0.0
    %3035 = vmatprep.subr.mxu0 0.0
    %3036 = vmatpush1.msra.mxu0 0.0
    %3037 = vmatprep.subr.mxu0 0.0
    %3038 = vmatpush1.msra.mxu0 0.0
    %3039 = vmatprep.subr.mxu0 0.0
    %3040 = vmatpush1.msra.mxu0 0.0
    %3041 = vmatprep.subr.mxu0 0.0
    %3042 = vmatpush1.msra.mxu0 0.0
    %3043 = vmatprep.subr.mxu0 0.0
    %3044 = vmatpush1.msra.mxu0 0.0
    %3045 = vmatprep.subr.mxu0 0.0
    %3046 = vmatpush1.msra.mxu0 0.0
    %3047 = vmatprep.subr.mxu0 0.0
    %3048 = vmatpush1.msra.mxu0 0.0
    %3049 = vmatprep.subr.mxu0 0.0
    %3050 = vmatpush1.msra.mxu0 0.0
    %3051 = vmatprep.subr.mxu0 0.0
    %3052 = vmatpush1.msra.mxu0 0.0
    %3053 = vmatprep.subr.mxu0 0.0
    %3054 = vmatpush1.msra.mxu0 0.0
    %3055 = vmatprep.subr.mxu0 0.0
    %3056 = vmatpush1.msra.mxu0 0.0
    %3057 = vmatprep.subr.mxu0 0.0
    %3058 = vmatpush1.msra.mxu0 0.0
    %3059 = vmatprep.subr.mxu0 0.0
    %3060 = vmatpush1.msra.mxu0 0.0
    %3061 = vmatprep.subr.mxu0 0.0
    %3062 = vmatpush1.msra.mxu0 0.0
    %3063 = vmatprep.subr.mxu0 0.0
    %3064 = vmatpush1.msra.mxu0 0.0
    %3065 = vmatprep.subr.mxu0 0.0
    %3066 = vmatpush1.msra.mxu0 0.0
    %3067 = vmatprep.subr.mxu0 0.0
    %3068 = vmatpush1.msra.mxu0 0.0
    %3069 = vmatprep.subr.mxu0 0.0
    %3070 = vmatpush1.msra.mxu0 0.0
    %3071 = vmatprep.mubr.f32.mxu0 0.0
    %3072 = vmatmul.mubr.f32.gmra.mrb[0].mxu0 %v3005
    %v3073 = vpop.f32.mrb[0].mxu0
    %v3074 = vadd.f32 %v2489, %v3073
    %v3075 = vpop.f32.mrb[0].mxu0
    %3076 = vdwg.mxu0
    %v3077 = vadd.f32 %v2470, %v3074
    %v3078 = vxor.u32 %v3077, 2147483648
    %v3079 = vmul.f32 %v3078, 1.442695
    %v3080 = vpow.pop %v3079
    %v3081 = vadd.f32 %v3080, 1.0
    %v3082 = vrcp.pop %v3081
    %v3083 = vmul.f32 1.0, %v3082
    %3085 = vrot.lane.b32.xlu0 %v3074, 64
    %v3086 = vpop.permute.xlu0 %3085
    %v3088 = vmul.f32 %v3083, %v3086
    %3090 = vrot.lane.b32.xlu0 %v3088, 64
    %v3091 = vpop.permute.xlu0 %3090
    %v3093 = vadd.f32 %v2470, %v3091
    %v3094 = vtanh.pop %v3093
    %v3095 = vsub.f32 1.0, %v3083
    %3097 = vrot.lane.b32.xlu0 %v3094, 96
    %v3098 = vpop.permute.xlu0 %3097
    %v3100 = vmul.f32 %v3095, %v3098
    %v3101 = vmul.f32 %v3083, %v3001
    %v3102 = vadd.f32 %v3100, %v3101
    %3104 = vrot.lane.b32.xlu0 %v3102, 96
    %v3105 = vpop.permute.xlu0 %3104
    %v3106 = vsel %vm226, %v3105, 0
    %3108 = vmatprep.subr.mxu0 0.0
    %3109 = vmatpush1.msra.mxu0 %v2475
    %3110 = vmatprep.subr.mxu0 0.0
    %3111 = vmatpush1.msra.mxu0 %v2476
    %3112 = vmatprep.subr.mxu0 0.0
    %3113 = vmatpush1.msra.mxu0 %v2477
    %3114 = vmatprep.subr.mxu0 0.0
    %3115 = vmatpush1.msra.mxu0 %v2478
    %3116 = vmatprep.subr.mxu0 0.0
    %3117 = vmatpush1.msra.mxu0 0.0
    %3118 = vmatprep.subr.mxu0 0.0
    %3119 = vmatpush1.msra.mxu0 0.0
    %3120 = vmatprep.subr.mxu0 0.0
    %3121 = vmatpush1.msra.mxu0 0.0
    %3122 = vmatprep.subr.mxu0 0.0
    %3123 = vmatpush1.msra.mxu0 0.0
    %3124 = vmatprep.subr.mxu0 0.0
    %3125 = vmatpush1.msra.mxu0 0.0
    %3126 = vmatprep.subr.mxu0 0.0
    %3127 = vmatpush1.msra.mxu0 0.0
    %3128 = vmatprep.subr.mxu0 0.0
    %3129 = vmatpush1.msra.mxu0 0.0
    %3130 = vmatprep.subr.mxu0 0.0
    %3131 = vmatpush1.msra.mxu0 0.0
    %3132 = vmatprep.subr.mxu0 0.0
    %3133 = vmatpush1.msra.mxu0 0.0
    %3134 = vmatprep.subr.mxu0 0.0
    %3135 = vmatpush1.msra.mxu0 0.0
    %3136 = vmatprep.subr.mxu0 0.0
    %3137 = vmatpush1.msra.mxu0 0.0
    %3138 = vmatprep.subr.mxu0 0.0
    %3139 = vmatpush1.msra.mxu0 0.0
    %3140 = vmatprep.subr.mxu0 0.0
    %3141 = vmatpush1.msra.mxu0 0.0
    %3142 = vmatprep.subr.mxu0 0.0
    %3143 = vmatpush1.msra.mxu0 0.0
    %3144 = vmatprep.subr.mxu0 0.0
    %3145 = vmatpush1.msra.mxu0 0.0
    %3146 = vmatprep.subr.mxu0 0.0
    %3147 = vmatpush1.msra.mxu0 0.0
    %3148 = vmatprep.subr.mxu0 0.0
    %3149 = vmatpush1.msra.mxu0 0.0
    %3150 = vmatprep.subr.mxu0 0.0
    %3151 = vmatpush1.msra.mxu0 0.0
    %3152 = vmatprep.subr.mxu0 0.0
    %3153 = vmatpush1.msra.mxu0 0.0
    %3154 = vmatprep.subr.mxu0 0.0
    %3155 = vmatpush1.msra.mxu0 0.0
    %3156 = vmatprep.subr.mxu0 0.0
    %3157 = vmatpush1.msra.mxu0 0.0
    %3158 = vmatprep.subr.mxu0 0.0
    %3159 = vmatpush1.msra.mxu0 0.0
    %3160 = vmatprep.subr.mxu0 0.0
    %3161 = vmatpush1.msra.mxu0 0.0
    %3162 = vmatprep.subr.mxu0 0.0
    %3163 = vmatpush1.msra.mxu0 0.0
    %3164 = vmatprep.subr.mxu0 0.0
    %3165 = vmatpush1.msra.mxu0 0.0
    %3166 = vmatprep.subr.mxu0 0.0
    %3167 = vmatpush1.msra.mxu0 0.0
    %3168 = vmatprep.subr.mxu0 0.0
    %3169 = vmatpush1.msra.mxu0 0.0
    %3170 = vmatprep.subr.mxu0 0.0
    %3171 = vmatpush1.msra.mxu0 0.0
    %3172 = vmatprep.mubr.f32.mxu0 0.0
    %3173 = vmatmul.mubr.f32.gmra.mrb[0].mxu0 %v3106
    %v3174 = vpop.f32.mrb[0].mxu0
    %v3175 = vadd.f32 %v2489, %v3174
    %v3176 = vpop.f32.mrb[0].mxu0
    %3177 = vdwg.mxu0
    %v3178 = vadd.f32 %v2471, %v3175
    %v3179 = vxor.u32 %v3178, 2147483648
    %v3180 = vmul.f32 %v3179, 1.442695
    %v3181 = vpow.pop %v3180
    %v3182 = vadd.f32 %v3181, 1.0
    %v3183 = vrcp.pop %v3182
    %v3184 = vmul.f32 1.0, %v3183
    %3186 = vrot.lane.b32.xlu0 %v3175, 64
    %v3187 = vpop.permute.xlu0 %3186
    %v3189 = vmul.f32 %v3184, %v3187
    %3191 = vrot.lane.b32.xlu0 %v3189, 64
    %v3192 = vpop.permute.xlu0 %3191
    %v3194 = vadd.f32 %v2471, %v3192
    %v3195 = vtanh.pop %v3194
    %v3196 = vsub.f32 1.0, %v3184
    %3198 = vrot.lane.b32.xlu0 %v3195, 96
    %v3199 = vpop.permute.xlu0 %3198
    %v3201 = vmul.f32 %v3196, %v3199
    %v3202 = vmul.f32 %v3184, %v3102
    %v3203 = vadd.f32 %v3201, %v3202
    %3205 = vrot.lane.b32.xlu0 %v3203, 96
    %v3206 = vpop.permute.xlu0 %3205
    %v3207 = vsel %vm226, %v3206, 0
    %3209 = vmatprep.subr.mxu0 0.0
    %3210 = vmatpush1.msra.mxu0 %v2475
    %3211 = vmatprep.subr.mxu0 0.0
    %3212 = vmatpush1.msra.mxu0 %v2476
    %3213 = vmatprep.subr.mxu0 0.0
    %3214 = vmatpush1.msra.mxu0 %v2477
    %3215 = vmatprep.subr.mxu0 0.0
    %3216 = vmatpush1.msra.mxu0 %v2478
    %3217 = vmatprep.subr.mxu0 0.0
    %3218 = vmatpush1.msra.mxu0 0.0
    %3219 = vmatprep.subr.mxu0 0.0
    %3220 = vmatpush1.msra.mxu0 0.0
    %3221 = vmatprep.subr.mxu0 0.0
    %3222 = vmatpush1.msra.mxu0 0.0
    %3223 = vmatprep.subr.mxu0 0.0
    %3224 = vmatpush1.msra.mxu0 0.0
    %3225 = vmatprep.subr.mxu0 0.0
    %3226 = vmatpush1.msra.mxu0 0.0
    %3227 = vmatprep.subr.mxu0 0.0
    %3228 = vmatpush1.msra.mxu0 0.0
    %3229 = vmatprep.subr.mxu0 0.0
    %3230 = vmatpush1.msra.mxu0 0.0
    %3231 = vmatprep.subr.mxu0 0.0
    %3232 = vmatpush1.msra.mxu0 0.0
    %3233 = vmatprep.subr.mxu0 0.0
    %3234 = vmatpush1.msra.mxu0 0.0
    %3235 = vmatprep.subr.mxu0 0.0
    %3236 = vmatpush1.msra.mxu0 0.0
    %3237 = vmatprep.subr.mxu0 0.0
    %3238 = vmatpush1.msra.mxu0 0.0
    %3239 = vmatprep.subr.mxu0 0.0
    %3240 = vmatpush1.msra.mxu0 0.0
    %3241 = vmatprep.subr.mxu0 0.0
    %3242 = vmatpush1.msra.mxu0 0.0
    %3243 = vmatprep.subr.mxu0 0.0
    %3244 = vmatpush1.msra.mxu0 0.0
    %3245 = vmatprep.subr.mxu0 0.0
    %3246 = vmatpush1.msra.mxu0 0.0
    %3247 = vmatprep.subr.mxu0 0.0
    %3248 = vmatpush1.msra.mxu0 0.0
    %3249 = vmatprep.subr.mxu0 0.0
    %3250 = vmatpush1.msra.mxu0 0.0
    %3251 = vmatprep.subr.mxu0 0.0
    %3252 = vmatpush1.msra.mxu0 0.0
    %3253 = vmatprep.subr.mxu0 0.0
    %3254 = vmatpush1.msra.mxu0 0.0
    %3255 = vmatprep.subr.mxu0 0.0
    %3256 = vmatpush1.msra.mxu0 0.0
    %3257 = vmatprep.subr.mxu0 0.0
    %3258 = vmatpush1.msra.mxu0 0.0
    %3259 = vmatprep.subr.mxu0 0.0
    %3260 = vmatpush1.msra.mxu0 0.0
    %3261 = vmatprep.subr.mxu0 0.0
    %3262 = vmatpush1.msra.mxu0 0.0
    %3263 = vmatprep.subr.mxu0 0.0
    %3264 = vmatpush1.msra.mxu0 0.0
    %3265 = vmatprep.subr.mxu0 0.0
    %3266 = vmatpush1.msra.mxu0 0.0
    %3267 = vmatprep.subr.mxu0 0.0
    %3268 = vmatpush1.msra.mxu0 0.0
    %3269 = vmatprep.subr.mxu0 0.0
    %3270 = vmatpush1.msra.mxu0 0.0
    %3271 = vmatprep.subr.mxu0 0.0
    %3272 = vmatpush1.msra.mxu0 0.0
    %3273 = vmatprep.mubr.f32.mxu0 0.0
    %3274 = vmatmul.mubr.f32.gmra.mrb[0].mxu0 %v3207
    %v3275 = vpop.f32.mrb[0].mxu0
    %v3276 = vadd.f32 %v2489, %v3275
    %v3277 = vpop.f32.mrb[0].mxu0
    %3278 = vdwg.mxu0
    %v3279 = vadd.f32 %v2472, %v3276
    %v3280 = vxor.u32 %v3279, 2147483648
    %v3281 = vmul.f32 %v3280, 1.442695
    %v3282 = vpow.pop %v3281
    %v3283 = vadd.f32 %v3282, 1.0
    %v3284 = vrcp.pop %v3283
    %v3285 = vmul.f32 1.0, %v3284
    %3287 = vrot.lane.b32.xlu0 %v3276, 64
    %v3288 = vpop.permute.xlu0 %3287
    %v3290 = vmul.f32 %v3285, %v3288
    %3292 = vrot.lane.b32.xlu0 %v3290, 64
    %v3293 = vpop.permute.xlu0 %3292
    %v3295 = vadd.f32 %v2472, %v3293
    %v3296 = vtanh.pop %v3295
    %v3297 = vsub.f32 1.0, %v3285
    %3299 = vrot.lane.b32.xlu0 %v3296, 96
    %v3300 = vpop.permute.xlu0 %3299
    %v3302 = vmul.f32 %v3297, %v3300
    %v3303 = vmul.f32 %v3285, %v3203
    %v3304 = vadd.f32 %v3302, %v3303
    %3306 = vrot.lane.b32.xlu0 %v3304, 96
    %v3307 = vpop.permute.xlu0 %3306
    %v3308 = vsel %vm226, %v3307, 0
    %3310 = vmatprep.subr.mxu0 0.0
    %3311 = vmatpush1.msra.mxu0 %v2475
    %3312 = vmatprep.subr.mxu0 0.0
    %3313 = vmatpush1.msra.mxu0 %v2476
    %3314 = vmatprep.subr.mxu0 0.0
    %3315 = vmatpush1.msra.mxu0 %v2477
    %3316 = vmatprep.subr.mxu0 0.0
    %3317 = vmatpush1.msra.mxu0 %v2478
    %3318 = vmatprep.subr.mxu0 0.0
    %3319 = vmatpush1.msra.mxu0 0.0
    %3320 = vmatprep.subr.mxu0 0.0
    %3321 = vmatpush1.msra.mxu0 0.0
    %3322 = vmatprep.subr.mxu0 0.0
    %3323 = vmatpush1.msra.mxu0 0.0
    %3324 = vmatprep.subr.mxu0 0.0
    %3325 = vmatpush1.msra.mxu0 0.0
    %3326 = vmatprep.subr.mxu0 0.0
    %3327 = vmatpush1.msra.mxu0 0.0
    %3328 = vmatprep.subr.mxu0 0.0
    %3329 = vmatpush1.msra.mxu0 0.0
    %3330 = vmatprep.subr.mxu0 0.0
    %3331 = vmatpush1.msra.mxu0 0.0
    %3332 = vmatprep.subr.mxu0 0.0
    %3333 = vmatpush1.msra.mxu0 0.0
    %3334 = vmatprep.subr.mxu0 0.0
    %3335 = vmatpush1.msra.mxu0 0.0
    %3336 = vmatprep.subr.mxu0 0.0
    %3337 = vmatpush1.msra.mxu0 0.0
    %3338 = vmatprep.subr.mxu0 0.0
    %3339 = vmatpush1.msra.mxu0 0.0
    %3340 = vmatprep.subr.mxu0 0.0
    %3341 = vmatpush1.msra.mxu0 0.0
    %3342 = vmatprep.subr.mxu0 0.0
    %3343 = vmatpush1.msra.mxu0 0.0
    %3344 = vmatprep.subr.mxu0 0.0
    %3345 = vmatpush1.msra.mxu0 0.0
    %3346 = vmatprep.subr.mxu0 0.0
    %3347 = vmatpush1.msra.mxu0 0.0
    %3348 = vmatprep.subr.mxu0 0.0
    %3349 = vmatpush1.msra.mxu0 0.0
    %3350 = vmatprep.subr.mxu0 0.0
    %3351 = vmatpush1.msra.mxu0 0.0
    %3352 = vmatprep.subr.mxu0 0.0
    %3353 = vmatpush1.msra.mxu0 0.0
    %3354 = vmatprep.subr.mxu0 0.0
    %3355 = vmatpush1.msra.mxu0 0.0
    %3356 = vmatprep.subr.mxu0 0.0
    %3357 = vmatpush1.msra.mxu0 0.0
    %3358 = vmatprep.subr.mxu0 0.0
    %3359 = vmatpush1.msra.mxu0 0.0
    %3360 = vmatprep.subr.mxu0 0.0
    %3361 = vmatpush1.msra.mxu0 0.0
    %3362 = vmatprep.subr.mxu0 0.0
    %3363 = vmatpush1.msra.mxu0 0.0
    %3364 = vmatprep.subr.mxu0 0.0
    %3365 = vmatpush1.msra.mxu0 0.0
    %3366 = vmatprep.subr.mxu0 0.0
    %3367 = vmatpush1.msra.mxu0 0.0
    %3368 = vmatprep.subr.mxu0 0.0
    %3369 = vmatpush1.msra.mxu0 0.0
    %3370 = vmatprep.subr.mxu0 0.0
    %3371 = vmatpush1.msra.mxu0 0.0
    %3372 = vmatprep.subr.mxu0 0.0
    %3373 = vmatpush1.msra.mxu0 0.0
    %3374 = vmatprep.mubr.f32.mxu0 0.0
    %3375 = vmatmul.mubr.f32.gmra.mrb[0].mxu0 %v3308
    %v3376 = vpop.f32.mrb[0].mxu0
    %v3377 = vadd.f32 %v2489, %v3376
    %v3378 = vpop.f32.mrb[0].mxu0
    %3379 = vdwg.mxu0
    %v3380 = vadd.f32 %v2473, %v3377
    %v3381 = vxor.u32 %v3380, 2147483648
    %v3382 = vmul.f32 %v3381, 1.442695
    %v3383 = vpow.pop %v3382
    %v3384 = vadd.f32 %v3383, 1.0
    %v3385 = vrcp.pop %v3384
    %v3386 = vmul.f32 1.0, %v3385
    %3388 = vrot.lane.b32.xlu0 %v3377, 64
    %v3389 = vpop.permute.xlu0 %3388
    %v3391 = vmul.f32 %v3386, %v3389
    %3393 = vrot.lane.b32.xlu0 %v3391, 64
    %v3394 = vpop.permute.xlu0 %3393
    %v3396 = vadd.f32 %v2473, %v3394
    %v3397 = vtanh.pop %v3396
    %v3398 = vsub.f32 1.0, %v3386
    %3400 = vrot.lane.b32.xlu0 %v3397, 96
    %v3401 = vpop.permute.xlu0 %3400
    %v3403 = vmul.f32 %v3398, %v3401
    %v3404 = vmul.f32 %v3386, %v3304
    %v3405 = vadd.f32 %v3403, %v3404
    %v3406 = vld [vmem:[#allocation19] sm:$0xff]
    %v3407 = vld [vmem:[#allocation19 + $0x8] sm:$0xff]
    %v3408 = vld [vmem:[#allocation19 + $0x10] sm:$0xff]
    %v3409 = vld [vmem:[#allocation19 + $0x18] sm:$0xff]
    %v3410 = vld [vmem:[#allocation19 + $0x20] sm:$0xff]
    %v3411 = vld [vmem:[#allocation19 + $0x28] sm:$0xff]
    %v3412 = vld [vmem:[#allocation19 + $0x30] sm:$0xff]
    %v3413 = vld [vmem:[#allocation19 + $0x38] sm:$0xff]
    %v3415 = vsel %vm226, %v2698, 0
    %3417 = vmatprep.subr.mxu0 0.0
    %3418 = vmatpush1.msra.mxu0 %v3410
    %3419 = vmatprep.subr.mxu0 0.0
    %3420 = vmatpush1.msra.mxu0 %v3411
    %3421 = vmatprep.subr.mxu0 0.0
    %3422 = vmatpush1.msra.mxu0 %v3412
    %3423 = vmatprep.subr.mxu0 0.0
    %3424 = vmatpush1.msra.mxu0 %v3413
    %3425 = vmatprep.subr.mxu0 0.0
    %3426 = vmatpush1.msra.mxu0 0.0
    %3427 = vmatprep.subr.mxu0 0.0
    %3428 = vmatpush1.msra.mxu0 0.0
    %3429 = vmatprep.subr.mxu0 0.0
    %3430 = vmatpush1.msra.mxu0 0.0
    %3431 = vmatprep.subr.mxu0 0.0
    %3432 = vmatpush1.msra.mxu0 0.0
    %3433 = vmatprep.subr.mxu0 0.0
    %3434 = vmatpush1.msra.mxu0 0.0
    %3435 = vmatprep.subr.mxu0 0.0
    %3436 = vmatpush1.msra.mxu0 0.0
    %3437 = vmatprep.subr.mxu0 0.0
    %3438 = vmatpush1.msra.mxu0 0.0
    %3439 = vmatprep.subr.mxu0 0.0
    %3440 = vmatpush1.msra.mxu0 0.0
    %3441 = vmatprep.subr.mxu0 0.0
    %3442 = vmatpush1.msra.mxu0 0.0
    %3443 = vmatprep.subr.mxu0 0.0
    %3444 = vmatpush1.msra.mxu0 0.0
    %3445 = vmatprep.subr.mxu0 0.0
    %3446 = vmatpush1.msra.mxu0 0.0
    %3447 = vmatprep.subr.mxu0 0.0
    %3448 = vmatpush1.msra.mxu0 0.0
    %3449 = vmatprep.subr.mxu0 0.0
    %3450 = vmatpush1.msra.mxu0 0.0
    %3451 = vmatprep.subr.mxu0 0.0
    %3452 = vmatpush1.msra.mxu0 0.0
    %3453 = vmatprep.subr.mxu0 0.0
    %3454 = vmatpush1.msra.mxu0 0.0
    %3455 = vmatprep.subr.mxu0 0.0
    %3456 = vmatpush1.msra.mxu0 0.0
    %3457 = vmatprep.subr.mxu0 0.0
    %3458 = vmatpush1.msra.mxu0 0.0
    %3459 = vmatprep.subr.mxu0 0.0
    %3460 = vmatpush1.msra.mxu0 0.0
    %3461 = vmatprep.subr.mxu0 0.0
    %3462 = vmatpush1.msra.mxu0 0.0
    %3463 = vmatprep.subr.mxu0 0.0
    %3464 = vmatpush1.msra.mxu0 0.0
    %3465 = vmatprep.subr.mxu0 0.0
    %3466 = vmatpush1.msra.mxu0 0.0
    %3467 = vmatprep.subr.mxu0 0.0
    %3468 = vmatpush1.msra.mxu0 0.0
    %3469 = vmatprep.subr.mxu0 0.0
    %3470 = vmatpush1.msra.mxu0 0.0
    %3471 = vmatprep.subr.mxu0 0.0
    %3472 = vmatpush1.msra.mxu0 0.0
    %3473 = vmatprep.subr.mxu0 0.0
    %3474 = vmatpush1.msra.mxu0 0.0
    %3475 = vmatprep.subr.mxu0 0.0
    %3476 = vmatpush1.msra.mxu0 0.0
    %3477 = vmatprep.subr.mxu0 0.0
    %3478 = vmatpush1.msra.mxu0 0.0
    %3479 = vmatprep.subr.mxu0 0.0
    %3480 = vmatpush1.msra.mxu0 0.0
    %3481 = vmatprep.mubr.f32.mxu0 0.0
    %3482 = vmatmul.mubr.f32.gmra.mrb[0].mxu0 %v3415
    %v3483 = vpop.f32.mrb[0].mxu0
    %v3484 = vadd.f32 0.0, %v3483
    %v3485 = vpop.f32.mrb[0].mxu0
    %3486 = vdwg.mxu0
    %3488 = vrot.lane.b32.xlu0 %v3405, 96
    %v3489 = vpop.permute.xlu0 %3488
    %v3490 = vsel %vm226, %v3489, 0
    %3492 = vmatprep.subr.mxu0 0.0
    %3493 = vmatpush1.msra.mxu0 %v3406
    %3494 = vmatprep.subr.mxu0 0.0
    %3495 = vmatpush1.msra.mxu0 %v3407
    %3496 = vmatprep.subr.mxu0 0.0
    %3497 = vmatpush1.msra.mxu0 %v3408
    %3498 = vmatprep.subr.mxu0 0.0
    %3499 = vmatpush1.msra.mxu0 %v3409
    %3500 = vmatprep.subr.mxu0 0.0
    %3501 = vmatpush1.msra.mxu0 0.0
    %3502 = vmatprep.subr.mxu0 0.0
    %3503 = vmatpush1.msra.mxu0 0.0
    %3504 = vmatprep.subr.mxu0 0.0
    %3505 = vmatpush1.msra.mxu0 0.0
    %3506 = vmatprep.subr.mxu0 0.0
    %3507 = vmatpush1.msra.mxu0 0.0
    %3508 = vmatprep.subr.mxu0 0.0
    %3509 = vmatpush1.msra.mxu0 0.0
    %3510 = vmatprep.subr.mxu0 0.0
    %3511 = vmatpush1.msra.mxu0 0.0
    %3512 = vmatprep.subr.mxu0 0.0
    %3513 = vmatpush1.msra.mxu0 0.0
    %3514 = vmatprep.subr.mxu0 0.0
    %3515 = vmatpush1.msra.mxu0 0.0
    %3516 = vmatprep.subr.mxu0 0.0
    %3517 = vmatpush1.msra.mxu0 0.0
    %3518 = vmatprep.subr.mxu0 0.0
    %3519 = vmatpush1.msra.mxu0 0.0
    %3520 = vmatprep.subr.mxu0 0.0
    %3521 = vmatpush1.msra.mxu0 0.0
    %3522 = vmatprep.subr.mxu0 0.0
    %3523 = vmatpush1.msra.mxu0 0.0
    %3524 = vmatprep.subr.mxu0 0.0
    %3525 = vmatpush1.msra.mxu0 0.0
    %3526 = vmatprep.subr.mxu0 0.0
    %3527 = vmatpush1.msra.mxu0 0.0
    %3528 = vmatprep.subr.mxu0 0.0
    %3529 = vmatpush1.msra.mxu0 0.0
    %3530 = vmatprep.subr.mxu0 0.0
    %3531 = vmatpush1.msra.mxu0 0.0
    %3532 = vmatprep.subr.mxu0 0.0
    %3533 = vmatpush1.msra.mxu0 0.0
    %3534 = vmatprep.subr.mxu0 0.0
    %3535 = vmatpush1.msra.mxu0 0.0
    %3536 = vmatprep.subr.mxu0 0.0
    %3537 = vmatpush1.msra.mxu0 0.0
    %3538 = vmatprep.subr.mxu0 0.0
    %3539 = vmatpush1.msra.mxu0 0.0
    %3540 = vmatprep.subr.mxu0 0.0
    %3541 = vmatpush1.msra.mxu0 0.0
    %3542 = vmatprep.subr.mxu0 0.0
    %3543 = vmatpush1.msra.mxu0 0.0
    %3544 = vmatprep.subr.mxu0 0.0
    %3545 = vmatpush1.msra.mxu0 0.0
    %3546 = vmatprep.subr.mxu0 0.0
    %3547 = vmatpush1.msra.mxu0 0.0
    %3548 = vmatprep.subr.mxu0 0.0
    %3549 = vmatpush1.msra.mxu0 0.0
    %3550 = vmatprep.subr.mxu0 0.0
    %3551 = vmatpush1.msra.mxu0 0.0
    %3552 = vmatprep.subr.mxu0 0.0
    %3553 = vmatpush1.msra.mxu0 0.0
    %3554 = vmatprep.subr.mxu0 0.0
    %3555 = vmatpush1.msra.mxu0 0.0
    %3556 = vmatprep.mubr.f32.mxu0 0.0
    %3557 = vmatmul.mubr.f32.gmra.mrb[0].mxu0 %v3490
    %v3558 = vpop.f32.mrb[0].mxu0
    %v3559 = vadd.f32 %v3484, %v3558
    %v3560 = vpop.f32.mrb[0].mxu0
    %3561 = vdwg.mxu0
    %v3562 = vld [vmem:[%s16] sm:$0x1]
    %v3564 = vlaneseq
    %v3565 = vshrl.u32 %v3564, 7
    %v3566 = vsub.s32 0, %v3565
    %v3567 = vrot.slane %v3562, %v3566
    %v3569 = vadd.f32 %v3559, %v3567
    %vm3570 = vcmask 15360
    %v3571 = vsel %vm3570, %v3569, -inf
    %3572 = vmax.xlane.f32.xlu0 %v3571
    %v3573 = vpop.xlane.xlu0 %3572
    %v3574 = vsub.f32 %v3569, %v3573
    %v3575 = vmul.f32 %v3574, 1.442695
    %v3576 = vpow.pop %v3575
    %v3577 = vsel %vm3570, %v3576, 0.0
    %3578 = vadd.xlane.f32.xlu0 %v3577
    %v3579 = vpop.xlane.xlu0 %3578
    %v3580 = vrcp.pop %v3579
    %v3581 = vmul.f32 %v3576, %v3580
    %3582 = vst.msk [vmem:[%s17] sm:$0xff] %vm3570, %v3581
    // Predicated region
    $region118: #{fin_rnn_forward.1} parent=1 // pred_check
      _
    $region119: #{fin_rnn_forward.1} parent=1 // pred_check_branch
      %3584 = sbr.rel (0) target = $region121
    $region120: #{fin_rnn_forward.1} parent=1 // pred_region
      _
    $region121: #{fin_rnn_forward.1} parent=1 // pred_fallthru
      _
    // Predicated region
    $region122: #{fin_rnn_forward.1} parent=1 // pred_check
      _
    $region123: #{fin_rnn_forward.1} parent=1 // pred_check_branch
      %3586 = sbr.rel (0) target = $region125
    $region124: #{fin_rnn_forward.1} parent=1 // pred_region
      _
    $region125: #{fin_rnn_forward.1} parent=1 // pred_fallthru
      _
    %3587 = vsyncpa [#allocation3], 1
    %3588 = vsyncpa [#allocation5], 1
    %3589 = vsyncpa [#allocation8], 1
    %3590 = vsyncpa [#allocation11], 1
    %3591 = vsyncpa [#allocation14], 1
    %3592 = vsyncpa [#allocation17], 1
    %3593 = vsyncpa [#allocation20], 1

</llo_original>
